<compile_context>
chip_gen: v7x
topology: tpu7x:2x2x1
jax: 0.10.0
libtpu: 0.0.40
codegen_flags: <defaults>
</compile_context>

<pallas_src>
import functools
import math

import jax
import jax.numpy as jnp
from jax import lax
from jax.experimental import pallas as pl
from jax.experimental.pallas import tpu as pltpu

LN_EPS = 1e-5
NEG_INF = -1e30
HEAD_PAD = 128  # lane-dense padding for the action-head output


def _layernorm(x, w, b):
    mu = jnp.mean(x, axis=-1, keepdims=True)
    var = jnp.mean((x - mu) ** 2, axis=-1, keepdims=True)
    return (x - mu) * lax.rsqrt(var + LN_EPS) * w + b


def _gelu(x):
    # exact GELU (nn.GELU default), erf-based
    return 0.5 * x * (1.0 + lax.erf(x / math.sqrt(2.0)))


def _mm(a, b, dtype):
    # MXU matmul with f32 accumulation; dtype=bf16 on v6e/v7x for higher rate.
    return jnp.dot(a.astype(dtype), b.astype(dtype),
                   preferred_element_type=jnp.float32)


def _full_spec(arr):
    n = arr.ndim
    return pl.BlockSpec(arr.shape, lambda g, _n=n: (0,) * _n)


# ---------------------------------------------------------------------------
# Fused kernel: embeddings + emb_norm + all blocks + out_norm + action head
# ---------------------------------------------------------------------------
def _dt_kernel(inp_ref, temb_ref, mask_ref,
               we_ref, be_ref, elnw_ref, elnb_ref,
               ln1w_ref, ln1b_ref, wqkv_ref, bqkv_ref, wo_ref, bo_ref,
               ln2w_ref, ln2b_ref, w1_ref, b1_ref, w2_ref, b2_ref,
               olnw_ref, olnb_ref, hw_ref, hb_ref,
               out_ref, *,
               num_layers, num_heads, head_dim, batch_tile, seq_len,
               max_action, matmul_dtype):
    L = seq_len
    S = 3 * L
    E = num_heads * head_dim
    Bt = batch_tile
    scale = 1.0 / math.sqrt(head_dim)

    # ---- fused token embeddings: ONE (Bt*L, Ds+1+Da) x (Din, 3E) matmul ----
    emb = _mm(inp_ref[...], we_ref[...], matmul_dtype) + be_ref[...]
    temb = temb_ref[...]                                     # (Bt*L, E)
    elnw = elnw_ref[...]
    elnb = elnb_ref[...]
    # emb_norm is per-token, so applying it before placing tokens into the
    # grouped layout is identical to PyTorch's post-interleave LayerNorm.
    s_e = _layernorm(emb[:, 0:E] + temb, elnw, elnb)
    r_e = _layernorm(emb[:, E:2 * E] + temb, elnw, elnb)
    a_e = _layernorm(emb[:, 2 * E:3 * E] + temb, elnw, elnb)

    # Grouped physical token order per batch element: [r_0..r_{L-1}, s_.., a_..]
    # (attention with the matching logical-position mask is permutation
    #  equivalent to PyTorch's interleaved [r_t, s_t, a_t] order).
    parts = []
    for b in range(Bt):
        sl = slice(b * L, (b + 1) * L)
        parts += [r_e[sl], s_e[sl], a_e[sl]]
    x = jnp.concatenate(parts, axis=0)                       # (Bt*S, E)

    add_mask = mask_ref[...]                                 # (S, S), hoisted

    for l in range(num_layers):
        # ------ attention branch (pre-LN, fused QKV projection) ------
        h = _layernorm(x, ln1w_ref[l], ln1b_ref[l])
        qkv = _mm(h, wqkv_ref[l], matmul_dtype) + bqkv_ref[l]   # (Bt*S, 3E)
        wo = wo_ref[l]
        attn_parts = []
        for b in range(Bt):
            rs = slice(b * S, (b + 1) * S)
            q = qkv[rs, 0:E] * scale
            k = qkv[rs, E:2 * E]
            v = qkv[rs, 2 * E:3 * E]
            acc = None
            for hd in range(num_heads):
                cs = slice(hd * head_dim, (hd + 1) * head_dim)
                s = lax.dot_general(
                    q[:, cs].astype(matmul_dtype),
                    k[:, cs].astype(matmul_dtype),
                    (((1,), (1,)), ((), ())),
                    preferred_element_type=jnp.float32)      # (S, S)
                s = s + add_mask
                s = s - jnp.max(s, axis=-1, keepdims=True)
                p = jnp.exp(s)
                p = p / jnp.sum(p, axis=-1, keepdims=True)
                ctx = _mm(p, v[:, cs], matmul_dtype)          # (S, Dh)
                # output projection accumulated per head slice of W_o:
                # avoids concatenating per-head context tiles.
                contrib = _mm(ctx, wo[cs, :], matmul_dtype)   # (S, E)
                acc = contrib if acc is None else acc + contrib
            attn_parts.append(acc)
        attn = attn_parts[0] if Bt == 1 else jnp.concatenate(attn_parts, axis=0)
        x = x + attn + bo_ref[l]

        # ------ MLP branch ------
        h2 = _layernorm(x, ln2w_ref[l], ln2b_ref[l])
        m = _gelu(_mm(h2, w1_ref[l], matmul_dtype) + b1_ref[l])
        x = x + _mm(m, w2_ref[l], matmul_dtype) + b2_ref[l]

    # ---- out_norm + action head on state tokens (group 1 == 1::3 slice) ----
    st_parts = [x[b * S + L: b * S + 2 * L, :] for b in range(Bt)]
    st = st_parts[0] if Bt == 1 else jnp.concatenate(st_parts, axis=0)
    st = _layernorm(st, olnw_ref[...], olnb_ref[...])
    y = jnp.tanh(_mm(st, hw_ref[...], matmul_dtype) + hb_ref[...])
    out_ref[...] = y * max_action                            # (Bt*L, HEAD_PAD)


# ---------------------------------------------------------------------------
# Parameter packing: per-layer dicts -> stacked / fused arrays for the kernel
# ---------------------------------------------------------------------------
def pack_params(params):
    E = params["emb_ln_w"].shape[-1]
    Ds = params["ws"].shape[0]
    Da = params["wa"].shape[0]
    Din = Ds + 1 + Da

    # block-diagonal fused embedding weight: chunks = [state | return | action]
    we = jnp.zeros((Din, 3 * E), jnp.float32)
    we = we.at[0:Ds, 0:E].set(params["ws"])
    we = we.at[Ds:Ds + 1, E:2 * E].set(params["wr"])
    we = we.at[Ds + 1:Din, 2 * E:3 * E].set(params["wa"])
    be = jnp.concatenate([params["bs"], params["br"], params["ba"]], axis=1)

    hp = max(HEAD_PAD, ((Da + 127) // 128) * 128)
    hw = jnp.zeros((E, hp), jnp.float32).at[:, 0:Da].set(params["head_w"])
    hb = jnp.zeros((1, hp), jnp.float32).at[:, 0:Da].set(params["head_b"])

    def stack(name):
        return jnp.stack([blk[name] for blk in params["blocks"]], axis=0)

    return {
        "timestep_table": params["timestep_table"],
        "we": we, "be": be,
        "emb_ln_w": params["emb_ln_w"], "emb_ln_b": params["emb_ln_b"],
        "out_ln_w": params["out_ln_w"], "out_ln_b": params["out_ln_b"],
        "head_w": hw, "head_b": hb,
        "ln1_w": stack("ln1_w"), "ln1_b": stack("ln1_b"),
        "ln2_w": stack("ln2_w"), "ln2_b": stack("ln2_b"),
        "wqkv": jnp.stack([jnp.concatenate([b["wq"], b["wk"], b["wv"]], axis=1)
                           for b in params["blocks"]], axis=0),
        "bqkv": jnp.stack([jnp.concatenate([b["bq"], b["bk"], b["bv"]], axis=1)
                           for b in params["blocks"]], axis=0),
        "wo": stack("wo"), "bo": stack("bo"),
        "w1": stack("w1"), "b1": stack("b1"),
        "w2": stack("w2"), "b2": stack("b2"),
    }


# ---------------------------------------------------------------------------
# Full forward (single pallas_call + thin glue on tiny tensors)
# ---------------------------------------------------------------------------
def decision_transformer_forward(packed, states, actions, returns_to_go,
                                 time_steps, *, num_heads, max_action,
                                 matmul_dtype=jnp.float32):
    # TODO(synk): padding_mask (key_padding_mask) path not implemented; this
    # reproduces the padding_mask=None forward and all dropout probs are 0.
    B, L, Ds = states.shape
    Da = actions.shape[-1]
    E = packed["emb_ln_w"].shape[-1]
    NL = packed["wqkv"].shape[0]
    S = 3 * L
    Din = Ds + 1 + Da
    head_dim = E // num_heads
    HP = packed["head_w"].shape[-1]

    # ---- glue (all tiny) ----------------------------------------------------
    inp = jnp.concatenate(
        [states.astype(jnp.float32),
         returns_to_go[..., None].astype(jnp.float32),
         actions.astype(jnp.float32)], axis=-1).reshape(B * L, Din)
    temb = packed["timestep_table"][time_steps].reshape(B * L, E)
    # causal mask expressed in the kernel's grouped-physical token order:
    # physical index i -> (type=i//L, t=i%L) -> logical interleaved pos 3t+type
    typ = jnp.arange(S, dtype=jnp.int32) // L
    tt = jnp.arange(S, dtype=jnp.int32) % L
    logical = 3 * tt + typ
    mask = jnp.where(logical[None, :] > logical[:, None],
                     jnp.float32(NEG_INF), jnp.float32(0.0))

    # batch tiling: keep a 2-wide parallel grid for v7x's dual TensorCores
    # when possible; otherwise fold the whole batch into one grid step.
    grid_b = 2 if (B >= 2 and B % 2 == 0 and ((B // 2) * L) % 8 == 0) else 1
    Bt = B // grid_b

    kernel = functools.partial(
        _dt_kernel, num_layers=NL, num_heads=num_heads, head_dim=head_dim,
        batch_tile=Bt, seq_len=L, max_action=max_action,
        matmul_dtype=matmul_dtype)

    def tiled(shape):
        return pl.BlockSpec(shape, lambda g: (g, 0))

    weights = [packed[k] for k in
               ("we", "be", "emb_ln_w", "emb_ln_b",
                "ln1_w", "ln1_b", "wqkv", "bqkv", "wo", "bo",
                "ln2_w", "ln2_b", "w1", "b1", "w2", "b2",
                "out_ln_w", "out_ln_b", "head_w", "head_b")]

    out_flat = pl.pallas_call(
        kernel,
        grid=(grid_b,),
        in_specs=[tiled((Bt * L, Din)), tiled((Bt * L, E)), _full_spec(mask)]
                 + [_full_spec(w) for w in weights],
        out_specs=pl.BlockSpec((Bt * L, HP), lambda g: (g, 0)),
        out_shape=jax.ShapeDtypeStruct((B * L, HP), jnp.float32),
        compiler_params=pltpu.CompilerParams(
            dimension_semantics=("parallel",)),
    )(inp, temb, mask, *weights)

    return out_flat[:, :Da].reshape(B, L, Da)


# ---------------------------------------------------------------------------
# Deterministic parameter init (shapes follow the PyTorch __init__)
# ---------------------------------------------------------------------------
def init_params(key, *, state_dim, action_dim, seq_len, episode_len,
                embedding_dim, num_layers):
    E = embedding_dim
    std = 0.02
    keys = list(jax.random.split(key, 6 + 6 * num_layers))
    kit = iter(keys)

    def lin(din, dout):
        # stored pre-transposed (din, dout); bias stored as (1, dout)
        w = (jax.random.normal(next(kit), (din, dout), jnp.float32) * std)
        b = jnp.zeros((1, dout), jnp.float32)
        return w, b

    p = {}
    p["timestep_table"] = (jax.random.normal(next(kit),
                                             (episode_len + seq_len, E),
                                             jnp.float32) * std)
    p["ws"], p["bs"] = lin(state_dim, E)
    p["wa"], p["ba"] = lin(action_dim, E)
    p["wr"], p["br"] = lin(1, E)
    p["emb_ln_w"], p["emb_ln_b"] = jnp.ones((1, E)), jnp.zeros((1, E))
    p["out_ln_w"], p["out_ln_b"] = jnp.ones((1, E)), jnp.zeros((1, E))
    p["head_w"], p["head_b"] = lin(E, action_dim)
    blocks = []
    for _ in range(num_layers):
        blk = {}
        blk["ln1_w"], blk["ln1_b"] = jnp.ones((1, E)), jnp.zeros((1, E))
        blk["ln2_w"], blk["ln2_b"] = jnp.ones((1, E)), jnp.zeros((1, E))
        blk["wq"], blk["bq"] = lin(E, E)
        blk["wk"], blk["bk"] = lin(E, E)
        blk["wv"], blk["bv"] = lin(E, E)
        blk["wo"], blk["bo"] = lin(E, E)
        blk["w1"], blk["b1"] = lin(E, 4 * E)
        blk["w2"], blk["b2"] = lin(4 * E, E)
        blocks.append(blk)
    p["blocks"] = blocks
    return p


# ---------------------------------------------------------------------------
# Pure-JAX reference (mirrors the PyTorch forward) for correctness checking
# ---------------------------------------------------------------------------
def reference_forward(params, states, actions, rtg, time_steps, *,
                      num_heads, max_action):
    B, L, _ = states.shape
    E = params["timestep_table"].shape[-1]
    Dh = E // num_heads
    temb = params["timestep_table"][time_steps]
    s_e = states @ params["ws"] + params["bs"] + temb
    a_e = actions @ params["wa"] + params["ba"] + temb
    r_e = rtg[..., None] @ params["wr"] + params["br"] + temb
    seq = jnp.stack([r_e, s_e, a_e], axis=2).reshape(B, 3 * L, E)
    x = _layernorm(seq, params["emb_ln_w"], params["emb_ln_b"])
    S = 3 * L
    row = jnp.arange(S)[:, None]
    col = jnp.arange(S)[None, :]
    add_mask = jnp.where(col > row, NEG_INF, 0.0)
    for blk in params["blocks"]:
        h = _layernorm(x, blk["ln1_w"], blk["ln1_b"])
        q = (h @ blk["wq"] + blk["bq"]).reshape(B, S, num_heads, Dh)
        k = (h @ blk["wk"] + blk["bk"]).reshape(B, S, num_heads, Dh)
        v = (h @ blk["wv"] + blk["bv"]).reshape(B, S, num_heads, Dh)
        scores = jnp.einsum("bshd,bthd->bhst", q, k) / math.sqrt(Dh)
        scores = scores + add_mask
        p = jax.nn.softmax(scores, axis=-1)
        ctx = jnp.einsum("bhst,bthd->bshd", p, v).reshape(B, S, E)
        x = x + ctx @ blk["wo"] + blk["bo"]
        h2 = _layernorm(x, blk["ln2_w"], blk["ln2_b"])
        m = _gelu(h2 @ blk["w1"] + blk["b1"]) @ blk["w2"] + blk["b2"]
        x = x + m
    x = _layernorm(x, params["out_ln_w"], params["out_ln_b"])
    y = jnp.tanh(x[:, 1::3] @ params["head_w"] + params["head_b"]) * max_action
    return y


if __name__ == "__main__":
    # small, module-consistent shapes
    B = 2
    seq_len = 8          # L  (token sequence length S = 3L = 24)
    state_dim = 11
    action_dim = 3
    embedding_dim = 32
    num_heads = 4
    num_layers = 2
    episode_len = 16
    max_action = 1.0

    key = jax.random.PRNGKey(0)
    k_s, k_a, k_r, k_p = jax.random.split(key, 4)
    states = jax.random.normal(k_s, (B, seq_len, state_dim), jnp.float32)
    actions = jax.random.normal(k_a, (B, seq_len, action_dim), jnp.float32)
    returns_to_go = jax.random.normal(k_r, (B, seq_len), jnp.float32)
    time_steps = (jnp.arange(seq_len)[None, :]
                  + jnp.arange(B)[:, None]).astype(jnp.int32)

    params = init_params(k_p, state_dim=state_dim, action_dim=action_dim,
                         seq_len=seq_len, episode_len=episode_len,
                         embedding_dim=embedding_dim, num_layers=num_layers)
    packed = pack_params(params)

    out = decision_transformer_forward(packed, states, actions, returns_to_go,
                                       time_steps, num_heads=num_heads,
                                       max_action=max_action)
    out = jax.block_until_ready(out)
    assert out.shape == (B, seq_len, action_dim), out.shape

    ref = reference_forward(params, states, actions, returns_to_go, time_steps,
                            num_heads=num_heads, max_action=max_action)
    ref = jax.block_until_ready(ref)
    assert jnp.allclose(out, ref, atol=1e-3, rtol=1e-3), \
        float(jnp.max(jnp.abs(out - ref)))

    print("KERNEL_OK")
</pallas_src>

<mosaic_0001>
module attributes {stable_mosaic.version = 11 : i64} {
  func.func @_dt_kernel(%arg0: i32, %arg1: memref<8x15xf32, #tpu.memory_space<vmem>>, %arg2: memref<8x32xf32, #tpu.memory_space<vmem>>, %arg3: memref<24x24xf32, #tpu.memory_space<vmem>>, %arg4: memref<15x96xf32, #tpu.memory_space<vmem>>, %arg5: memref<1x96xf32, #tpu.memory_space<vmem>>, %arg6: memref<1x32xf32, #tpu.memory_space<vmem>>, %arg7: memref<1x32xf32, #tpu.memory_space<vmem>>, %arg8: memref<2x1x32xf32, #tpu.memory_space<vmem>>, %arg9: memref<2x1x32xf32, #tpu.memory_space<vmem>>, %arg10: memref<2x32x96xf32, #tpu.memory_space<vmem>>, %arg11: memref<2x1x96xf32, #tpu.memory_space<vmem>>, %arg12: memref<2x32x32xf32, #tpu.memory_space<vmem>>, %arg13: memref<2x1x32xf32, #tpu.memory_space<vmem>>, %arg14: memref<2x1x32xf32, #tpu.memory_space<vmem>>, %arg15: memref<2x1x32xf32, #tpu.memory_space<vmem>>, %arg16: memref<2x32x128xf32, #tpu.memory_space<vmem>>, %arg17: memref<2x1x128xf32, #tpu.memory_space<vmem>>, %arg18: memref<2x128x32xf32, #tpu.memory_space<vmem>>, %arg19: memref<2x1x32xf32, #tpu.memory_space<vmem>>, %arg20: memref<1x32xf32, #tpu.memory_space<vmem>>, %arg21: memref<1x32xf32, #tpu.memory_space<vmem>>, %arg22: memref<32x128xf32, #tpu.memory_space<vmem>>, %arg23: memref<1x128xf32, #tpu.memory_space<vmem>>, %arg24: memref<8x128xf32, #tpu.memory_space<vmem>>) attributes {dimension_semantics = [#tpu.dimension_semantics<parallel>], iteration_bounds = array<i64: 2>, scalar_prefetch = 0 : i64, scratch_operands = 0 : i64, tpu.core_type = #tpu.core_type<tc>, window_params = [{transform_indices = @transform_0, window_bounds = array<i64: 8, 15>}, {transform_indices = @transform_1, window_bounds = array<i64: 8, 32>}, {pipeline_mode = #tpu.pipeline_mode<synchronous>, transform_indices = @transform_2, window_bounds = array<i64: 24, 24>}, {pipeline_mode = #tpu.pipeline_mode<synchronous>, transform_indices = @transform_3, window_bounds = array<i64: 15, 96>}, {pipeline_mode = #tpu.pipeline_mode<synchronous>, transform_indices = @transform_4, window_bounds = array<i64: 1, 96>}, {pipeline_mode = #tpu.pipeline_mode<synchronous>, transform_indices = @transform_5, window_bounds = array<i64: 1, 32>}, {pipeline_mode = #tpu.pipeline_mode<synchronous>, transform_indices = @transform_6, window_bounds = array<i64: 1, 32>}, {pipeline_mode = #tpu.pipeline_mode<synchronous>, transform_indices = @transform_7, window_bounds = array<i64: 2, 1, 32>}, {pipeline_mode = #tpu.pipeline_mode<synchronous>, transform_indices = @transform_8, window_bounds = array<i64: 2, 1, 32>}, {pipeline_mode = #tpu.pipeline_mode<synchronous>, transform_indices = @transform_9, window_bounds = array<i64: 2, 32, 96>}, {pipeline_mode = #tpu.pipeline_mode<synchronous>, transform_indices = @transform_10, window_bounds = array<i64: 2, 1, 96>}, {pipeline_mode = #tpu.pipeline_mode<synchronous>, transform_indices = @transform_11, window_bounds = array<i64: 2, 32, 32>}, {pipeline_mode = #tpu.pipeline_mode<synchronous>, transform_indices = @transform_12, window_bounds = array<i64: 2, 1, 32>}, {pipeline_mode = #tpu.pipeline_mode<synchronous>, transform_indices = @transform_13, window_bounds = array<i64: 2, 1, 32>}, {pipeline_mode = #tpu.pipeline_mode<synchronous>, transform_indices = @transform_14, window_bounds = array<i64: 2, 1, 32>}, {pipeline_mode = #tpu.pipeline_mode<synchronous>, transform_indices = @transform_15, window_bounds = array<i64: 2, 32, 128>}, {pipeline_mode = #tpu.pipeline_mode<synchronous>, transform_indices = @transform_16, window_bounds = array<i64: 2, 1, 128>}, {pipeline_mode = #tpu.pipeline_mode<synchronous>, transform_indices = @transform_17, window_bounds = array<i64: 2, 128, 32>}, {pipeline_mode = #tpu.pipeline_mode<synchronous>, transform_indices = @transform_18, window_bounds = array<i64: 2, 1, 32>}, {pipeline_mode = #tpu.pipeline_mode<synchronous>, transform_indices = @transform_19, window_bounds = array<i64: 1, 32>}, {pipeline_mode = #tpu.pipeline_mode<synchronous>, transform_indices = @transform_20, window_bounds = array<i64: 1, 32>}, {pipeline_mode = #tpu.pipeline_mode<synchronous>, transform_indices = @transform_21, window_bounds = array<i64: 32, 128>}, {pipeline_mode = #tpu.pipeline_mode<synchronous>, transform_indices = @transform_22, window_bounds = array<i64: 1, 128>}, {transform_indices = @transform_23, window_bounds = array<i64: 8, 128>}]} {
    %c0 = arith.constant 0 : index
    %c0_0 = arith.constant 0 : index
    %0 = vector.load %arg1[%c0, %c0_0] : memref<8x15xf32, #tpu.memory_space<vmem>>, vector<8x15xf32>
    %c0_1 = arith.constant 0 : index
    %c0_2 = arith.constant 0 : index
    %1 = vector.load %arg4[%c0_1, %c0_2] : memref<15x96xf32, #tpu.memory_space<vmem>>, vector<15x96xf32>
    %cst = arith.constant dense<0.000000e+00> : vector<8x96xf32>
    %2 = tpu.matmul %0, %1, %cst {dimension_numbers = #tpu.dot_dimension_numbers<[1], [0], [0], [1], [0, 0, 1, 1], [], []>} : vector<8x15xf32>, vector<15x96xf32>, vector<8x96xf32> -> vector<8x96xf32>
    %c0_3 = arith.constant 0 : index
    %c0_4 = arith.constant 0 : index
    %3 = vector.load %arg5[%c0_3, %c0_4] : memref<1x96xf32, #tpu.memory_space<vmem>>, vector<1x96xf32>
    %4 = vector.broadcast %3 : vector<1x96xf32> to vector<8x96xf32>
    %5 = arith.addf %2, %4 : vector<8x96xf32>
    %c0_5 = arith.constant 0 : index
    %c0_6 = arith.constant 0 : index
    %6 = vector.load %arg2[%c0_5, %c0_6] : memref<8x32xf32, #tpu.memory_space<vmem>>, vector<8x32xf32>
    %c0_7 = arith.constant 0 : index
    %c0_8 = arith.constant 0 : index
    %7 = vector.load %arg6[%c0_7, %c0_8] : memref<1x32xf32, #tpu.memory_space<vmem>>, vector<1x32xf32>
    %c0_9 = arith.constant 0 : index
    %c0_10 = arith.constant 0 : index
    %8 = vector.load %arg7[%c0_9, %c0_10] : memref<1x32xf32, #tpu.memory_space<vmem>>, vector<1x32xf32>
    %9 = vector.extract_strided_slice %5 {offsets = [0, 0], sizes = [8, 32], strides = [1, 1]} : vector<8x96xf32> to vector<8x32xf32>
    %10 = arith.addf %9, %6 : vector<8x32xf32>
    %cst_11 = arith.constant dense<0.000000e+00> : vector<8xf32>
    %11 = vector.multi_reduction <add>, %10, %cst_11 [1] : vector<8x32xf32> to vector<8xf32>
    %12 = vector.shape_cast %11 : vector<8xf32> to vector<8x1xf32>
    %cst_12 = arith.constant 3.200000e+01 : f32
    %13 = vector.broadcast %cst_12 : f32 to vector<8x1xf32>
    %14 = arith.divf %12, %13 : vector<8x1xf32>
    %15 = vector.broadcast %14 : vector<8x1xf32> to vector<8x32xf32>
    %16 = arith.subf %10, %15 : vector<8x32xf32>
    %17 = arith.mulf %16, %16 : vector<8x32xf32>
    %cst_13 = arith.constant dense<0.000000e+00> : vector<8xf32>
    %18 = vector.multi_reduction <add>, %17, %cst_13 [1] : vector<8x32xf32> to vector<8xf32>
    %19 = vector.shape_cast %18 : vector<8xf32> to vector<8x1xf32>
    %cst_14 = arith.constant 3.200000e+01 : f32
    %20 = vector.broadcast %cst_14 : f32 to vector<8x1xf32>
    %21 = arith.divf %19, %20 : vector<8x1xf32>
    %22 = vector.broadcast %14 : vector<8x1xf32> to vector<8x32xf32>
    %23 = arith.subf %10, %22 : vector<8x32xf32>
    %cst_15 = arith.constant 9.99999974E-6 : f32
    %24 = vector.broadcast %cst_15 : f32 to vector<8x1xf32>
    %25 = arith.addf %21, %24 : vector<8x1xf32>
    %26 = math.rsqrt %25 : vector<8x1xf32>
    %27 = vector.broadcast %26 : vector<8x1xf32> to vector<8x32xf32>
    %28 = arith.mulf %23, %27 : vector<8x32xf32>
    %29 = vector.broadcast %7 : vector<1x32xf32> to vector<8x32xf32>
    %30 = arith.mulf %28, %29 : vector<8x32xf32>
    %31 = vector.broadcast %8 : vector<1x32xf32> to vector<8x32xf32>
    %32 = arith.addf %30, %31 : vector<8x32xf32>
    %33 = vector.extract_strided_slice %5 {offsets = [0, 32], sizes = [8, 32], strides = [1, 1]} : vector<8x96xf32> to vector<8x32xf32>
    %34 = arith.addf %33, %6 : vector<8x32xf32>
    %cst_16 = arith.constant dense<0.000000e+00> : vector<8xf32>
    %35 = vector.multi_reduction <add>, %34, %cst_16 [1] : vector<8x32xf32> to vector<8xf32>
    %36 = vector.shape_cast %35 : vector<8xf32> to vector<8x1xf32>
    %cst_17 = arith.constant 3.200000e+01 : f32
    %37 = vector.broadcast %cst_17 : f32 to vector<8x1xf32>
    %38 = arith.divf %36, %37 : vector<8x1xf32>
    %39 = vector.broadcast %38 : vector<8x1xf32> to vector<8x32xf32>
    %40 = arith.subf %34, %39 : vector<8x32xf32>
    %41 = arith.mulf %40, %40 : vector<8x32xf32>
    %cst_18 = arith.constant dense<0.000000e+00> : vector<8xf32>
    %42 = vector.multi_reduction <add>, %41, %cst_18 [1] : vector<8x32xf32> to vector<8xf32>
    %43 = vector.shape_cast %42 : vector<8xf32> to vector<8x1xf32>
    %cst_19 = arith.constant 3.200000e+01 : f32
    %44 = vector.broadcast %cst_19 : f32 to vector<8x1xf32>
    %45 = arith.divf %43, %44 : vector<8x1xf32>
    %46 = vector.broadcast %38 : vector<8x1xf32> to vector<8x32xf32>
    %47 = arith.subf %34, %46 : vector<8x32xf32>
    %cst_20 = arith.constant 9.99999974E-6 : f32
    %48 = vector.broadcast %cst_20 : f32 to vector<8x1xf32>
    %49 = arith.addf %45, %48 : vector<8x1xf32>
    %50 = math.rsqrt %49 : vector<8x1xf32>
    %51 = vector.broadcast %50 : vector<8x1xf32> to vector<8x32xf32>
    %52 = arith.mulf %47, %51 : vector<8x32xf32>
    %53 = vector.broadcast %7 : vector<1x32xf32> to vector<8x32xf32>
    %54 = arith.mulf %52, %53 : vector<8x32xf32>
    %55 = vector.broadcast %8 : vector<1x32xf32> to vector<8x32xf32>
    %56 = arith.addf %54, %55 : vector<8x32xf32>
    %57 = vector.extract_strided_slice %5 {offsets = [0, 64], sizes = [8, 32], strides = [1, 1]} : vector<8x96xf32> to vector<8x32xf32>
    %58 = arith.addf %57, %6 : vector<8x32xf32>
    %cst_21 = arith.constant dense<0.000000e+00> : vector<8xf32>
    %59 = vector.multi_reduction <add>, %58, %cst_21 [1] : vector<8x32xf32> to vector<8xf32>
    %60 = vector.shape_cast %59 : vector<8xf32> to vector<8x1xf32>
    %cst_22 = arith.constant 3.200000e+01 : f32
    %61 = vector.broadcast %cst_22 : f32 to vector<8x1xf32>
    %62 = arith.divf %60, %61 : vector<8x1xf32>
    %63 = vector.broadcast %62 : vector<8x1xf32> to vector<8x32xf32>
    %64 = arith.subf %58, %63 : vector<8x32xf32>
    %65 = arith.mulf %64, %64 : vector<8x32xf32>
    %cst_23 = arith.constant dense<0.000000e+00> : vector<8xf32>
    %66 = vector.multi_reduction <add>, %65, %cst_23 [1] : vector<8x32xf32> to vector<8xf32>
    %67 = vector.shape_cast %66 : vector<8xf32> to vector<8x1xf32>
    %cst_24 = arith.constant 3.200000e+01 : f32
    %68 = vector.broadcast %cst_24 : f32 to vector<8x1xf32>
    %69 = arith.divf %67, %68 : vector<8x1xf32>
    %70 = vector.broadcast %62 : vector<8x1xf32> to vector<8x32xf32>
    %71 = arith.subf %58, %70 : vector<8x32xf32>
    %cst_25 = arith.constant 9.99999974E-6 : f32
    %72 = vector.broadcast %cst_25 : f32 to vector<8x1xf32>
    %73 = arith.addf %69, %72 : vector<8x1xf32>
    %74 = math.rsqrt %73 : vector<8x1xf32>
    %75 = vector.broadcast %74 : vector<8x1xf32> to vector<8x32xf32>
    %76 = arith.mulf %71, %75 : vector<8x32xf32>
    %77 = vector.broadcast %7 : vector<1x32xf32> to vector<8x32xf32>
    %78 = arith.mulf %76, %77 : vector<8x32xf32>
    %79 = vector.broadcast %8 : vector<1x32xf32> to vector<8x32xf32>
    %80 = arith.addf %78, %79 : vector<8x32xf32>
    %81 = tpu.concatenate %56, %32, %80 in 0 : vector<8x32xf32>, vector<8x32xf32>, vector<8x32xf32> -> vector<24x32xf32>
    %c0_26 = arith.constant 0 : index
    %c0_27 = arith.constant 0 : index
    %82 = vector.load %arg3[%c0_26, %c0_27] : memref<24x24xf32, #tpu.memory_space<vmem>>, vector<24x24xf32>
    %c0_28 = arith.constant 0 : index
    %c0_29 = arith.constant 0 : index
    %c0_30 = arith.constant 0 : index
    %83 = vector.load %arg8[%c0_28, %c0_29, %c0_30] : memref<2x1x32xf32, #tpu.memory_space<vmem>>, vector<1x1x32xf32>
    %84 = vector.shape_cast %83 : vector<1x1x32xf32> to vector<1x32xf32>
    %c0_31 = arith.constant 0 : index
    %c0_32 = arith.constant 0 : index
    %c0_33 = arith.constant 0 : index
    %85 = vector.load %arg9[%c0_31, %c0_32, %c0_33] : memref<2x1x32xf32, #tpu.memory_space<vmem>>, vector<1x1x32xf32>
    %86 = vector.shape_cast %85 : vector<1x1x32xf32> to vector<1x32xf32>
    %cst_34 = arith.constant dense<0.000000e+00> : vector<24xf32>
    %87 = vector.multi_reduction <add>, %81, %cst_34 [1] : vector<24x32xf32> to vector<24xf32>
    %88 = vector.shape_cast %87 : vector<24xf32> to vector<24x1xf32>
    %cst_35 = arith.constant 3.200000e+01 : f32
    %89 = vector.broadcast %cst_35 : f32 to vector<24x1xf32>
    %90 = arith.divf %88, %89 : vector<24x1xf32>
    %91 = vector.broadcast %90 : vector<24x1xf32> to vector<24x32xf32>
    %92 = arith.subf %81, %91 : vector<24x32xf32>
    %93 = arith.mulf %92, %92 : vector<24x32xf32>
    %cst_36 = arith.constant dense<0.000000e+00> : vector<24xf32>
    %94 = vector.multi_reduction <add>, %93, %cst_36 [1] : vector<24x32xf32> to vector<24xf32>
    %95 = vector.shape_cast %94 : vector<24xf32> to vector<24x1xf32>
    %cst_37 = arith.constant 3.200000e+01 : f32
    %96 = vector.broadcast %cst_37 : f32 to vector<24x1xf32>
    %97 = arith.divf %95, %96 : vector<24x1xf32>
    %98 = vector.broadcast %90 : vector<24x1xf32> to vector<24x32xf32>
    %99 = arith.subf %81, %98 : vector<24x32xf32>
    %cst_38 = arith.constant 9.99999974E-6 : f32
    %100 = vector.broadcast %cst_38 : f32 to vector<24x1xf32>
    %101 = arith.addf %97, %100 : vector<24x1xf32>
    %102 = math.rsqrt %101 : vector<24x1xf32>
    %103 = vector.broadcast %102 : vector<24x1xf32> to vector<24x32xf32>
    %104 = arith.mulf %99, %103 : vector<24x32xf32>
    %105 = vector.broadcast %84 : vector<1x32xf32> to vector<24x32xf32>
    %106 = arith.mulf %104, %105 : vector<24x32xf32>
    %107 = vector.broadcast %86 : vector<1x32xf32> to vector<24x32xf32>
    %108 = arith.addf %106, %107 : vector<24x32xf32>
    %c0_39 = arith.constant 0 : index
    %c0_40 = arith.constant 0 : index
    %c0_41 = arith.constant 0 : index
    %109 = vector.load %arg10[%c0_39, %c0_40, %c0_41] : memref<2x32x96xf32, #tpu.memory_space<vmem>>, vector<1x32x96xf32>
    %110 = vector.shape_cast %109 : vector<1x32x96xf32> to vector<32x96xf32>
    %cst_42 = arith.constant dense<0.000000e+00> : vector<24x96xf32>
    %111 = tpu.matmul %108, %110, %cst_42 {dimension_numbers = #tpu.dot_dimension_numbers<[1], [0], [0], [1], [0, 0, 1, 1], [], []>} : vector<24x32xf32>, vector<32x96xf32>, vector<24x96xf32> -> vector<24x96xf32>
    %c0_43 = arith.constant 0 : index
    %c0_44 = arith.constant 0 : index
    %c0_45 = arith.constant 0 : index
    %112 = vector.load %arg11[%c0_43, %c0_44, %c0_45] : memref<2x1x96xf32, #tpu.memory_space<vmem>>, vector<1x1x96xf32>
    %113 = vector.shape_cast %112 : vector<1x1x96xf32> to vector<1x96xf32>
    %114 = vector.broadcast %113 : vector<1x96xf32> to vector<24x96xf32>
    %115 = arith.addf %111, %114 : vector<24x96xf32>
    %c0_46 = arith.constant 0 : index
    %c0_47 = arith.constant 0 : index
    %c0_48 = arith.constant 0 : index
    %116 = vector.load %arg12[%c0_46, %c0_47, %c0_48] : memref<2x32x32xf32, #tpu.memory_space<vmem>>, vector<1x32x32xf32>
    %117 = vector.shape_cast %116 : vector<1x32x32xf32> to vector<32x32xf32>
    %118 = vector.extract_strided_slice %115 {offsets = [0, 0], sizes = [24, 32], strides = [1, 1]} : vector<24x96xf32> to vector<24x32xf32>
    %cst_49 = arith.constant 0.353553385 : f32
    %119 = vector.broadcast %cst_49 : f32 to vector<24x32xf32>
    %120 = arith.mulf %118, %119 : vector<24x32xf32>
    %121 = vector.extract_strided_slice %115 {offsets = [0, 32], sizes = [24, 32], strides = [1, 1]} : vector<24x96xf32> to vector<24x32xf32>
    %122 = vector.extract_strided_slice %115 {offsets = [0, 64], sizes = [24, 32], strides = [1, 1]} : vector<24x96xf32> to vector<24x32xf32>
    %123 = vector.extract_strided_slice %120 {offsets = [0, 0], sizes = [24, 8], strides = [1, 1]} : vector<24x32xf32> to vector<24x8xf32>
    %124 = vector.extract_strided_slice %121 {offsets = [0, 0], sizes = [24, 8], strides = [1, 1]} : vector<24x32xf32> to vector<24x8xf32>
    %cst_50 = arith.constant dense<0.000000e+00> : vector<24x24xf32>
    %125 = tpu.matmul %123, %124, %cst_50 {dimension_numbers = #tpu.dot_dimension_numbers<[1], [1], [0], [0], [0, 0, 1, 0], [], []>} : vector<24x8xf32>, vector<24x8xf32>, vector<24x24xf32> -> vector<24x24xf32>
    %126 = arith.addf %125, %82 : vector<24x24xf32>
    %cst_51 = arith.constant dense<0xFF800000> : vector<24xf32>
    %127 = vector.multi_reduction <maximumf>, %126, %cst_51 [1] : vector<24x24xf32> to vector<24xf32>
    %128 = vector.shape_cast %127 : vector<24xf32> to vector<24x1xf32>
    %129 = vector.broadcast %128 : vector<24x1xf32> to vector<24x24xf32>
    %130 = arith.subf %126, %129 : vector<24x24xf32>
    %131 = math.exp %130 : vector<24x24xf32>
    %cst_52 = arith.constant dense<0.000000e+00> : vector<24xf32>
    %132 = vector.multi_reduction <add>, %131, %cst_52 [1] : vector<24x24xf32> to vector<24xf32>
    %133 = vector.shape_cast %132 : vector<24xf32> to vector<24x1xf32>
    %134 = vector.broadcast %133 : vector<24x1xf32> to vector<24x24xf32>
    %135 = arith.divf %131, %134 : vector<24x24xf32>
    %136 = vector.extract_strided_slice %122 {offsets = [0, 0], sizes = [24, 8], strides = [1, 1]} : vector<24x32xf32> to vector<24x8xf32>
    %cst_53 = arith.constant dense<0.000000e+00> : vector<24x8xf32>
    %137 = tpu.matmul %135, %136, %cst_53 {dimension_numbers = #tpu.dot_dimension_numbers<[1], [0], [0], [1], [0, 0, 1, 1], [], []>} : vector<24x24xf32>, vector<24x8xf32>, vector<24x8xf32> -> vector<24x8xf32>
    %138 = vector.extract_strided_slice %117 {offsets = [0, 0], sizes = [8, 32], strides = [1, 1]} : vector<32x32xf32> to vector<8x32xf32>
    %cst_54 = arith.constant dense<0.000000e+00> : vector<24x32xf32>
    %139 = tpu.matmul %137, %138, %cst_54 {dimension_numbers = #tpu.dot_dimension_numbers<[1], [0], [0], [1], [0, 0, 1, 1], [], []>} : vector<24x8xf32>, vector<8x32xf32>, vector<24x32xf32> -> vector<24x32xf32>
    %140 = vector.extract_strided_slice %120 {offsets = [0, 8], sizes = [24, 8], strides = [1, 1]} : vector<24x32xf32> to vector<24x8xf32>
    %141 = vector.extract_strided_slice %121 {offsets = [0, 8], sizes = [24, 8], strides = [1, 1]} : vector<24x32xf32> to vector<24x8xf32>
    %cst_55 = arith.constant dense<0.000000e+00> : vector<24x24xf32>
    %142 = tpu.matmul %140, %141, %cst_55 {dimension_numbers = #tpu.dot_dimension_numbers<[1], [1], [0], [0], [0, 0, 1, 0], [], []>} : vector<24x8xf32>, vector<24x8xf32>, vector<24x24xf32> -> vector<24x24xf32>
    %143 = arith.addf %142, %82 : vector<24x24xf32>
    %cst_56 = arith.constant dense<0xFF800000> : vector<24xf32>
    %144 = vector.multi_reduction <maximumf>, %143, %cst_56 [1] : vector<24x24xf32> to vector<24xf32>
    %145 = vector.shape_cast %144 : vector<24xf32> to vector<24x1xf32>
    %146 = vector.broadcast %145 : vector<24x1xf32> to vector<24x24xf32>
    %147 = arith.subf %143, %146 : vector<24x24xf32>
    %148 = math.exp %147 : vector<24x24xf32>
    %cst_57 = arith.constant dense<0.000000e+00> : vector<24xf32>
    %149 = vector.multi_reduction <add>, %148, %cst_57 [1] : vector<24x24xf32> to vector<24xf32>
    %150 = vector.shape_cast %149 : vector<24xf32> to vector<24x1xf32>
    %151 = vector.broadcast %150 : vector<24x1xf32> to vector<24x24xf32>
    %152 = arith.divf %148, %151 : vector<24x24xf32>
    %153 = vector.extract_strided_slice %122 {offsets = [0, 8], sizes = [24, 8], strides = [1, 1]} : vector<24x32xf32> to vector<24x8xf32>
    %cst_58 = arith.constant dense<0.000000e+00> : vector<24x8xf32>
    %154 = tpu.matmul %152, %153, %cst_58 {dimension_numbers = #tpu.dot_dimension_numbers<[1], [0], [0], [1], [0, 0, 1, 1], [], []>} : vector<24x24xf32>, vector<24x8xf32>, vector<24x8xf32> -> vector<24x8xf32>
    %155 = vector.extract_strided_slice %117 {offsets = [8, 0], sizes = [8, 32], strides = [1, 1]} : vector<32x32xf32> to vector<8x32xf32>
    %cst_59 = arith.constant dense<0.000000e+00> : vector<24x32xf32>
    %156 = tpu.matmul %154, %155, %cst_59 {dimension_numbers = #tpu.dot_dimension_numbers<[1], [0], [0], [1], [0, 0, 1, 1], [], []>} : vector<24x8xf32>, vector<8x32xf32>, vector<24x32xf32> -> vector<24x32xf32>
    %157 = arith.addf %139, %156 : vector<24x32xf32>
    %158 = vector.extract_strided_slice %120 {offsets = [0, 16], sizes = [24, 8], strides = [1, 1]} : vector<24x32xf32> to vector<24x8xf32>
    %159 = vector.extract_strided_slice %121 {offsets = [0, 16], sizes = [24, 8], strides = [1, 1]} : vector<24x32xf32> to vector<24x8xf32>
    %cst_60 = arith.constant dense<0.000000e+00> : vector<24x24xf32>
    %160 = tpu.matmul %158, %159, %cst_60 {dimension_numbers = #tpu.dot_dimension_numbers<[1], [1], [0], [0], [0, 0, 1, 0], [], []>} : vector<24x8xf32>, vector<24x8xf32>, vector<24x24xf32> -> vector<24x24xf32>
    %161 = arith.addf %160, %82 : vector<24x24xf32>
    %cst_61 = arith.constant dense<0xFF800000> : vector<24xf32>
    %162 = vector.multi_reduction <maximumf>, %161, %cst_61 [1] : vector<24x24xf32> to vector<24xf32>
    %163 = vector.shape_cast %162 : vector<24xf32> to vector<24x1xf32>
    %164 = vector.broadcast %163 : vector<24x1xf32> to vector<24x24xf32>
    %165 = arith.subf %161, %164 : vector<24x24xf32>
    %166 = math.exp %165 : vector<24x24xf32>
    %cst_62 = arith.constant dense<0.000000e+00> : vector<24xf32>
    %167 = vector.multi_reduction <add>, %166, %cst_62 [1] : vector<24x24xf32> to vector<24xf32>
    %168 = vector.shape_cast %167 : vector<24xf32> to vector<24x1xf32>
    %169 = vector.broadcast %168 : vector<24x1xf32> to vector<24x24xf32>
    %170 = arith.divf %166, %169 : vector<24x24xf32>
    %171 = vector.extract_strided_slice %122 {offsets = [0, 16], sizes = [24, 8], strides = [1, 1]} : vector<24x32xf32> to vector<24x8xf32>
    %cst_63 = arith.constant dense<0.000000e+00> : vector<24x8xf32>
    %172 = tpu.matmul %170, %171, %cst_63 {dimension_numbers = #tpu.dot_dimension_numbers<[1], [0], [0], [1], [0, 0, 1, 1], [], []>} : vector<24x24xf32>, vector<24x8xf32>, vector<24x8xf32> -> vector<24x8xf32>
    %173 = vector.extract_strided_slice %117 {offsets = [16, 0], sizes = [8, 32], strides = [1, 1]} : vector<32x32xf32> to vector<8x32xf32>
    %cst_64 = arith.constant dense<0.000000e+00> : vector<24x32xf32>
    %174 = tpu.matmul %172, %173, %cst_64 {dimension_numbers = #tpu.dot_dimension_numbers<[1], [0], [0], [1], [0, 0, 1, 1], [], []>} : vector<24x8xf32>, vector<8x32xf32>, vector<24x32xf32> -> vector<24x32xf32>
    %175 = arith.addf %157, %174 : vector<24x32xf32>
    %176 = vector.extract_strided_slice %120 {offsets = [0, 24], sizes = [24, 8], strides = [1, 1]} : vector<24x32xf32> to vector<24x8xf32>
    %177 = vector.extract_strided_slice %121 {offsets = [0, 24], sizes = [24, 8], strides = [1, 1]} : vector<24x32xf32> to vector<24x8xf32>
    %cst_65 = arith.constant dense<0.000000e+00> : vector<24x24xf32>
    %178 = tpu.matmul %176, %177, %cst_65 {dimension_numbers = #tpu.dot_dimension_numbers<[1], [1], [0], [0], [0, 0, 1, 0], [], []>} : vector<24x8xf32>, vector<24x8xf32>, vector<24x24xf32> -> vector<24x24xf32>
    %179 = arith.addf %178, %82 : vector<24x24xf32>
    %cst_66 = arith.constant dense<0xFF800000> : vector<24xf32>
    %180 = vector.multi_reduction <maximumf>, %179, %cst_66 [1] : vector<24x24xf32> to vector<24xf32>
    %181 = vector.shape_cast %180 : vector<24xf32> to vector<24x1xf32>
    %182 = vector.broadcast %181 : vector<24x1xf32> to vector<24x24xf32>
    %183 = arith.subf %179, %182 : vector<24x24xf32>
    %184 = math.exp %183 : vector<24x24xf32>
    %cst_67 = arith.constant dense<0.000000e+00> : vector<24xf32>
    %185 = vector.multi_reduction <add>, %184, %cst_67 [1] : vector<24x24xf32> to vector<24xf32>
    %186 = vector.shape_cast %185 : vector<24xf32> to vector<24x1xf32>
    %187 = vector.broadcast %186 : vector<24x1xf32> to vector<24x24xf32>
    %188 = arith.divf %184, %187 : vector<24x24xf32>
    %189 = vector.extract_strided_slice %122 {offsets = [0, 24], sizes = [24, 8], strides = [1, 1]} : vector<24x32xf32> to vector<24x8xf32>
    %cst_68 = arith.constant dense<0.000000e+00> : vector<24x8xf32>
    %190 = tpu.matmul %188, %189, %cst_68 {dimension_numbers = #tpu.dot_dimension_numbers<[1], [0], [0], [1], [0, 0, 1, 1], [], []>} : vector<24x24xf32>, vector<24x8xf32>, vector<24x8xf32> -> vector<24x8xf32>
    %191 = vector.extract_strided_slice %117 {offsets = [24, 0], sizes = [8, 32], strides = [1, 1]} : vector<32x32xf32> to vector<8x32xf32>
    %cst_69 = arith.constant dense<0.000000e+00> : vector<24x32xf32>
    %192 = tpu.matmul %190, %191, %cst_69 {dimension_numbers = #tpu.dot_dimension_numbers<[1], [0], [0], [1], [0, 0, 1, 1], [], []>} : vector<24x8xf32>, vector<8x32xf32>, vector<24x32xf32> -> vector<24x32xf32>
    %193 = arith.addf %175, %192 : vector<24x32xf32>
    %194 = arith.addf %81, %193 : vector<24x32xf32>
    %c0_70 = arith.constant 0 : index
    %c0_71 = arith.constant 0 : index
    %c0_72 = arith.constant 0 : index
    %195 = vector.load %arg13[%c0_70, %c0_71, %c0_72] : memref<2x1x32xf32, #tpu.memory_space<vmem>>, vector<1x1x32xf32>
    %196 = vector.shape_cast %195 : vector<1x1x32xf32> to vector<1x32xf32>
    %197 = vector.broadcast %196 : vector<1x32xf32> to vector<24x32xf32>
    %198 = arith.addf %194, %197 : vector<24x32xf32>
    %c0_73 = arith.constant 0 : index
    %c0_74 = arith.constant 0 : index
    %c0_75 = arith.constant 0 : index
    %199 = vector.load %arg14[%c0_73, %c0_74, %c0_75] : memref<2x1x32xf32, #tpu.memory_space<vmem>>, vector<1x1x32xf32>
    %200 = vector.shape_cast %199 : vector<1x1x32xf32> to vector<1x32xf32>
    %c0_76 = arith.constant 0 : index
    %c0_77 = arith.constant 0 : index
    %c0_78 = arith.constant 0 : index
    %201 = vector.load %arg15[%c0_76, %c0_77, %c0_78] : memref<2x1x32xf32, #tpu.memory_space<vmem>>, vector<1x1x32xf32>
    %202 = vector.shape_cast %201 : vector<1x1x32xf32> to vector<1x32xf32>
    %cst_79 = arith.constant dense<0.000000e+00> : vector<24xf32>
    %203 = vector.multi_reduction <add>, %198, %cst_79 [1] : vector<24x32xf32> to vector<24xf32>
    %204 = vector.shape_cast %203 : vector<24xf32> to vector<24x1xf32>
    %cst_80 = arith.constant 3.200000e+01 : f32
    %205 = vector.broadcast %cst_80 : f32 to vector<24x1xf32>
    %206 = arith.divf %204, %205 : vector<24x1xf32>
    %207 = vector.broadcast %206 : vector<24x1xf32> to vector<24x32xf32>
    %208 = arith.subf %198, %207 : vector<24x32xf32>
    %209 = arith.mulf %208, %208 : vector<24x32xf32>
    %cst_81 = arith.constant dense<0.000000e+00> : vector<24xf32>
    %210 = vector.multi_reduction <add>, %209, %cst_81 [1] : vector<24x32xf32> to vector<24xf32>
    %211 = vector.shape_cast %210 : vector<24xf32> to vector<24x1xf32>
    %cst_82 = arith.constant 3.200000e+01 : f32
    %212 = vector.broadcast %cst_82 : f32 to vector<24x1xf32>
    %213 = arith.divf %211, %212 : vector<24x1xf32>
    %214 = vector.broadcast %206 : vector<24x1xf32> to vector<24x32xf32>
    %215 = arith.subf %198, %214 : vector<24x32xf32>
    %cst_83 = arith.constant 9.99999974E-6 : f32
    %216 = vector.broadcast %cst_83 : f32 to vector<24x1xf32>
    %217 = arith.addf %213, %216 : vector<24x1xf32>
    %218 = math.rsqrt %217 : vector<24x1xf32>
    %219 = vector.broadcast %218 : vector<24x1xf32> to vector<24x32xf32>
    %220 = arith.mulf %215, %219 : vector<24x32xf32>
    %221 = vector.broadcast %200 : vector<1x32xf32> to vector<24x32xf32>
    %222 = arith.mulf %220, %221 : vector<24x32xf32>
    %223 = vector.broadcast %202 : vector<1x32xf32> to vector<24x32xf32>
    %224 = arith.addf %222, %223 : vector<24x32xf32>
    %c0_84 = arith.constant 0 : index
    %c0_85 = arith.constant 0 : index
    %c0_86 = arith.constant 0 : index
    %225 = vector.load %arg16[%c0_84, %c0_85, %c0_86] : memref<2x32x128xf32, #tpu.memory_space<vmem>>, vector<1x32x128xf32>
    %226 = vector.shape_cast %225 : vector<1x32x128xf32> to vector<32x128xf32>
    %cst_87 = arith.constant dense<0.000000e+00> : vector<24x128xf32>
    %227 = tpu.matmul %224, %226, %cst_87 {dimension_numbers = #tpu.dot_dimension_numbers<[1], [0], [0], [1], [0, 0, 1, 1], [], []>} : vector<24x32xf32>, vector<32x128xf32>, vector<24x128xf32> -> vector<24x128xf32>
    %c0_88 = arith.constant 0 : index
    %c0_89 = arith.constant 0 : index
    %c0_90 = arith.constant 0 : index
    %228 = vector.load %arg17[%c0_88, %c0_89, %c0_90] : memref<2x1x128xf32, #tpu.memory_space<vmem>>, vector<1x1x128xf32>
    %229 = vector.shape_cast %228 : vector<1x1x128xf32> to vector<1x128xf32>
    %230 = vector.broadcast %229 : vector<1x128xf32> to vector<24x128xf32>
    %231 = arith.addf %227, %230 : vector<24x128xf32>
    %cst_91 = arith.constant 5.000000e-01 : f32
    %232 = vector.broadcast %cst_91 : f32 to vector<24x128xf32>
    %233 = arith.mulf %232, %231 : vector<24x128xf32>
    %cst_92 = arith.constant 1.41421354 : f32
    %234 = vector.broadcast %cst_92 : f32 to vector<24x128xf32>
    %235 = arith.divf %231, %234 : vector<24x128xf32>
    %236 = math.erf %235 : vector<24x128xf32>
    %cst_93 = arith.constant 1.000000e+00 : f32
    %237 = vector.broadcast %cst_93 : f32 to vector<24x128xf32>
    %238 = arith.addf %237, %236 : vector<24x128xf32>
    %239 = arith.mulf %233, %238 : vector<24x128xf32>
    %c0_94 = arith.constant 0 : index
    %c0_95 = arith.constant 0 : index
    %c0_96 = arith.constant 0 : index
    %240 = vector.load %arg18[%c0_94, %c0_95, %c0_96] : memref<2x128x32xf32, #tpu.memory_space<vmem>>, vector<1x128x32xf32>
    %241 = vector.shape_cast %240 : vector<1x128x32xf32> to vector<128x32xf32>
    %cst_97 = arith.constant dense<0.000000e+00> : vector<24x32xf32>
    %242 = tpu.matmul %239, %241, %cst_97 {dimension_numbers = #tpu.dot_dimension_numbers<[1], [0], [0], [1], [0, 0, 1, 1], [], []>} : vector<24x128xf32>, vector<128x32xf32>, vector<24x32xf32> -> vector<24x32xf32>
    %243 = arith.addf %198, %242 : vector<24x32xf32>
    %c0_98 = arith.constant 0 : index
    %c0_99 = arith.constant 0 : index
    %c0_100 = arith.constant 0 : index
    %244 = vector.load %arg19[%c0_98, %c0_99, %c0_100] : memref<2x1x32xf32, #tpu.memory_space<vmem>>, vector<1x1x32xf32>
    %245 = vector.shape_cast %244 : vector<1x1x32xf32> to vector<1x32xf32>
    %246 = vector.broadcast %245 : vector<1x32xf32> to vector<24x32xf32>
    %247 = arith.addf %243, %246 : vector<24x32xf32>
    %c1 = arith.constant 1 : index
    %c0_101 = arith.constant 0 : index
    %c0_102 = arith.constant 0 : index
    %248 = vector.load %arg8[%c1, %c0_101, %c0_102] : memref<2x1x32xf32, #tpu.memory_space<vmem>>, vector<1x1x32xf32>
    %249 = vector.shape_cast %248 : vector<1x1x32xf32> to vector<1x32xf32>
    %c1_103 = arith.constant 1 : index
    %c0_104 = arith.constant 0 : index
    %c0_105 = arith.constant 0 : index
    %250 = vector.load %arg9[%c1_103, %c0_104, %c0_105] : memref<2x1x32xf32, #tpu.memory_space<vmem>>, vector<1x1x32xf32>
    %251 = vector.shape_cast %250 : vector<1x1x32xf32> to vector<1x32xf32>
    %cst_106 = arith.constant dense<0.000000e+00> : vector<24xf32>
    %252 = vector.multi_reduction <add>, %247, %cst_106 [1] : vector<24x32xf32> to vector<24xf32>
    %253 = vector.shape_cast %252 : vector<24xf32> to vector<24x1xf32>
    %cst_107 = arith.constant 3.200000e+01 : f32
    %254 = vector.broadcast %cst_107 : f32 to vector<24x1xf32>
    %255 = arith.divf %253, %254 : vector<24x1xf32>
    %256 = vector.broadcast %255 : vector<24x1xf32> to vector<24x32xf32>
    %257 = arith.subf %247, %256 : vector<24x32xf32>
    %258 = arith.mulf %257, %257 : vector<24x32xf32>
    %cst_108 = arith.constant dense<0.000000e+00> : vector<24xf32>
    %259 = vector.multi_reduction <add>, %258, %cst_108 [1] : vector<24x32xf32> to vector<24xf32>
    %260 = vector.shape_cast %259 : vector<24xf32> to vector<24x1xf32>
    %cst_109 = arith.constant 3.200000e+01 : f32
    %261 = vector.broadcast %cst_109 : f32 to vector<24x1xf32>
    %262 = arith.divf %260, %261 : vector<24x1xf32>
    %263 = vector.broadcast %255 : vector<24x1xf32> to vector<24x32xf32>
    %264 = arith.subf %247, %263 : vector<24x32xf32>
    %cst_110 = arith.constant 9.99999974E-6 : f32
    %265 = vector.broadcast %cst_110 : f32 to vector<24x1xf32>
    %266 = arith.addf %262, %265 : vector<24x1xf32>
    %267 = math.rsqrt %266 : vector<24x1xf32>
    %268 = vector.broadcast %267 : vector<24x1xf32> to vector<24x32xf32>
    %269 = arith.mulf %264, %268 : vector<24x32xf32>
    %270 = vector.broadcast %249 : vector<1x32xf32> to vector<24x32xf32>
    %271 = arith.mulf %269, %270 : vector<24x32xf32>
    %272 = vector.broadcast %251 : vector<1x32xf32> to vector<24x32xf32>
    %273 = arith.addf %271, %272 : vector<24x32xf32>
    %c1_111 = arith.constant 1 : index
    %c0_112 = arith.constant 0 : index
    %c0_113 = arith.constant 0 : index
    %274 = vector.load %arg10[%c1_111, %c0_112, %c0_113] : memref<2x32x96xf32, #tpu.memory_space<vmem>>, vector<1x32x96xf32>
    %275 = vector.shape_cast %274 : vector<1x32x96xf32> to vector<32x96xf32>
    %cst_114 = arith.constant dense<0.000000e+00> : vector<24x96xf32>
    %276 = tpu.matmul %273, %275, %cst_114 {dimension_numbers = #tpu.dot_dimension_numbers<[1], [0], [0], [1], [0, 0, 1, 1], [], []>} : vector<24x32xf32>, vector<32x96xf32>, vector<24x96xf32> -> vector<24x96xf32>
    %c1_115 = arith.constant 1 : index
    %c0_116 = arith.constant 0 : index
    %c0_117 = arith.constant 0 : index
    %277 = vector.load %arg11[%c1_115, %c0_116, %c0_117] : memref<2x1x96xf32, #tpu.memory_space<vmem>>, vector<1x1x96xf32>
    %278 = vector.shape_cast %277 : vector<1x1x96xf32> to vector<1x96xf32>
    %279 = vector.broadcast %278 : vector<1x96xf32> to vector<24x96xf32>
    %280 = arith.addf %276, %279 : vector<24x96xf32>
    %c1_118 = arith.constant 1 : index
    %c0_119 = arith.constant 0 : index
    %c0_120 = arith.constant 0 : index
    %281 = vector.load %arg12[%c1_118, %c0_119, %c0_120] : memref<2x32x32xf32, #tpu.memory_space<vmem>>, vector<1x32x32xf32>
    %282 = vector.shape_cast %281 : vector<1x32x32xf32> to vector<32x32xf32>
    %283 = vector.extract_strided_slice %280 {offsets = [0, 0], sizes = [24, 32], strides = [1, 1]} : vector<24x96xf32> to vector<24x32xf32>
    %cst_121 = arith.constant 0.353553385 : f32
    %284 = vector.broadcast %cst_121 : f32 to vector<24x32xf32>
    %285 = arith.mulf %283, %284 : vector<24x32xf32>
    %286 = vector.extract_strided_slice %280 {offsets = [0, 32], sizes = [24, 32], strides = [1, 1]} : vector<24x96xf32> to vector<24x32xf32>
    %287 = vector.extract_strided_slice %280 {offsets = [0, 64], sizes = [24, 32], strides = [1, 1]} : vector<24x96xf32> to vector<24x32xf32>
    %288 = vector.extract_strided_slice %285 {offsets = [0, 0], sizes = [24, 8], strides = [1, 1]} : vector<24x32xf32> to vector<24x8xf32>
    %289 = vector.extract_strided_slice %286 {offsets = [0, 0], sizes = [24, 8], strides = [1, 1]} : vector<24x32xf32> to vector<24x8xf32>
    %cst_122 = arith.constant dense<0.000000e+00> : vector<24x24xf32>
    %290 = tpu.matmul %288, %289, %cst_122 {dimension_numbers = #tpu.dot_dimension_numbers<[1], [1], [0], [0], [0, 0, 1, 0], [], []>} : vector<24x8xf32>, vector<24x8xf32>, vector<24x24xf32> -> vector<24x24xf32>
    %291 = arith.addf %290, %82 : vector<24x24xf32>
    %cst_123 = arith.constant dense<0xFF800000> : vector<24xf32>
    %292 = vector.multi_reduction <maximumf>, %291, %cst_123 [1] : vector<24x24xf32> to vector<24xf32>
    %293 = vector.shape_cast %292 : vector<24xf32> to vector<24x1xf32>
    %294 = vector.broadcast %293 : vector<24x1xf32> to vector<24x24xf32>
    %295 = arith.subf %291, %294 : vector<24x24xf32>
    %296 = math.exp %295 : vector<24x24xf32>
    %cst_124 = arith.constant dense<0.000000e+00> : vector<24xf32>
    %297 = vector.multi_reduction <add>, %296, %cst_124 [1] : vector<24x24xf32> to vector<24xf32>
    %298 = vector.shape_cast %297 : vector<24xf32> to vector<24x1xf32>
    %299 = vector.broadcast %298 : vector<24x1xf32> to vector<24x24xf32>
    %300 = arith.divf %296, %299 : vector<24x24xf32>
    %301 = vector.extract_strided_slice %287 {offsets = [0, 0], sizes = [24, 8], strides = [1, 1]} : vector<24x32xf32> to vector<24x8xf32>
    %cst_125 = arith.constant dense<0.000000e+00> : vector<24x8xf32>
    %302 = tpu.matmul %300, %301, %cst_125 {dimension_numbers = #tpu.dot_dimension_numbers<[1], [0], [0], [1], [0, 0, 1, 1], [], []>} : vector<24x24xf32>, vector<24x8xf32>, vector<24x8xf32> -> vector<24x8xf32>
    %303 = vector.extract_strided_slice %282 {offsets = [0, 0], sizes = [8, 32], strides = [1, 1]} : vector<32x32xf32> to vector<8x32xf32>
    %cst_126 = arith.constant dense<0.000000e+00> : vector<24x32xf32>
    %304 = tpu.matmul %302, %303, %cst_126 {dimension_numbers = #tpu.dot_dimension_numbers<[1], [0], [0], [1], [0, 0, 1, 1], [], []>} : vector<24x8xf32>, vector<8x32xf32>, vector<24x32xf32> -> vector<24x32xf32>
    %305 = vector.extract_strided_slice %285 {offsets = [0, 8], sizes = [24, 8], strides = [1, 1]} : vector<24x32xf32> to vector<24x8xf32>
    %306 = vector.extract_strided_slice %286 {offsets = [0, 8], sizes = [24, 8], strides = [1, 1]} : vector<24x32xf32> to vector<24x8xf32>
    %cst_127 = arith.constant dense<0.000000e+00> : vector<24x24xf32>
    %307 = tpu.matmul %305, %306, %cst_127 {dimension_numbers = #tpu.dot_dimension_numbers<[1], [1], [0], [0], [0, 0, 1, 0], [], []>} : vector<24x8xf32>, vector<24x8xf32>, vector<24x24xf32> -> vector<24x24xf32>
    %308 = arith.addf %307, %82 : vector<24x24xf32>
    %cst_128 = arith.constant dense<0xFF800000> : vector<24xf32>
    %309 = vector.multi_reduction <maximumf>, %308, %cst_128 [1] : vector<24x24xf32> to vector<24xf32>
    %310 = vector.shape_cast %309 : vector<24xf32> to vector<24x1xf32>
    %311 = vector.broadcast %310 : vector<24x1xf32> to vector<24x24xf32>
    %312 = arith.subf %308, %311 : vector<24x24xf32>
    %313 = math.exp %312 : vector<24x24xf32>
    %cst_129 = arith.constant dense<0.000000e+00> : vector<24xf32>
    %314 = vector.multi_reduction <add>, %313, %cst_129 [1] : vector<24x24xf32> to vector<24xf32>
    %315 = vector.shape_cast %314 : vector<24xf32> to vector<24x1xf32>
    %316 = vector.broadcast %315 : vector<24x1xf32> to vector<24x24xf32>
    %317 = arith.divf %313, %316 : vector<24x24xf32>
    %318 = vector.extract_strided_slice %287 {offsets = [0, 8], sizes = [24, 8], strides = [1, 1]} : vector<24x32xf32> to vector<24x8xf32>
    %cst_130 = arith.constant dense<0.000000e+00> : vector<24x8xf32>
    %319 = tpu.matmul %317, %318, %cst_130 {dimension_numbers = #tpu.dot_dimension_numbers<[1], [0], [0], [1], [0, 0, 1, 1], [], []>} : vector<24x24xf32>, vector<24x8xf32>, vector<24x8xf32> -> vector<24x8xf32>
    %320 = vector.extract_strided_slice %282 {offsets = [8, 0], sizes = [8, 32], strides = [1, 1]} : vector<32x32xf32> to vector<8x32xf32>
    %cst_131 = arith.constant dense<0.000000e+00> : vector<24x32xf32>
    %321 = tpu.matmul %319, %320, %cst_131 {dimension_numbers = #tpu.dot_dimension_numbers<[1], [0], [0], [1], [0, 0, 1, 1], [], []>} : vector<24x8xf32>, vector<8x32xf32>, vector<24x32xf32> -> vector<24x32xf32>
    %322 = arith.addf %304, %321 : vector<24x32xf32>
    %323 = vector.extract_strided_slice %285 {offsets = [0, 16], sizes = [24, 8], strides = [1, 1]} : vector<24x32xf32> to vector<24x8xf32>
    %324 = vector.extract_strided_slice %286 {offsets = [0, 16], sizes = [24, 8], strides = [1, 1]} : vector<24x32xf32> to vector<24x8xf32>
    %cst_132 = arith.constant dense<0.000000e+00> : vector<24x24xf32>
    %325 = tpu.matmul %323, %324, %cst_132 {dimension_numbers = #tpu.dot_dimension_numbers<[1], [1], [0], [0], [0, 0, 1, 0], [], []>} : vector<24x8xf32>, vector<24x8xf32>, vector<24x24xf32> -> vector<24x24xf32>
    %326 = arith.addf %325, %82 : vector<24x24xf32>
    %cst_133 = arith.constant dense<0xFF800000> : vector<24xf32>
    %327 = vector.multi_reduction <maximumf>, %326, %cst_133 [1] : vector<24x24xf32> to vector<24xf32>
    %328 = vector.shape_cast %327 : vector<24xf32> to vector<24x1xf32>
    %329 = vector.broadcast %328 : vector<24x1xf32> to vector<24x24xf32>
    %330 = arith.subf %326, %329 : vector<24x24xf32>
    %331 = math.exp %330 : vector<24x24xf32>
    %cst_134 = arith.constant dense<0.000000e+00> : vector<24xf32>
    %332 = vector.multi_reduction <add>, %331, %cst_134 [1] : vector<24x24xf32> to vector<24xf32>
    %333 = vector.shape_cast %332 : vector<24xf32> to vector<24x1xf32>
    %334 = vector.broadcast %333 : vector<24x1xf32> to vector<24x24xf32>
    %335 = arith.divf %331, %334 : vector<24x24xf32>
    %336 = vector.extract_strided_slice %287 {offsets = [0, 16], sizes = [24, 8], strides = [1, 1]} : vector<24x32xf32> to vector<24x8xf32>
    %cst_135 = arith.constant dense<0.000000e+00> : vector<24x8xf32>
    %337 = tpu.matmul %335, %336, %cst_135 {dimension_numbers = #tpu.dot_dimension_numbers<[1], [0], [0], [1], [0, 0, 1, 1], [], []>} : vector<24x24xf32>, vector<24x8xf32>, vector<24x8xf32> -> vector<24x8xf32>
    %338 = vector.extract_strided_slice %282 {offsets = [16, 0], sizes = [8, 32], strides = [1, 1]} : vector<32x32xf32> to vector<8x32xf32>
    %cst_136 = arith.constant dense<0.000000e+00> : vector<24x32xf32>
    %339 = tpu.matmul %337, %338, %cst_136 {dimension_numbers = #tpu.dot_dimension_numbers<[1], [0], [0], [1], [0, 0, 1, 1], [], []>} : vector<24x8xf32>, vector<8x32xf32>, vector<24x32xf32> -> vector<24x32xf32>
    %340 = arith.addf %322, %339 : vector<24x32xf32>
    %341 = vector.extract_strided_slice %285 {offsets = [0, 24], sizes = [24, 8], strides = [1, 1]} : vector<24x32xf32> to vector<24x8xf32>
    %342 = vector.extract_strided_slice %286 {offsets = [0, 24], sizes = [24, 8], strides = [1, 1]} : vector<24x32xf32> to vector<24x8xf32>
    %cst_137 = arith.constant dense<0.000000e+00> : vector<24x24xf32>
    %343 = tpu.matmul %341, %342, %cst_137 {dimension_numbers = #tpu.dot_dimension_numbers<[1], [1], [0], [0], [0, 0, 1, 0], [], []>} : vector<24x8xf32>, vector<24x8xf32>, vector<24x24xf32> -> vector<24x24xf32>
    %344 = arith.addf %343, %82 : vector<24x24xf32>
    %cst_138 = arith.constant dense<0xFF800000> : vector<24xf32>
    %345 = vector.multi_reduction <maximumf>, %344, %cst_138 [1] : vector<24x24xf32> to vector<24xf32>
    %346 = vector.shape_cast %345 : vector<24xf32> to vector<24x1xf32>
    %347 = vector.broadcast %346 : vector<24x1xf32> to vector<24x24xf32>
    %348 = arith.subf %344, %347 : vector<24x24xf32>
    %349 = math.exp %348 : vector<24x24xf32>
    %cst_139 = arith.constant dense<0.000000e+00> : vector<24xf32>
    %350 = vector.multi_reduction <add>, %349, %cst_139 [1] : vector<24x24xf32> to vector<24xf32>
    %351 = vector.shape_cast %350 : vector<24xf32> to vector<24x1xf32>
    %352 = vector.broadcast %351 : vector<24x1xf32> to vector<24x24xf32>
    %353 = arith.divf %349, %352 : vector<24x24xf32>
    %354 = vector.extract_strided_slice %287 {offsets = [0, 24], sizes = [24, 8], strides = [1, 1]} : vector<24x32xf32> to vector<24x8xf32>
    %cst_140 = arith.constant dense<0.000000e+00> : vector<24x8xf32>
    %355 = tpu.matmul %353, %354, %cst_140 {dimension_numbers = #tpu.dot_dimension_numbers<[1], [0], [0], [1], [0, 0, 1, 1], [], []>} : vector<24x24xf32>, vector<24x8xf32>, vector<24x8xf32> -> vector<24x8xf32>
    %356 = vector.extract_strided_slice %282 {offsets = [24, 0], sizes = [8, 32], strides = [1, 1]} : vector<32x32xf32> to vector<8x32xf32>
    %cst_141 = arith.constant dense<0.000000e+00> : vector<24x32xf32>
    %357 = tpu.matmul %355, %356, %cst_141 {dimension_numbers = #tpu.dot_dimension_numbers<[1], [0], [0], [1], [0, 0, 1, 1], [], []>} : vector<24x8xf32>, vector<8x32xf32>, vector<24x32xf32> -> vector<24x32xf32>
    %358 = arith.addf %340, %357 : vector<24x32xf32>
    %359 = arith.addf %247, %358 : vector<24x32xf32>
    %c1_142 = arith.constant 1 : index
    %c0_143 = arith.constant 0 : index
    %c0_144 = arith.constant 0 : index
    %360 = vector.load %arg13[%c1_142, %c0_143, %c0_144] : memref<2x1x32xf32, #tpu.memory_space<vmem>>, vector<1x1x32xf32>
    %361 = vector.shape_cast %360 : vector<1x1x32xf32> to vector<1x32xf32>
    %362 = vector.broadcast %361 : vector<1x32xf32> to vector<24x32xf32>
    %363 = arith.addf %359, %362 : vector<24x32xf32>
    %c1_145 = arith.constant 1 : index
    %c0_146 = arith.constant 0 : index
    %c0_147 = arith.constant 0 : index
    %364 = vector.load %arg14[%c1_145, %c0_146, %c0_147] : memref<2x1x32xf32, #tpu.memory_space<vmem>>, vector<1x1x32xf32>
    %365 = vector.shape_cast %364 : vector<1x1x32xf32> to vector<1x32xf32>
    %c1_148 = arith.constant 1 : index
    %c0_149 = arith.constant 0 : index
    %c0_150 = arith.constant 0 : index
    %366 = vector.load %arg15[%c1_148, %c0_149, %c0_150] : memref<2x1x32xf32, #tpu.memory_space<vmem>>, vector<1x1x32xf32>
    %367 = vector.shape_cast %366 : vector<1x1x32xf32> to vector<1x32xf32>
    %cst_151 = arith.constant dense<0.000000e+00> : vector<24xf32>
    %368 = vector.multi_reduction <add>, %363, %cst_151 [1] : vector<24x32xf32> to vector<24xf32>
    %369 = vector.shape_cast %368 : vector<24xf32> to vector<24x1xf32>
    %cst_152 = arith.constant 3.200000e+01 : f32
    %370 = vector.broadcast %cst_152 : f32 to vector<24x1xf32>
    %371 = arith.divf %369, %370 : vector<24x1xf32>
    %372 = vector.broadcast %371 : vector<24x1xf32> to vector<24x32xf32>
    %373 = arith.subf %363, %372 : vector<24x32xf32>
    %374 = arith.mulf %373, %373 : vector<24x32xf32>
    %cst_153 = arith.constant dense<0.000000e+00> : vector<24xf32>
    %375 = vector.multi_reduction <add>, %374, %cst_153 [1] : vector<24x32xf32> to vector<24xf32>
    %376 = vector.shape_cast %375 : vector<24xf32> to vector<24x1xf32>
    %cst_154 = arith.constant 3.200000e+01 : f32
    %377 = vector.broadcast %cst_154 : f32 to vector<24x1xf32>
    %378 = arith.divf %376, %377 : vector<24x1xf32>
    %379 = vector.broadcast %371 : vector<24x1xf32> to vector<24x32xf32>
    %380 = arith.subf %363, %379 : vector<24x32xf32>
    %cst_155 = arith.constant 9.99999974E-6 : f32
    %381 = vector.broadcast %cst_155 : f32 to vector<24x1xf32>
    %382 = arith.addf %378, %381 : vector<24x1xf32>
    %383 = math.rsqrt %382 : vector<24x1xf32>
    %384 = vector.broadcast %383 : vector<24x1xf32> to vector<24x32xf32>
    %385 = arith.mulf %380, %384 : vector<24x32xf32>
    %386 = vector.broadcast %365 : vector<1x32xf32> to vector<24x32xf32>
    %387 = arith.mulf %385, %386 : vector<24x32xf32>
    %388 = vector.broadcast %367 : vector<1x32xf32> to vector<24x32xf32>
    %389 = arith.addf %387, %388 : vector<24x32xf32>
    %c1_156 = arith.constant 1 : index
    %c0_157 = arith.constant 0 : index
    %c0_158 = arith.constant 0 : index
    %390 = vector.load %arg16[%c1_156, %c0_157, %c0_158] : memref<2x32x128xf32, #tpu.memory_space<vmem>>, vector<1x32x128xf32>
    %391 = vector.shape_cast %390 : vector<1x32x128xf32> to vector<32x128xf32>
    %cst_159 = arith.constant dense<0.000000e+00> : vector<24x128xf32>
    %392 = tpu.matmul %389, %391, %cst_159 {dimension_numbers = #tpu.dot_dimension_numbers<[1], [0], [0], [1], [0, 0, 1, 1], [], []>} : vector<24x32xf32>, vector<32x128xf32>, vector<24x128xf32> -> vector<24x128xf32>
    %c1_160 = arith.constant 1 : index
    %c0_161 = arith.constant 0 : index
    %c0_162 = arith.constant 0 : index
    %393 = vector.load %arg17[%c1_160, %c0_161, %c0_162] : memref<2x1x128xf32, #tpu.memory_space<vmem>>, vector<1x1x128xf32>
    %394 = vector.shape_cast %393 : vector<1x1x128xf32> to vector<1x128xf32>
    %395 = vector.broadcast %394 : vector<1x128xf32> to vector<24x128xf32>
    %396 = arith.addf %392, %395 : vector<24x128xf32>
    %cst_163 = arith.constant 5.000000e-01 : f32
    %397 = vector.broadcast %cst_163 : f32 to vector<24x128xf32>
    %398 = arith.mulf %397, %396 : vector<24x128xf32>
    %cst_164 = arith.constant 1.41421354 : f32
    %399 = vector.broadcast %cst_164 : f32 to vector<24x128xf32>
    %400 = arith.divf %396, %399 : vector<24x128xf32>
    %401 = math.erf %400 : vector<24x128xf32>
    %cst_165 = arith.constant 1.000000e+00 : f32
    %402 = vector.broadcast %cst_165 : f32 to vector<24x128xf32>
    %403 = arith.addf %402, %401 : vector<24x128xf32>
    %404 = arith.mulf %398, %403 : vector<24x128xf32>
    %c1_166 = arith.constant 1 : index
    %c0_167 = arith.constant 0 : index
    %c0_168 = arith.constant 0 : index
    %405 = vector.load %arg18[%c1_166, %c0_167, %c0_168] : memref<2x128x32xf32, #tpu.memory_space<vmem>>, vector<1x128x32xf32>
    %406 = vector.shape_cast %405 : vector<1x128x32xf32> to vector<128x32xf32>
    %cst_169 = arith.constant dense<0.000000e+00> : vector<24x32xf32>
    %407 = tpu.matmul %404, %406, %cst_169 {dimension_numbers = #tpu.dot_dimension_numbers<[1], [0], [0], [1], [0, 0, 1, 1], [], []>} : vector<24x128xf32>, vector<128x32xf32>, vector<24x32xf32> -> vector<24x32xf32>
    %408 = arith.addf %363, %407 : vector<24x32xf32>
    %c1_170 = arith.constant 1 : index
    %c0_171 = arith.constant 0 : index
    %c0_172 = arith.constant 0 : index
    %409 = vector.load %arg19[%c1_170, %c0_171, %c0_172] : memref<2x1x32xf32, #tpu.memory_space<vmem>>, vector<1x1x32xf32>
    %410 = vector.shape_cast %409 : vector<1x1x32xf32> to vector<1x32xf32>
    %411 = vector.broadcast %410 : vector<1x32xf32> to vector<24x32xf32>
    %412 = arith.addf %408, %411 : vector<24x32xf32>
    %413 = vector.extract_strided_slice %412 {offsets = [8, 0], sizes = [8, 32], strides = [1, 1]} : vector<24x32xf32> to vector<8x32xf32>
    %c0_173 = arith.constant 0 : index
    %c0_174 = arith.constant 0 : index
    %414 = vector.load %arg20[%c0_173, %c0_174] : memref<1x32xf32, #tpu.memory_space<vmem>>, vector<1x32xf32>
    %c0_175 = arith.constant 0 : index
    %c0_176 = arith.constant 0 : index
    %415 = vector.load %arg21[%c0_175, %c0_176] : memref<1x32xf32, #tpu.memory_space<vmem>>, vector<1x32xf32>
    %cst_177 = arith.constant dense<0.000000e+00> : vector<8xf32>
    %416 = vector.multi_reduction <add>, %413, %cst_177 [1] : vector<8x32xf32> to vector<8xf32>
    %417 = vector.shape_cast %416 : vector<8xf32> to vector<8x1xf32>
    %cst_178 = arith.constant 3.200000e+01 : f32
    %418 = vector.broadcast %cst_178 : f32 to vector<8x1xf32>
    %419 = arith.divf %417, %418 : vector<8x1xf32>
    %420 = vector.broadcast %419 : vector<8x1xf32> to vector<8x32xf32>
    %421 = arith.subf %413, %420 : vector<8x32xf32>
    %422 = arith.mulf %421, %421 : vector<8x32xf32>
    %cst_179 = arith.constant dense<0.000000e+00> : vector<8xf32>
    %423 = vector.multi_reduction <add>, %422, %cst_179 [1] : vector<8x32xf32> to vector<8xf32>
    %424 = vector.shape_cast %423 : vector<8xf32> to vector<8x1xf32>
    %cst_180 = arith.constant 3.200000e+01 : f32
    %425 = vector.broadcast %cst_180 : f32 to vector<8x1xf32>
    %426 = arith.divf %424, %425 : vector<8x1xf32>
    %427 = vector.broadcast %419 : vector<8x1xf32> to vector<8x32xf32>
    %428 = arith.subf %413, %427 : vector<8x32xf32>
    %cst_181 = arith.constant 9.99999974E-6 : f32
    %429 = vector.broadcast %cst_181 : f32 to vector<8x1xf32>
    %430 = arith.addf %426, %429 : vector<8x1xf32>
    %431 = math.rsqrt %430 : vector<8x1xf32>
    %432 = vector.broadcast %431 : vector<8x1xf32> to vector<8x32xf32>
    %433 = arith.mulf %428, %432 : vector<8x32xf32>
    %434 = vector.broadcast %414 : vector<1x32xf32> to vector<8x32xf32>
    %435 = arith.mulf %433, %434 : vector<8x32xf32>
    %436 = vector.broadcast %415 : vector<1x32xf32> to vector<8x32xf32>
    %437 = arith.addf %435, %436 : vector<8x32xf32>
    %c0_182 = arith.constant 0 : index
    %c0_183 = arith.constant 0 : index
    %438 = vector.load %arg22[%c0_182, %c0_183] : memref<32x128xf32, #tpu.memory_space<vmem>>, vector<32x128xf32>
    %cst_184 = arith.constant dense<0.000000e+00> : vector<8x128xf32>
    %439 = tpu.matmul %437, %438, %cst_184 {dimension_numbers = #tpu.dot_dimension_numbers<[1], [0], [0], [1], [0, 0, 1, 1], [], []>} : vector<8x32xf32>, vector<32x128xf32>, vector<8x128xf32> -> vector<8x128xf32>
    %c0_185 = arith.constant 0 : index
    %c0_186 = arith.constant 0 : index
    %440 = vector.load %arg23[%c0_185, %c0_186] : memref<1x128xf32, #tpu.memory_space<vmem>>, vector<1x128xf32>
    %441 = vector.broadcast %440 : vector<1x128xf32> to vector<8x128xf32>
    %442 = arith.addf %439, %441 : vector<8x128xf32>
    %443 = math.tanh %442 : vector<8x128xf32>
    %cst_187 = arith.constant 1.000000e+00 : f32
    %444 = vector.broadcast %cst_187 : f32 to vector<8x128xf32>
    %445 = arith.mulf %443, %444 : vector<8x128xf32>
    %c0_188 = arith.constant 0 : index
    %c0_189 = arith.constant 0 : index
    %446 = vector.load %arg24[%c0_188, %c0_189] : memref<8x128xf32, #tpu.memory_space<vmem>>, vector<8x128xf32>
    tpu.vector_store %arg24[%c0_188, %c0_189], %445 {strides = array<i32>} : memref<8x128xf32, #tpu.memory_space<vmem>>, vector<8x128xf32>,
    return
  }
  func.func @transform_0(%arg0: i32) -> (i32, i32) {
    %c0_i32 = arith.constant 0 : i32
    %c0_i32_0 = arith.constant 0 : i32
    return %arg0, %c0_i32 : i32, i32
  }
  func.func @transform_1(%arg0: i32) -> (i32, i32) {
    %c0_i32 = arith.constant 0 : i32
    %c0_i32_0 = arith.constant 0 : i32
    return %arg0, %c0_i32 : i32, i32
  }
  func.func @transform_2(%arg0: i32) -> (i32, i32) {
    %c0_i32 = arith.constant 0 : i32
    %c0_i32_0 = arith.constant 0 : i32
    %c0_i32_1 = arith.constant 0 : i32
    return %c0_i32, %c0_i32_0 : i32, i32
  }
  func.func @transform_3(%arg0: i32) -> (i32, i32) {
    %c0_i32 = arith.constant 0 : i32
    %c0_i32_0 = arith.constant 0 : i32
    %c0_i32_1 = arith.constant 0 : i32
    return %c0_i32, %c0_i32_0 : i32, i32
  }
  func.func @transform_4(%arg0: i32) -> (i32, i32) {
    %c0_i32 = arith.constant 0 : i32
    %c0_i32_0 = arith.constant 0 : i32
    %c0_i32_1 = arith.constant 0 : i32
    return %c0_i32, %c0_i32_0 : i32, i32
  }
  func.func @transform_5(%arg0: i32) -> (i32, i32) {
    %c0_i32 = arith.constant 0 : i32
    %c0_i32_0 = arith.constant 0 : i32
    %c0_i32_1 = arith.constant 0 : i32
    return %c0_i32, %c0_i32_0 : i32, i32
  }
  func.func @transform_6(%arg0: i32) -> (i32, i32) {
    %c0_i32 = arith.constant 0 : i32
    %c0_i32_0 = arith.constant 0 : i32
    %c0_i32_1 = arith.constant 0 : i32
    return %c0_i32, %c0_i32_0 : i32, i32
  }
  func.func @transform_7(%arg0: i32) -> (i32, i32, i32) {
    %c0_i32 = arith.constant 0 : i32
    %c0_i32_0 = arith.constant 0 : i32
    %c0_i32_1 = arith.constant 0 : i32
    %c0_i32_2 = arith.constant 0 : i32
    return %c0_i32, %c0_i32_0, %c0_i32_1 : i32, i32, i32
  }
  func.func @transform_8(%arg0: i32) -> (i32, i32, i32) {
    %c0_i32 = arith.constant 0 : i32
    %c0_i32_0 = arith.constant 0 : i32
    %c0_i32_1 = arith.constant 0 : i32
    %c0_i32_2 = arith.constant 0 : i32
    return %c0_i32, %c0_i32_0, %c0_i32_1 : i32, i32, i32
  }
  func.func @transform_9(%arg0: i32) -> (i32, i32, i32) {
    %c0_i32 = arith.constant 0 : i32
    %c0_i32_0 = arith.constant 0 : i32
    %c0_i32_1 = arith.constant 0 : i32
    %c0_i32_2 = arith.constant 0 : i32
    return %c0_i32, %c0_i32_0, %c0_i32_1 : i32, i32, i32
  }
  func.func @transform_10(%arg0: i32) -> (i32, i32, i32) {
    %c0_i32 = arith.constant 0 : i32
    %c0_i32_0 = arith.constant 0 : i32
    %c0_i32_1 = arith.constant 0 : i32
    %c0_i32_2 = arith.constant 0 : i32
    return %c0_i32, %c0_i32_0, %c0_i32_1 : i32, i32, i32
  }
  func.func @transform_11(%arg0: i32) -> (i32, i32, i32) {
    %c0_i32 = arith.constant 0 : i32
    %c0_i32_0 = arith.constant 0 : i32
    %c0_i32_1 = arith.constant 0 : i32
    %c0_i32_2 = arith.constant 0 : i32
    return %c0_i32, %c0_i32_0, %c0_i32_1 : i32, i32, i32
  }
  func.func @transform_12(%arg0: i32) -> (i32, i32, i32) {
    %c0_i32 = arith.constant 0 : i32
    %c0_i32_0 = arith.constant 0 : i32
    %c0_i32_1 = arith.constant 0 : i32
    %c0_i32_2 = arith.constant 0 : i32
    return %c0_i32, %c0_i32_0, %c0_i32_1 : i32, i32, i32
  }
  func.func @transform_13(%arg0: i32) -> (i32, i32, i32) {
    %c0_i32 = arith.constant 0 : i32
    %c0_i32_0 = arith.constant 0 : i32
    %c0_i32_1 = arith.constant 0 : i32
    %c0_i32_2 = arith.constant 0 : i32
    return %c0_i32, %c0_i32_0, %c0_i32_1 : i32, i32, i32
  }
  func.func @transform_14(%arg0: i32) -> (i32, i32, i32) {
    %c0_i32 = arith.constant 0 : i32
    %c0_i32_0 = arith.constant 0 : i32
    %c0_i32_1 = arith.constant 0 : i32
    %c0_i32_2 = arith.constant 0 : i32
    return %c0_i32, %c0_i32_0, %c0_i32_1 : i32, i32, i32
  }
  func.func @transform_15(%arg0: i32) -> (i32, i32, i32) {
    %c0_i32 = arith.constant 0 : i32
    %c0_i32_0 = arith.constant 0 : i32
    %c0_i32_1 = arith.constant 0 : i32
    %c0_i32_2 = arith.constant 0 : i32
    return %c0_i32, %c0_i32_0, %c0_i32_1 : i32, i32, i32
  }
  func.func @transform_16(%arg0: i32) -> (i32, i32, i32) {
    %c0_i32 = arith.constant 0 : i32
    %c0_i32_0 = arith.constant 0 : i32
    %c0_i32_1 = arith.constant 0 : i32
    %c0_i32_2 = arith.constant 0 : i32
    return %c0_i32, %c0_i32_0, %c0_i32_1 : i32, i32, i32
  }
  func.func @transform_17(%arg0: i32) -> (i32, i32, i32) {
    %c0_i32 = arith.constant 0 : i32
    %c0_i32_0 = arith.constant 0 : i32
    %c0_i32_1 = arith.constant 0 : i32
    %c0_i32_2 = arith.constant 0 : i32
    return %c0_i32, %c0_i32_0, %c0_i32_1 : i32, i32, i32
  }
  func.func @transform_18(%arg0: i32) -> (i32, i32, i32) {
    %c0_i32 = arith.constant 0 : i32
    %c0_i32_0 = arith.constant 0 : i32
    %c0_i32_1 = arith.constant 0 : i32
    %c0_i32_2 = arith.constant 0 : i32
    return %c0_i32, %c0_i32_0, %c0_i32_1 : i32, i32, i32
  }
  func.func @transform_19(%arg0: i32) -> (i32, i32) {
    %c0_i32 = arith.constant 0 : i32
    %c0_i32_0 = arith.constant 0 : i32
    %c0_i32_1 = arith.constant 0 : i32
    return %c0_i32, %c0_i32_0 : i32, i32
  }
  func.func @transform_20(%arg0: i32) -> (i32, i32) {
    %c0_i32 = arith.constant 0 : i32
    %c0_i32_0 = arith.constant 0 : i32
    %c0_i32_1 = arith.constant 0 : i32
    return %c0_i32, %c0_i32_0 : i32, i32
  }
  func.func @transform_21(%arg0: i32) -> (i32, i32) {
    %c0_i32 = arith.constant 0 : i32
    %c0_i32_0 = arith.constant 0 : i32
    %c0_i32_1 = arith.constant 0 : i32
    return %c0_i32, %c0_i32_0 : i32, i32
  }
  func.func @transform_22(%arg0: i32) -> (i32, i32) {
    %c0_i32 = arith.constant 0 : i32
    %c0_i32_0 = arith.constant 0 : i32
    %c0_i32_1 = arith.constant 0 : i32
    return %c0_i32, %c0_i32_0 : i32, i32
  }
  func.func @transform_23(%arg0: i32) -> (i32, i32) {
    %c0_i32 = arith.constant 0 : i32
    %c0_i32_0 = arith.constant 0 : i32
    return %arg0, %c0_i32 : i32, i32
  }
}

</mosaic_0001>

<llo_original>
// kernel: tpu_custom_call.1
$region0: #{tpu_custom_call.1}
  #allocation0 [shape = 'u32[]', space=smem, size = 0x4, offset = 0x4, fixed_abs, tag = 'smem constant byte address 0x4 - core index']
  #allocation1 [shape = 'u32[144,128]{1,0:T(1,128)}', space=vmem, size = 0x12000, scoped, tag = 'internal scratch']
  %s0 = inlined_call_operand.vmem [shape: f32[16,15], index: 0, kind: input, shape index: {}]
  %s1 = inlined_call_operand.vmem [shape: f32[16,32], index: 1, kind: input, shape index: {}]
  %s2 = inlined_call_operand.vmem [shape: f32[24,24], index: 2, kind: input, shape index: {}]
  %s3 = inlined_call_operand.vmem [shape: f32[15,96], index: 3, kind: input, shape index: {}]
  %s4 = inlined_call_operand.vmem [shape: f32[1,96], index: 4, kind: input, shape index: {}]
  %s5 = inlined_call_operand.vmem [shape: f32[1,32], index: 5, kind: input, shape index: {}]
  %s6 = inlined_call_operand.vmem [shape: f32[1,32], index: 6, kind: input, shape index: {}]
  %s7 = inlined_call_operand.vmem [shape: f32[2,1,32], index: 7, kind: input, shape index: {}]
  %s8 = inlined_call_operand.vmem [shape: f32[2,1,32], index: 8, kind: input, shape index: {}]
  %s9 = inlined_call_operand.vmem [shape: f32[2,32,96], index: 9, kind: input, shape index: {}]
  %s10 = inlined_call_operand.vmem [shape: f32[2,1,96], index: 10, kind: input, shape index: {}]
  %s11 = inlined_call_operand.vmem [shape: f32[2,32,32], index: 11, kind: input, shape index: {}]
  %s12 = inlined_call_operand.vmem [shape: f32[2,1,32], index: 12, kind: input, shape index: {}]
  %s13 = inlined_call_operand.vmem [shape: f32[2,1,32], index: 13, kind: input, shape index: {}]
  %s14 = inlined_call_operand.vmem [shape: f32[2,1,32], index: 14, kind: input, shape index: {}]
  %s15 = inlined_call_operand.vmem [shape: f32[2,32,128], index: 15, kind: input, shape index: {}]
  %s16 = inlined_call_operand.vmem [shape: f32[2,1,128], index: 16, kind: input, shape index: {}]
  %s17 = inlined_call_operand.vmem [shape: f32[2,128,32], index: 17, kind: input, shape index: {}]
  %s18 = inlined_call_operand.vmem [shape: f32[2,1,32], index: 18, kind: input, shape index: {}]
  %s19 = inlined_call_operand.vmem [shape: f32[1,32], index: 19, kind: input, shape index: {}]
  %s20 = inlined_call_operand.vmem [shape: f32[1,32], index: 20, kind: input, shape index: {}]
  %s21 = inlined_call_operand.vmem [shape: f32[32,128], index: 21, kind: input, shape index: {}]
  %s22 = inlined_call_operand.vmem [shape: f32[1,128], index: 22, kind: input, shape index: {}]
  %s23 = inlined_call_operand.hbm [shape: f32[16,128], index: 23, kind: output, shape index: {}]
  %s24 = sld [smem:[#allocation0]]
  $region125: #{tpu_custom_call.1} parent=0
    _
  %s26 = ssub.s32 1, %s24
  %s27 = scalar_select 0, %s26, %s24
  $region1: #{tpu_custom_call.1} parent=0
    #allocation2 [shape = 'u8[8192]{0}', space=vmem, size = 0x2000, scoped, tag = 'output window, operand 0']
    #allocation3 [shape = 's32[2]{0}', space=sflag, size = 0x8, scoped, tag = 'scoped memory for tpu_custom_call.1']
    %28 = vsyncpa [#allocation3], 0
    %s29 = scalar_lea.sflag [#allocation3], 1
    %30 = vsyncpa %s29, 0
    loop: start=0, step=1, limit=4
    $region2: #{tpu_custom_call.1} parent=1 // loop_pre_header
      _
    $region3: #{tpu_custom_call.1} parent=1 // loop_header
      %s32 = sphi 0, %s36
      %p33 = scmp.ge.s32.totalorder %s32, 4
      %s42 = sphi 0, %s44
      %s45 = sphi 0, %s42
      %s46 = sphi 0, %s45
      %s62 = sphi 0, %s46
      %s68 = sphi 0, %s70
      %s71 = sphi 0, %s68
      %s72 = sphi 0, %s71
      %s88 = sphi 0, %s72
      %s92 = sphi 0, %s92
      %s94 = sphi 0, %s92
      %s95 = sphi 0, %s94
      %s109 = sphi 0, %s95
      %s113 = sphi 0, %s113
      %s115 = sphi 0, %s113
      %s116 = sphi 0, %s115
      %s130 = sphi 0, %s116
      %s134 = sphi 0, %s134
      %s136 = sphi 0, %s134
      %s137 = sphi 0, %s136
      %s151 = sphi 0, %s137
      %s155 = sphi 0, %s155
      %s157 = sphi 0, %s155
      %s158 = sphi 0, %s157
      %s172 = sphi 0, %s158
      %s176 = sphi 0, %s176
      %s178 = sphi 0, %s176
      %s179 = sphi 0, %s178
      %s193 = sphi 0, %s179
      %s197 = sphi 0, %s197
      %s199 = sphi 0, %s197
      %s200 = sphi 0, %s199
      %s214 = sphi 0, %s200
      %s218 = sphi 0, %s218
      %s220 = sphi 0, %s218
      %s221 = sphi 0, %s220
      %s235 = sphi 0, %s221
      %s239 = sphi 0, %s239
      %s241 = sphi 0, %s239
      %s242 = sphi 0, %s241
      %s256 = sphi 0, %s242
      %s260 = sphi 0, %s260
      %s262 = sphi 0, %s260
      %s263 = sphi 0, %s262
      %s277 = sphi 0, %s263
      %s281 = sphi 0, %s281
      %s283 = sphi 0, %s281
      %s284 = sphi 0, %s283
      %s298 = sphi 0, %s284
      %s302 = sphi 0, %s302
      %s304 = sphi 0, %s302
      %s305 = sphi 0, %s304
      %s319 = sphi 0, %s305
      %s323 = sphi 0, %s323
      %s325 = sphi 0, %s323
      %s326 = sphi 0, %s325
      %s340 = sphi 0, %s326
      %s344 = sphi 0, %s344
      %s346 = sphi 0, %s344
      %s347 = sphi 0, %s346
      %s361 = sphi 0, %s347
      %s365 = sphi 0, %s365
      %s367 = sphi 0, %s365
      %s368 = sphi 0, %s367
      %s382 = sphi 0, %s368
      %s386 = sphi 0, %s386
      %s388 = sphi 0, %s386
      %s389 = sphi 0, %s388
      %s403 = sphi 0, %s389
      %s407 = sphi 0, %s407
      %s409 = sphi 0, %s407
      %s410 = sphi 0, %s409
      %s424 = sphi 0, %s410
      %s428 = sphi 0, %s428
      %s430 = sphi 0, %s428
      %s431 = sphi 0, %s430
      %s445 = sphi 0, %s431
      %s449 = sphi 0, %s449
      %s451 = sphi 0, %s449
      %s452 = sphi 0, %s451
      %s466 = sphi 0, %s452
      %s470 = sphi 0, %s470
      %s472 = sphi 0, %s470
      %s473 = sphi 0, %s472
      %s487 = sphi 0, %s473
      %s491 = sphi 0, %s491
      %s493 = sphi 0, %s491
      %s494 = sphi 0, %s493
      %s508 = sphi 0, %s494
      %s512 = sphi 0, %s512
      %s514 = sphi 0, %s512
      %s515 = sphi 0, %s514
      %s529 = sphi 0, %s515
      %s535 = sphi 0, %s537
      %s538 = sphi 0, %s535
      %s539 = sphi 0, %s538
      %s555 = sphi 0, %s539
    $region4: #{tpu_custom_call.1} parent=1 // loop_header_branch
      %35 = sbr.rel (%p33) target = $region8
    $region5: #{tpu_custom_call.1} parent=1 // loop_body
      %s37 = ssub.s32 %s32, 1
      %s38 = ssub.s32 %s32, 2
      %s39 = sadd.s32 %s32, 1
      %s40 = ssub.s32 %s32, %s39
      %p41 = scmp.eq.s32.totalorder %s40, 0
      %s43 = sadd.s32 %s42, 1
      %s44 = scalar_select %p41, %s42, %s43
      %p47 = pneg %p41
      %p48 = scmp.eq.s32.totalorder %s32, 1
      %p49 = por %p47, %p48
      %p50 = scmp.ne.s32.totalorder %s42, %s45
      %p51 = scmp.eq.s32.totalorder %s32, 0
      %p52 = por %p50, %p51
      %p53 = scmp.ne.s32.totalorder %s42, %s45
      %p54 = scmp.eq.s32.totalorder %s37, 1
      %p55 = por %p53, %p54
      %p56 = scmp.ne.s32.totalorder %s45, %s46
      %p57 = scmp.eq.s32.totalorder %s37, 0
      %p58 = por %p56, %p57
      %p59 = scmp.ne.s32.totalorder %s45, %s46
      %p60 = scmp.eq.s32.totalorder %s38, 1
      %p61 = por %p59, %p60
      %p63 = scmp.ne.s32.totalorder %s46, %s62
      %p64 = scmp.eq.s32.totalorder %s38, 0
      %p65 = por %p63, %p64
      %s66 = ssub.s32 %s32, %s39
      %p67 = scmp.eq.s32.totalorder %s66, 0
      %s69 = sadd.s32 %s68, 1
      %s70 = scalar_select %p67, %s68, %s69
      %p73 = pneg %p67
      %p74 = scmp.eq.s32.totalorder %s32, 1
      %p75 = por %p73, %p74
      %p76 = scmp.ne.s32.totalorder %s68, %s71
      %p77 = scmp.eq.s32.totalorder %s32, 0
      %p78 = por %p76, %p77
      %p79 = scmp.ne.s32.totalorder %s68, %s71
      %p80 = scmp.eq.s32.totalorder %s37, 1
      %p81 = por %p79, %p80
      %p82 = scmp.ne.s32.totalorder %s71, %s72
      %p83 = scmp.eq.s32.totalorder %s37, 0
      %p84 = por %p82, %p83
      %p85 = scmp.ne.s32.totalorder %s71, %s72
      %p86 = scmp.eq.s32.totalorder %s38, 1
      %p87 = por %p85, %p86
      %p89 = scmp.ne.s32.totalorder %s72, %s88
      %p90 = scmp.eq.s32.totalorder %s38, 0
      %p91 = por %p89, %p90
      %s93 = sadd.s32 %s92, 1
      %p96 = scmp.eq.s32.totalorder %s32, 1
      %p97 = scmp.ne.s32.totalorder %s92, %s94
      %p98 = scmp.eq.s32.totalorder %s32, 0
      %p99 = por %p97, %p98
      %p100 = scmp.ne.s32.totalorder %s92, %s94
      %p101 = scmp.eq.s32.totalorder %s37, 1
      %p102 = por %p100, %p101
      %p103 = scmp.ne.s32.totalorder %s94, %s95
      %p104 = scmp.eq.s32.totalorder %s37, 0
      %p105 = por %p103, %p104
      %p106 = scmp.ne.s32.totalorder %s94, %s95
      %p107 = scmp.eq.s32.totalorder %s38, 1
      %p108 = por %p106, %p107
      %p110 = scmp.ne.s32.totalorder %s95, %s109
      %p111 = scmp.eq.s32.totalorder %s38, 0
      %p112 = por %p110, %p111
      %s114 = sadd.s32 %s113, 1
      %p117 = scmp.eq.s32.totalorder %s32, 1
      %p118 = scmp.ne.s32.totalorder %s113, %s115
      %p119 = scmp.eq.s32.totalorder %s32, 0
      %p120 = por %p118, %p119
      %p121 = scmp.ne.s32.totalorder %s113, %s115
      %p122 = scmp.eq.s32.totalorder %s37, 1
      %p123 = por %p121, %p122
      %p124 = scmp.ne.s32.totalorder %s115, %s116
      %p125 = scmp.eq.s32.totalorder %s37, 0
      %p126 = por %p124, %p125
      %p127 = scmp.ne.s32.totalorder %s115, %s116
      %p128 = scmp.eq.s32.totalorder %s38, 1
      %p129 = por %p127, %p128
      %p131 = scmp.ne.s32.totalorder %s116, %s130
      %p132 = scmp.eq.s32.totalorder %s38, 0
      %p133 = por %p131, %p132
      %s135 = sadd.s32 %s134, 1
      %p138 = scmp.eq.s32.totalorder %s32, 1
      %p139 = scmp.ne.s32.totalorder %s134, %s136
      %p140 = scmp.eq.s32.totalorder %s32, 0
      %p141 = por %p139, %p140
      %p142 = scmp.ne.s32.totalorder %s134, %s136
      %p143 = scmp.eq.s32.totalorder %s37, 1
      %p144 = por %p142, %p143
      %p145 = scmp.ne.s32.totalorder %s136, %s137
      %p146 = scmp.eq.s32.totalorder %s37, 0
      %p147 = por %p145, %p146
      %p148 = scmp.ne.s32.totalorder %s136, %s137
      %p149 = scmp.eq.s32.totalorder %s38, 1
      %p150 = por %p148, %p149
      %p152 = scmp.ne.s32.totalorder %s137, %s151
      %p153 = scmp.eq.s32.totalorder %s38, 0
      %p154 = por %p152, %p153
      %s156 = sadd.s32 %s155, 1
      %p159 = scmp.eq.s32.totalorder %s32, 1
      %p160 = scmp.ne.s32.totalorder %s155, %s157
      %p161 = scmp.eq.s32.totalorder %s32, 0
      %p162 = por %p160, %p161
      %p163 = scmp.ne.s32.totalorder %s155, %s157
      %p164 = scmp.eq.s32.totalorder %s37, 1
      %p165 = por %p163, %p164
      %p166 = scmp.ne.s32.totalorder %s157, %s158
      %p167 = scmp.eq.s32.totalorder %s37, 0
      %p168 = por %p166, %p167
      %p169 = scmp.ne.s32.totalorder %s157, %s158
      %p170 = scmp.eq.s32.totalorder %s38, 1
      %p171 = por %p169, %p170
      %p173 = scmp.ne.s32.totalorder %s158, %s172
      %p174 = scmp.eq.s32.totalorder %s38, 0
      %p175 = por %p173, %p174
      %s177 = sadd.s32 %s176, 1
      %p180 = scmp.eq.s32.totalorder %s32, 1
      %p181 = scmp.ne.s32.totalorder %s176, %s178
      %p182 = scmp.eq.s32.totalorder %s32, 0
      %p183 = por %p181, %p182
      %p184 = scmp.ne.s32.totalorder %s176, %s178
      %p185 = scmp.eq.s32.totalorder %s37, 1
      %p186 = por %p184, %p185
      %p187 = scmp.ne.s32.totalorder %s178, %s179
      %p188 = scmp.eq.s32.totalorder %s37, 0
      %p189 = por %p187, %p188
      %p190 = scmp.ne.s32.totalorder %s178, %s179
      %p191 = scmp.eq.s32.totalorder %s38, 1
      %p192 = por %p190, %p191
      %p194 = scmp.ne.s32.totalorder %s179, %s193
      %p195 = scmp.eq.s32.totalorder %s38, 0
      %p196 = por %p194, %p195
      %s198 = sadd.s32 %s197, 1
      %p201 = scmp.eq.s32.totalorder %s32, 1
      %p202 = scmp.ne.s32.totalorder %s197, %s199
      %p203 = scmp.eq.s32.totalorder %s32, 0
      %p204 = por %p202, %p203
      %p205 = scmp.ne.s32.totalorder %s197, %s199
      %p206 = scmp.eq.s32.totalorder %s37, 1
      %p207 = por %p205, %p206
      %p208 = scmp.ne.s32.totalorder %s199, %s200
      %p209 = scmp.eq.s32.totalorder %s37, 0
      %p210 = por %p208, %p209
      %p211 = scmp.ne.s32.totalorder %s199, %s200
      %p212 = scmp.eq.s32.totalorder %s38, 1
      %p213 = por %p211, %p212
      %p215 = scmp.ne.s32.totalorder %s200, %s214
      %p216 = scmp.eq.s32.totalorder %s38, 0
      %p217 = por %p215, %p216
      %s219 = sadd.s32 %s218, 1
      %p222 = scmp.eq.s32.totalorder %s32, 1
      %p223 = scmp.ne.s32.totalorder %s218, %s220
      %p224 = scmp.eq.s32.totalorder %s32, 0
      %p225 = por %p223, %p224
      %p226 = scmp.ne.s32.totalorder %s218, %s220
      %p227 = scmp.eq.s32.totalorder %s37, 1
      %p228 = por %p226, %p227
      %p229 = scmp.ne.s32.totalorder %s220, %s221
      %p230 = scmp.eq.s32.totalorder %s37, 0
      %p231 = por %p229, %p230
      %p232 = scmp.ne.s32.totalorder %s220, %s221
      %p233 = scmp.eq.s32.totalorder %s38, 1
      %p234 = por %p232, %p233
      %p236 = scmp.ne.s32.totalorder %s221, %s235
      %p237 = scmp.eq.s32.totalorder %s38, 0
      %p238 = por %p236, %p237
      %s240 = sadd.s32 %s239, 1
      %p243 = scmp.eq.s32.totalorder %s32, 1
      %p244 = scmp.ne.s32.totalorder %s239, %s241
      %p245 = scmp.eq.s32.totalorder %s32, 0
      %p246 = por %p244, %p245
      %p247 = scmp.ne.s32.totalorder %s239, %s241
      %p248 = scmp.eq.s32.totalorder %s37, 1
      %p249 = por %p247, %p248
      %p250 = scmp.ne.s32.totalorder %s241, %s242
      %p251 = scmp.eq.s32.totalorder %s37, 0
      %p252 = por %p250, %p251
      %p253 = scmp.ne.s32.totalorder %s241, %s242
      %p254 = scmp.eq.s32.totalorder %s38, 1
      %p255 = por %p253, %p254
      %p257 = scmp.ne.s32.totalorder %s242, %s256
      %p258 = scmp.eq.s32.totalorder %s38, 0
      %p259 = por %p257, %p258
      %s261 = sadd.s32 %s260, 1
      %p264 = scmp.eq.s32.totalorder %s32, 1
      %p265 = scmp.ne.s32.totalorder %s260, %s262
      %p266 = scmp.eq.s32.totalorder %s32, 0
      %p267 = por %p265, %p266
      %p268 = scmp.ne.s32.totalorder %s260, %s262
      %p269 = scmp.eq.s32.totalorder %s37, 1
      %p270 = por %p268, %p269
      %p271 = scmp.ne.s32.totalorder %s262, %s263
      %p272 = scmp.eq.s32.totalorder %s37, 0
      %p273 = por %p271, %p272
      %p274 = scmp.ne.s32.totalorder %s262, %s263
      %p275 = scmp.eq.s32.totalorder %s38, 1
      %p276 = por %p274, %p275
      %p278 = scmp.ne.s32.totalorder %s263, %s277
      %p279 = scmp.eq.s32.totalorder %s38, 0
      %p280 = por %p278, %p279
      %s282 = sadd.s32 %s281, 1
      %p285 = scmp.eq.s32.totalorder %s32, 1
      %p286 = scmp.ne.s32.totalorder %s281, %s283
      %p287 = scmp.eq.s32.totalorder %s32, 0
      %p288 = por %p286, %p287
      %p289 = scmp.ne.s32.totalorder %s281, %s283
      %p290 = scmp.eq.s32.totalorder %s37, 1
      %p291 = por %p289, %p290
      %p292 = scmp.ne.s32.totalorder %s283, %s284
      %p293 = scmp.eq.s32.totalorder %s37, 0
      %p294 = por %p292, %p293
      %p295 = scmp.ne.s32.totalorder %s283, %s284
      %p296 = scmp.eq.s32.totalorder %s38, 1
      %p297 = por %p295, %p296
      %p299 = scmp.ne.s32.totalorder %s284, %s298
      %p300 = scmp.eq.s32.totalorder %s38, 0
      %p301 = por %p299, %p300
      %s303 = sadd.s32 %s302, 1
      %p306 = scmp.eq.s32.totalorder %s32, 1
      %p307 = scmp.ne.s32.totalorder %s302, %s304
      %p308 = scmp.eq.s32.totalorder %s32, 0
      %p309 = por %p307, %p308
      %p310 = scmp.ne.s32.totalorder %s302, %s304
      %p311 = scmp.eq.s32.totalorder %s37, 1
      %p312 = por %p310, %p311
      %p313 = scmp.ne.s32.totalorder %s304, %s305
      %p314 = scmp.eq.s32.totalorder %s37, 0
      %p315 = por %p313, %p314
      %p316 = scmp.ne.s32.totalorder %s304, %s305
      %p317 = scmp.eq.s32.totalorder %s38, 1
      %p318 = por %p316, %p317
      %p320 = scmp.ne.s32.totalorder %s305, %s319
      %p321 = scmp.eq.s32.totalorder %s38, 0
      %p322 = por %p320, %p321
      %s324 = sadd.s32 %s323, 1
      %p327 = scmp.eq.s32.totalorder %s32, 1
      %p328 = scmp.ne.s32.totalorder %s323, %s325
      %p329 = scmp.eq.s32.totalorder %s32, 0
      %p330 = por %p328, %p329
      %p331 = scmp.ne.s32.totalorder %s323, %s325
      %p332 = scmp.eq.s32.totalorder %s37, 1
      %p333 = por %p331, %p332
      %p334 = scmp.ne.s32.totalorder %s325, %s326
      %p335 = scmp.eq.s32.totalorder %s37, 0
      %p336 = por %p334, %p335
      %p337 = scmp.ne.s32.totalorder %s325, %s326
      %p338 = scmp.eq.s32.totalorder %s38, 1
      %p339 = por %p337, %p338
      %p341 = scmp.ne.s32.totalorder %s326, %s340
      %p342 = scmp.eq.s32.totalorder %s38, 0
      %p343 = por %p341, %p342
      %s345 = sadd.s32 %s344, 1
      %p348 = scmp.eq.s32.totalorder %s32, 1
      %p349 = scmp.ne.s32.totalorder %s344, %s346
      %p350 = scmp.eq.s32.totalorder %s32, 0
      %p351 = por %p349, %p350
      %p352 = scmp.ne.s32.totalorder %s344, %s346
      %p353 = scmp.eq.s32.totalorder %s37, 1
      %p354 = por %p352, %p353
      %p355 = scmp.ne.s32.totalorder %s346, %s347
      %p356 = scmp.eq.s32.totalorder %s37, 0
      %p357 = por %p355, %p356
      %p358 = scmp.ne.s32.totalorder %s346, %s347
      %p359 = scmp.eq.s32.totalorder %s38, 1
      %p360 = por %p358, %p359
      %p362 = scmp.ne.s32.totalorder %s347, %s361
      %p363 = scmp.eq.s32.totalorder %s38, 0
      %p364 = por %p362, %p363
      %s366 = sadd.s32 %s365, 1
      %p369 = scmp.eq.s32.totalorder %s32, 1
      %p370 = scmp.ne.s32.totalorder %s365, %s367
      %p371 = scmp.eq.s32.totalorder %s32, 0
      %p372 = por %p370, %p371
      %p373 = scmp.ne.s32.totalorder %s365, %s367
      %p374 = scmp.eq.s32.totalorder %s37, 1
      %p375 = por %p373, %p374
      %p376 = scmp.ne.s32.totalorder %s367, %s368
      %p377 = scmp.eq.s32.totalorder %s37, 0
      %p378 = por %p376, %p377
      %p379 = scmp.ne.s32.totalorder %s367, %s368
      %p380 = scmp.eq.s32.totalorder %s38, 1
      %p381 = por %p379, %p380
      %p383 = scmp.ne.s32.totalorder %s368, %s382
      %p384 = scmp.eq.s32.totalorder %s38, 0
      %p385 = por %p383, %p384
      %s387 = sadd.s32 %s386, 1
      %p390 = scmp.eq.s32.totalorder %s32, 1
      %p391 = scmp.ne.s32.totalorder %s386, %s388
      %p392 = scmp.eq.s32.totalorder %s32, 0
      %p393 = por %p391, %p392
      %p394 = scmp.ne.s32.totalorder %s386, %s388
      %p395 = scmp.eq.s32.totalorder %s37, 1
      %p396 = por %p394, %p395
      %p397 = scmp.ne.s32.totalorder %s388, %s389
      %p398 = scmp.eq.s32.totalorder %s37, 0
      %p399 = por %p397, %p398
      %p400 = scmp.ne.s32.totalorder %s388, %s389
      %p401 = scmp.eq.s32.totalorder %s38, 1
      %p402 = por %p400, %p401
      %p404 = scmp.ne.s32.totalorder %s389, %s403
      %p405 = scmp.eq.s32.totalorder %s38, 0
      %p406 = por %p404, %p405
      %s408 = sadd.s32 %s407, 1
      %p411 = scmp.eq.s32.totalorder %s32, 1
      %p412 = scmp.ne.s32.totalorder %s407, %s409
      %p413 = scmp.eq.s32.totalorder %s32, 0
      %p414 = por %p412, %p413
      %p415 = scmp.ne.s32.totalorder %s407, %s409
      %p416 = scmp.eq.s32.totalorder %s37, 1
      %p417 = por %p415, %p416
      %p418 = scmp.ne.s32.totalorder %s409, %s410
      %p419 = scmp.eq.s32.totalorder %s37, 0
      %p420 = por %p418, %p419
      %p421 = scmp.ne.s32.totalorder %s409, %s410
      %p422 = scmp.eq.s32.totalorder %s38, 1
      %p423 = por %p421, %p422
      %p425 = scmp.ne.s32.totalorder %s410, %s424
      %p426 = scmp.eq.s32.totalorder %s38, 0
      %p427 = por %p425, %p426
      %s429 = sadd.s32 %s428, 1
      %p432 = scmp.eq.s32.totalorder %s32, 1
      %p433 = scmp.ne.s32.totalorder %s428, %s430
      %p434 = scmp.eq.s32.totalorder %s32, 0
      %p435 = por %p433, %p434
      %p436 = scmp.ne.s32.totalorder %s428, %s430
      %p437 = scmp.eq.s32.totalorder %s37, 1
      %p438 = por %p436, %p437
      %p439 = scmp.ne.s32.totalorder %s430, %s431
      %p440 = scmp.eq.s32.totalorder %s37, 0
      %p441 = por %p439, %p440
      %p442 = scmp.ne.s32.totalorder %s430, %s431
      %p443 = scmp.eq.s32.totalorder %s38, 1
      %p444 = por %p442, %p443
      %p446 = scmp.ne.s32.totalorder %s431, %s445
      %p447 = scmp.eq.s32.totalorder %s38, 0
      %p448 = por %p446, %p447
      %s450 = sadd.s32 %s449, 1
      %p453 = scmp.eq.s32.totalorder %s32, 1
      %p454 = scmp.ne.s32.totalorder %s449, %s451
      %p455 = scmp.eq.s32.totalorder %s32, 0
      %p456 = por %p454, %p455
      %p457 = scmp.ne.s32.totalorder %s449, %s451
      %p458 = scmp.eq.s32.totalorder %s37, 1
      %p459 = por %p457, %p458
      %p460 = scmp.ne.s32.totalorder %s451, %s452
      %p461 = scmp.eq.s32.totalorder %s37, 0
      %p462 = por %p460, %p461
      %p463 = scmp.ne.s32.totalorder %s451, %s452
      %p464 = scmp.eq.s32.totalorder %s38, 1
      %p465 = por %p463, %p464
      %p467 = scmp.ne.s32.totalorder %s452, %s466
      %p468 = scmp.eq.s32.totalorder %s38, 0
      %p469 = por %p467, %p468
      %s471 = sadd.s32 %s470, 1
      %p474 = scmp.eq.s32.totalorder %s32, 1
      %p475 = scmp.ne.s32.totalorder %s470, %s472
      %p476 = scmp.eq.s32.totalorder %s32, 0
      %p477 = por %p475, %p476
      %p478 = scmp.ne.s32.totalorder %s470, %s472
      %p479 = scmp.eq.s32.totalorder %s37, 1
      %p480 = por %p478, %p479
      %p481 = scmp.ne.s32.totalorder %s472, %s473
      %p482 = scmp.eq.s32.totalorder %s37, 0
      %p483 = por %p481, %p482
      %p484 = scmp.ne.s32.totalorder %s472, %s473
      %p485 = scmp.eq.s32.totalorder %s38, 1
      %p486 = por %p484, %p485
      %p488 = scmp.ne.s32.totalorder %s473, %s487
      %p489 = scmp.eq.s32.totalorder %s38, 0
      %p490 = por %p488, %p489
      %s492 = sadd.s32 %s491, 1
      %p495 = scmp.eq.s32.totalorder %s32, 1
      %p496 = scmp.ne.s32.totalorder %s491, %s493
      %p497 = scmp.eq.s32.totalorder %s32, 0
      %p498 = por %p496, %p497
      %p499 = scmp.ne.s32.totalorder %s491, %s493
      %p500 = scmp.eq.s32.totalorder %s37, 1
      %p501 = por %p499, %p500
      %p502 = scmp.ne.s32.totalorder %s493, %s494
      %p503 = scmp.eq.s32.totalorder %s37, 0
      %p504 = por %p502, %p503
      %p505 = scmp.ne.s32.totalorder %s493, %s494
      %p506 = scmp.eq.s32.totalorder %s38, 1
      %p507 = por %p505, %p506
      %p509 = scmp.ne.s32.totalorder %s494, %s508
      %p510 = scmp.eq.s32.totalorder %s38, 0
      %p511 = por %p509, %p510
      %s513 = sadd.s32 %s512, 1
      %p516 = scmp.eq.s32.totalorder %s32, 1
      %p517 = scmp.ne.s32.totalorder %s512, %s514
      %p518 = scmp.eq.s32.totalorder %s32, 0
      %p519 = por %p517, %p518
      %p520 = scmp.ne.s32.totalorder %s512, %s514
      %p521 = scmp.eq.s32.totalorder %s37, 1
      %p522 = por %p520, %p521
      %p523 = scmp.ne.s32.totalorder %s514, %s515
      %p524 = scmp.eq.s32.totalorder %s37, 0
      %p525 = por %p523, %p524
      %p526 = scmp.ne.s32.totalorder %s514, %s515
      %p527 = scmp.eq.s32.totalorder %s38, 1
      %p528 = por %p526, %p527
      %p530 = scmp.ne.s32.totalorder %s515, %s529
      %p531 = scmp.eq.s32.totalorder %s38, 0
      %p532 = por %p530, %p531
      %s533 = ssub.s32 %s32, %s39
      %p534 = scmp.eq.s32.totalorder %s533, 0
      %s536 = sadd.s32 %s535, 1
      %s537 = scalar_select %p534, %s535, %s536
      %p540 = pneg %p534
      %p541 = scmp.eq.s32.totalorder %s32, 1
      %p542 = por %p540, %p541
      %p543 = scmp.ne.s32.totalorder %s535, %s538
      %p544 = scmp.eq.s32.totalorder %s32, 0
      %p545 = por %p543, %p544
      %p546 = scmp.ne.s32.totalorder %s535, %s538
      %p547 = scmp.eq.s32.totalorder %s37, 1
      %p548 = por %p546, %p547
      %p549 = scmp.ne.s32.totalorder %s538, %s539
      %p550 = scmp.eq.s32.totalorder %s37, 0
      %p551 = por %p549, %p550
      %p552 = scmp.ne.s32.totalorder %s538, %s539
      %p553 = scmp.eq.s32.totalorder %s38, 1
      %p554 = por %p552, %p553
      %p556 = scmp.ne.s32.totalorder %s539, %s555
      %p557 = scmp.eq.s32.totalorder %s38, 0
      %p558 = por %p556, %p557
      %p559 = scmp.le.s32.totalorder 1, %s32
      %p560 = scmp.lt.s32.totalorder %s32, 3
      %p561 = pnand %p559, %p560
      %p562 = pneg %p561
      // Predicated region
      $region9: #{tpu_custom_call.1} parent=5 // pred_check
        _
      $region10: #{tpu_custom_call.1} parent=5 // pred_check_branch
        %564 = sbr.rel (%p561) target = $region12
      $region11: #{tpu_custom_call.1} parent=5 // pred_region
        %s565 = ssub.s32 %s32, 1
        // Predicated region
        $region13: #{tpu_custom_call.1} parent=11 // pred_check
          %p566 = pneg %p105
        $region14: #{tpu_custom_call.1} parent=11 // pred_check_branch
          %568 = sbr.rel (%p566) target = $region16
        $region15: #{tpu_custom_call.1} parent=11 // pred_region
          _
        $region16: #{tpu_custom_call.1} parent=11 // pred_fallthru
          _
        // Predicated region
        $region17: #{tpu_custom_call.1} parent=11 // pred_check
          %p569 = pneg %p126
        $region18: #{tpu_custom_call.1} parent=11 // pred_check_branch
          %571 = sbr.rel (%p569) target = $region20
        $region19: #{tpu_custom_call.1} parent=11 // pred_region
          _
        $region20: #{tpu_custom_call.1} parent=11 // pred_fallthru
          _
        // Predicated region
        $region21: #{tpu_custom_call.1} parent=11 // pred_check
          %p572 = pneg %p147
        $region22: #{tpu_custom_call.1} parent=11 // pred_check_branch
          %574 = sbr.rel (%p572) target = $region24
        $region23: #{tpu_custom_call.1} parent=11 // pred_region
          _
        $region24: #{tpu_custom_call.1} parent=11 // pred_fallthru
          _
        // Predicated region
        $region25: #{tpu_custom_call.1} parent=11 // pred_check
          %p575 = pneg %p168
        $region26: #{tpu_custom_call.1} parent=11 // pred_check_branch
          %577 = sbr.rel (%p575) target = $region28
        $region27: #{tpu_custom_call.1} parent=11 // pred_region
          _
        $region28: #{tpu_custom_call.1} parent=11 // pred_fallthru
          _
        // Predicated region
        $region29: #{tpu_custom_call.1} parent=11 // pred_check
          %p578 = pneg %p189
        $region30: #{tpu_custom_call.1} parent=11 // pred_check_branch
          %580 = sbr.rel (%p578) target = $region32
        $region31: #{tpu_custom_call.1} parent=11 // pred_region
          _
        $region32: #{tpu_custom_call.1} parent=11 // pred_fallthru
          _
        // Predicated region
        $region33: #{tpu_custom_call.1} parent=11 // pred_check
          %p581 = pneg %p210
        $region34: #{tpu_custom_call.1} parent=11 // pred_check_branch
          %583 = sbr.rel (%p581) target = $region36
        $region35: #{tpu_custom_call.1} parent=11 // pred_region
          _
        $region36: #{tpu_custom_call.1} parent=11 // pred_fallthru
          _
        // Predicated region
        $region37: #{tpu_custom_call.1} parent=11 // pred_check
          %p584 = pneg %p231
        $region38: #{tpu_custom_call.1} parent=11 // pred_check_branch
          %586 = sbr.rel (%p584) target = $region40
        $region39: #{tpu_custom_call.1} parent=11 // pred_region
          _
        $region40: #{tpu_custom_call.1} parent=11 // pred_fallthru
          _
        // Predicated region
        $region41: #{tpu_custom_call.1} parent=11 // pred_check
          %p587 = pneg %p252
        $region42: #{tpu_custom_call.1} parent=11 // pred_check_branch
          %589 = sbr.rel (%p587) target = $region44
        $region43: #{tpu_custom_call.1} parent=11 // pred_region
          _
        $region44: #{tpu_custom_call.1} parent=11 // pred_fallthru
          _
        // Predicated region
        $region45: #{tpu_custom_call.1} parent=11 // pred_check
          %p590 = pneg %p273
        $region46: #{tpu_custom_call.1} parent=11 // pred_check_branch
          %592 = sbr.rel (%p590) target = $region48
        $region47: #{tpu_custom_call.1} parent=11 // pred_region
          _
        $region48: #{tpu_custom_call.1} parent=11 // pred_fallthru
          _
        // Predicated region
        $region49: #{tpu_custom_call.1} parent=11 // pred_check
          %p593 = pneg %p294
        $region50: #{tpu_custom_call.1} parent=11 // pred_check_branch
          %595 = sbr.rel (%p593) target = $region52
        $region51: #{tpu_custom_call.1} parent=11 // pred_region
          _
        $region52: #{tpu_custom_call.1} parent=11 // pred_fallthru
          _
        // Predicated region
        $region53: #{tpu_custom_call.1} parent=11 // pred_check
          %p596 = pneg %p315
        $region54: #{tpu_custom_call.1} parent=11 // pred_check_branch
          %598 = sbr.rel (%p596) target = $region56
        $region55: #{tpu_custom_call.1} parent=11 // pred_region
          _
        $region56: #{tpu_custom_call.1} parent=11 // pred_fallthru
          _
        // Predicated region
        $region57: #{tpu_custom_call.1} parent=11 // pred_check
          %p599 = pneg %p336
        $region58: #{tpu_custom_call.1} parent=11 // pred_check_branch
          %601 = sbr.rel (%p599) target = $region60
        $region59: #{tpu_custom_call.1} parent=11 // pred_region
          _
        $region60: #{tpu_custom_call.1} parent=11 // pred_fallthru
          _
        // Predicated region
        $region61: #{tpu_custom_call.1} parent=11 // pred_check
          %p602 = pneg %p357
        $region62: #{tpu_custom_call.1} parent=11 // pred_check_branch
          %604 = sbr.rel (%p602) target = $region64
        $region63: #{tpu_custom_call.1} parent=11 // pred_region
          _
        $region64: #{tpu_custom_call.1} parent=11 // pred_fallthru
          _
        // Predicated region
        $region65: #{tpu_custom_call.1} parent=11 // pred_check
          %p605 = pneg %p378
        $region66: #{tpu_custom_call.1} parent=11 // pred_check_branch
          %607 = sbr.rel (%p605) target = $region68
        $region67: #{tpu_custom_call.1} parent=11 // pred_region
          _
        $region68: #{tpu_custom_call.1} parent=11 // pred_fallthru
          _
        // Predicated region
        $region69: #{tpu_custom_call.1} parent=11 // pred_check
          %p608 = pneg %p399
        $region70: #{tpu_custom_call.1} parent=11 // pred_check_branch
          %610 = sbr.rel (%p608) target = $region72
        $region71: #{tpu_custom_call.1} parent=11 // pred_region
          _
        $region72: #{tpu_custom_call.1} parent=11 // pred_fallthru
          _
        // Predicated region
        $region73: #{tpu_custom_call.1} parent=11 // pred_check
          %p611 = pneg %p420
        $region74: #{tpu_custom_call.1} parent=11 // pred_check_branch
          %613 = sbr.rel (%p611) target = $region76
        $region75: #{tpu_custom_call.1} parent=11 // pred_region
          _
        $region76: #{tpu_custom_call.1} parent=11 // pred_fallthru
          _
        // Predicated region
        $region77: #{tpu_custom_call.1} parent=11 // pred_check
          %p614 = pneg %p441
        $region78: #{tpu_custom_call.1} parent=11 // pred_check_branch
          %616 = sbr.rel (%p614) target = $region80
        $region79: #{tpu_custom_call.1} parent=11 // pred_region
          _
        $region80: #{tpu_custom_call.1} parent=11 // pred_fallthru
          _
        // Predicated region
        $region81: #{tpu_custom_call.1} parent=11 // pred_check
          %p617 = pneg %p462
        $region82: #{tpu_custom_call.1} parent=11 // pred_check_branch
          %619 = sbr.rel (%p617) target = $region84
        $region83: #{tpu_custom_call.1} parent=11 // pred_region
          _
        $region84: #{tpu_custom_call.1} parent=11 // pred_fallthru
          _
        // Predicated region
        $region85: #{tpu_custom_call.1} parent=11 // pred_check
          %p620 = pneg %p483
        $region86: #{tpu_custom_call.1} parent=11 // pred_check_branch
          %622 = sbr.rel (%p620) target = $region88
        $region87: #{tpu_custom_call.1} parent=11 // pred_region
          _
        $region88: #{tpu_custom_call.1} parent=11 // pred_fallthru
          _
        // Predicated region
        $region89: #{tpu_custom_call.1} parent=11 // pred_check
          %p623 = pneg %p504
        $region90: #{tpu_custom_call.1} parent=11 // pred_check_branch
          %625 = sbr.rel (%p623) target = $region92
        $region91: #{tpu_custom_call.1} parent=11 // pred_region
          _
        $region92: #{tpu_custom_call.1} parent=11 // pred_fallthru
          _
        // Predicated region
        $region93: #{tpu_custom_call.1} parent=11 // pred_check
          %p626 = pneg %p525
        $region94: #{tpu_custom_call.1} parent=11 // pred_check_branch
          %628 = sbr.rel (%p626) target = $region96
        $region95: #{tpu_custom_call.1} parent=11 // pred_region
          _
        $region96: #{tpu_custom_call.1} parent=11 // pred_fallthru
          _
      $region12: #{tpu_custom_call.1} parent=5 // pred_fallthru
        _
      %p629 = scmp.lt.s32.totalorder %s32, 2
      // Predicated region
      $region97: #{tpu_custom_call.1} parent=5 // pred_check
        %p630 = pneg %p629
      $region98: #{tpu_custom_call.1} parent=5 // pred_check_branch
        %632 = sbr.rel (%p630) target = $region100
      $region99: #{tpu_custom_call.1} parent=5 // pred_region
        // Predicated region
        $region101: #{tpu_custom_call.1} parent=99 // pred_check
          %p633 = pneg %p52
        $region102: #{tpu_custom_call.1} parent=99 // pred_check_branch
          %635 = sbr.rel (%p633) target = $region104
        $region103: #{tpu_custom_call.1} parent=99 // pred_region
          %p636 = scmp.lt.s32.totalorder %s32, 1
          %s637 = scalar_select %p636, %s32, 1
          %s638 = smul.addr %s637, 8
          %s639 = scalar_lea.vmem %s0, %s638
        $region104: #{tpu_custom_call.1} parent=99 // pred_fallthru
          _
        // Predicated region
        $region105: #{tpu_custom_call.1} parent=99 // pred_check
          %p640 = pneg %p78
        $region106: #{tpu_custom_call.1} parent=99 // pred_check_branch
          %642 = sbr.rel (%p640) target = $region108
        $region107: #{tpu_custom_call.1} parent=99 // pred_region
          %p643 = scmp.lt.s32.totalorder %s32, 1
          %s644 = scalar_select %p643, %s32, 1
          %s645 = smul.addr %s644, 8
          %s646 = scalar_lea.vmem %s1, %s645
        $region108: #{tpu_custom_call.1} parent=99 // pred_fallthru
          _
      $region100: #{tpu_custom_call.1} parent=5 // pred_fallthru
        _
      %p647 = scmp.le.s32.totalorder 1, %s32
      %p648 = scmp.lt.s32.totalorder %s32, 3
      %p649 = pnand %p647, %p648
      %p650 = pneg %p649
      // Predicated region
      $region109: #{tpu_custom_call.1} parent=5 // pred_check
        _
      $region110: #{tpu_custom_call.1} parent=5 // pred_check_branch
        %652 = sbr.rel (%p649) target = $region112
      $region111: #{tpu_custom_call.1} parent=5 // pred_region
        %s653 = ssub.s32 %s32, 1
        %p654 = scmp.lt.s32.totalorder %s37, 1
        %s655 = scalar_select %p654, %s37, 1
        %s656 = smul.addr %s655, 8
        %s657 = scalar_lea.vmem %s0, %s656
        %p658 = pneg %p58
        %p659 = pneg %p55
        %p660 = scmp.lt.s32.totalorder %s37, 1
        %s661 = scalar_select %p660, %s37, 1
        %s662 = smul.addr %s661, 8
        %s663 = scalar_lea.vmem %s1, %s662
        %p664 = pneg %p84
        %p665 = pneg %p81
        %p666 = pneg %p105
        %p667 = pneg %p102
        %p668 = pneg %p126
        %p669 = pneg %p123
        %p670 = pneg %p147
        %p671 = pneg %p144
        %p672 = pneg %p168
        %p673 = pneg %p165
        %p674 = pneg %p189
        %p675 = pneg %p186
        %p676 = pneg %p210
        %p677 = pneg %p207
        %p678 = pneg %p231
        %p679 = pneg %p228
        %p680 = pneg %p252
        %p681 = pneg %p249
        %p682 = pneg %p273
        %p683 = pneg %p270
        %p684 = pneg %p294
        %p685 = pneg %p291
        %p686 = pneg %p315
        %p687 = pneg %p312
        %p688 = pneg %p336
        %p689 = pneg %p333
        %p690 = pneg %p357
        %p691 = pneg %p354
        %p692 = pneg %p378
        %p693 = pneg %p375
        %p694 = pneg %p399
        %p695 = pneg %p396
        %p696 = pneg %p420
        %p697 = pneg %p417
        %p698 = pneg %p441
        %p699 = pneg %p438
        %p700 = pneg %p462
        %p701 = pneg %p459
        %p702 = pneg %p483
        %p703 = pneg %p480
        %p704 = pneg %p504
        %p705 = pneg %p501
        %p706 = pneg %p525
        %p707 = pneg %p522
        %p708 = pneg %p551
        %p709 = pneg %p548
        %s710 = sand.u32 %s538, 1
        %s711 = scalar_lea.sflag [#allocation3], %s710
        %s712 = sand.u32 %s538, 1
        %s713 = smul.addr %s712, 8
        %s714 = scalar_lea.vmem [#allocation2], %s713
        %p715 = scmp.lt.s32.totalorder %s37, 1
        %s716 = scalar_select %p715, %s37, 1
        %s717 = smul.addr %s716, 8
        %s718 = scalar_lea.vmem %s0, %s717
        %p719 = scmp.lt.s32.totalorder %s37, 1
        %s720 = scalar_select %p719, %s37, 1
        %s721 = smul.addr %s720, 8
        %s722 = scalar_lea.vmem %s1, %s721
        %v723 = vld [vmem:[%s718] sm:$0xff]
        %v724 = vld [vmem:[%s3] sm:$0xff]
        %v725 = vld [vmem:[%s3 + $0x8] sm:$0x7f]
        %v726 = vld [vmem:[%s4] sm:$0x1]
        %v728 = vlaneseq
        %v729 = vshrl.u32 %v728, 7
        %v730 = vsub.s32 0, %v729
        %v731 = vrot.slane %v726, %v730
        %vm733 = vcmask 121856
        %v735 = vsel %vm733, %v723, 0
        %vm737 = vcmask 1046528
        %v739 = vsel %vm737, %v725, 0
        %741 = vmatprep.subr.mxu0 0.0
        %742 = vmatpush1.msra.mxu0 %v724
        %743 = vmatprep.subr.mxu0 0.0
        %744 = vmatpush1.msra.mxu0 %v739
        %745 = vmatprep.subr.mxu0 0.0
        %746 = vmatpush1.msra.mxu0 0.0
        %747 = vmatprep.subr.mxu0 0.0
        %748 = vmatpush1.msra.mxu0 0.0
        %749 = vmatprep.subr.mxu0 0.0
        %750 = vmatpush1.msra.mxu0 0.0
        %751 = vmatprep.subr.mxu0 0.0
        %752 = vmatpush1.msra.mxu0 0.0
        %753 = vmatprep.subr.mxu0 0.0
        %754 = vmatpush1.msra.mxu0 0.0
        %755 = vmatprep.subr.mxu0 0.0
        %756 = vmatpush1.msra.mxu0 0.0
        %757 = vmatprep.subr.mxu0 0.0
        %758 = vmatpush1.msra.mxu0 0.0
        %759 = vmatprep.subr.mxu0 0.0
        %760 = vmatpush1.msra.mxu0 0.0
        %761 = vmatprep.subr.mxu0 0.0
        %762 = vmatpush1.msra.mxu0 0.0
        %763 = vmatprep.subr.mxu0 0.0
        %764 = vmatpush1.msra.mxu0 0.0
        %765 = vmatprep.subr.mxu0 0.0
        %766 = vmatpush1.msra.mxu0 0.0
        %767 = vmatprep.subr.mxu0 0.0
        %768 = vmatpush1.msra.mxu0 0.0
        %769 = vmatprep.subr.mxu0 0.0
        %770 = vmatpush1.msra.mxu0 0.0
        %771 = vmatprep.subr.mxu0 0.0
        %772 = vmatpush1.msra.mxu0 0.0
        %773 = vmatprep.subr.mxu0 0.0
        %774 = vmatpush1.msra.mxu0 0.0
        %775 = vmatprep.subr.mxu0 0.0
        %776 = vmatpush1.msra.mxu0 0.0
        %777 = vmatprep.subr.mxu0 0.0
        %778 = vmatpush1.msra.mxu0 0.0
        %779 = vmatprep.subr.mxu0 0.0
        %780 = vmatpush1.msra.mxu0 0.0
        %781 = vmatprep.subr.mxu0 0.0
        %782 = vmatpush1.msra.mxu0 0.0
        %783 = vmatprep.subr.mxu0 0.0
        %784 = vmatpush1.msra.mxu0 0.0
        %785 = vmatprep.subr.mxu0 0.0
        %786 = vmatpush1.msra.mxu0 0.0
        %787 = vmatprep.subr.mxu0 0.0
        %788 = vmatpush1.msra.mxu0 0.0
        %789 = vmatprep.subr.mxu0 0.0
        %790 = vmatpush1.msra.mxu0 0.0
        %791 = vmatprep.subr.mxu0 0.0
        %792 = vmatpush1.msra.mxu0 0.0
        %793 = vmatprep.subr.mxu0 0.0
        %794 = vmatpush1.msra.mxu0 0.0
        %795 = vmatprep.subr.mxu0 0.0
        %796 = vmatpush1.msra.mxu0 0.0
        %797 = vmatprep.subr.mxu0 0.0
        %798 = vmatpush1.msra.mxu0 0.0
        %799 = vmatprep.subr.mxu0 0.0
        %800 = vmatpush1.msra.mxu0 0.0
        %801 = vmatprep.subr.mxu0 0.0
        %802 = vmatpush1.msra.mxu0 0.0
        %803 = vmatprep.subr.mxu0 0.0
        %804 = vmatpush1.msra.mxu0 0.0
        %805 = vmatprep.mubr.f32.mxu0 0.0
        %806 = vmatmul.mubr.f32.gmra.mrb[0].mxu0 %v735
        %v807 = vpop.f32.mrb[0].mxu0
        %v808 = vadd.f32 %v731, %v807
        %v809 = vpop.f32.mrb[0].mxu0
        %810 = vdwg.mxu0
        %v811 = vld [vmem:[%s722] sm:$0xff]
        %v812 = vld [vmem:[%s5] sm:$0x1]
        %v813 = vld [vmem:[%s6] sm:$0x1]
        %v814 = vadd.f32 %v808, %v811
        %vm815 = vcmask 261120
        %v816 = vsel %vm815, %v814, 0.0
        %817 = vadd.xlane.f32.xlu0 %v816
        %v818 = vpop.xlane.xlu0 %817
        %v819 = vrcp.pop 32.0
        %v820 = vmul.f32 %v818, %v819
        %v821 = vsub.f32 %v814, %v820
        %v822 = vmul.f32 %v821, %v821
        %v823 = vsel %vm815, %v822, 0.0
        %824 = vadd.xlane.f32.xlu0 %v823
        %v825 = vpop.xlane.xlu0 %824
        %v826 = vmul.f32 %v825, %v819
        %v827 = vadd.f32 %v826, 1e-05
        %v828 = vrsqrt.pop %v827
        %v829 = vmul.f32 %v821, %v828
        %v831 = vlaneseq
        %v832 = vshrl.u32 %v831, 7
        %v833 = vsub.s32 0, %v832
        %v834 = vrot.slane %v812, %v833
        %v836 = vmul.f32 %v829, %v834
        %v838 = vlaneseq
        %v839 = vshrl.u32 %v838, 7
        %v840 = vsub.s32 0, %v839
        %v841 = vrot.slane %v813, %v840
        %v843 = vadd.f32 %v836, %v841
        %845 = vrot.lane.b32.xlu0 %v811, 32
        %v846 = vpop.permute.xlu0 %845
        %v848 = vadd.f32 %v808, %v846
        %850 = vrot.lane.b32.xlu0 %v848, 96
        %v851 = vpop.permute.xlu0 %850
        %v853 = vsel %vm815, %v851, 0.0
        %854 = vadd.xlane.f32.xlu0 %v853
        %v855 = vpop.xlane.xlu0 %854
        %v856 = vmul.f32 %v855, %v819
        %v857 = vsub.f32 %v848, %v856
        %v858 = vmul.f32 %v857, %v857
        %860 = vrot.lane.b32.xlu0 %v858, 96
        %v861 = vpop.permute.xlu0 %860
        %v863 = vsel %vm815, %v861, 0.0
        %864 = vadd.xlane.f32.xlu0 %v863
        %v865 = vpop.xlane.xlu0 %864
        %v866 = vmul.f32 %v865, %v819
        %v867 = vadd.f32 %v866, 1e-05
        %v868 = vrsqrt.pop %v867
        %v869 = vmul.f32 %v857, %v868
        %870 = vrot.lane.b32.xlu0 %v834, 32
        %v871 = vpop.permute.xlu0 %870
        %v873 = vmul.f32 %v869, %v871
        %874 = vrot.lane.b32.xlu0 %v841, 32
        %v875 = vpop.permute.xlu0 %874
        %v877 = vadd.f32 %v873, %v875
        %878 = vrot.lane.b32.xlu0 %v811, 64
        %v879 = vpop.permute.xlu0 %878
        %v881 = vadd.f32 %v808, %v879
        %883 = vrot.lane.b32.xlu0 %v881, 64
        %v884 = vpop.permute.xlu0 %883
        %v886 = vsel %vm815, %v884, 0.0
        %887 = vadd.xlane.f32.xlu0 %v886
        %v888 = vpop.xlane.xlu0 %887
        %v889 = vmul.f32 %v888, %v819
        %v890 = vsub.f32 %v881, %v889
        %v891 = vmul.f32 %v890, %v890
        %893 = vrot.lane.b32.xlu0 %v891, 64
        %v894 = vpop.permute.xlu0 %893
        %v896 = vsel %vm815, %v894, 0.0
        %897 = vadd.xlane.f32.xlu0 %v896
        %v898 = vpop.xlane.xlu0 %897
        %v899 = vmul.f32 %v898, %v819
        %v900 = vadd.f32 %v899, 1e-05
        %v901 = vrsqrt.pop %v900
        %v902 = vmul.f32 %v890, %v901
        %903 = vrot.lane.b32.xlu0 %v834, 64
        %v904 = vpop.permute.xlu0 %903
        %v906 = vmul.f32 %v902, %v904
        %907 = vrot.lane.b32.xlu0 %v841, 64
        %v908 = vpop.permute.xlu0 %907
        %v910 = vadd.f32 %v906, %v908
        %912 = vrot.lane.b32.xlu0 %v843, 32
        %v913 = vpop.permute.xlu0 %912
        %916 = vrot.lane.b32.xlu0 %v910, 96
        %v917 = vpop.permute.xlu0 %916
        %v919 = vld [vmem:[%s2] sm:$0xff]
        %v920 = vld [vmem:[%s2 + $0x8] sm:$0xff]
        %v921 = vld [vmem:[%s2 + $0x10] sm:$0xff]
        %v922 = vld [vmem:[%s7] sm:$0x1]
        %v923 = vld [vmem:[%s8] sm:$0x1]
        %925 = vrot.lane.b32.xlu0 %v877, 96
        %v926 = vpop.permute.xlu0 %925
        %927 = vrot.lane.b32.xlu0 %v913, 96
        %v928 = vpop.permute.xlu0 %927
        %929 = vrot.lane.b32.xlu0 %v917, 96
        %v930 = vpop.permute.xlu0 %929
        %v934 = vsel %vm815, %v926, 0.0
        %935 = vadd.xlane.f32.xlu0 %v934
        %v936 = vpop.xlane.xlu0 %935
        %v937 = vsel %vm815, %v928, 0.0
        %938 = vadd.xlane.f32.xlu0 %v937
        %v939 = vpop.xlane.xlu0 %938
        %v940 = vsel %vm815, %v930, 0.0
        %941 = vadd.xlane.f32.xlu0 %v940
        %v942 = vpop.xlane.xlu0 %941
        %v943 = vmul.f32 %v936, %v819
        %v944 = vmul.f32 %v939, %v819
        %v945 = vmul.f32 %v942, %v819
        %v946 = vsub.f32 %v877, %v943
        %v947 = vsub.f32 %v913, %v944
        %v948 = vsub.f32 %v917, %v945
        %v949 = vmul.f32 %v946, %v946
        %v950 = vmul.f32 %v947, %v947
        %v951 = vmul.f32 %v948, %v948
        %955 = vrot.lane.b32.xlu0 %v949, 96
        %v956 = vpop.permute.xlu0 %955
        %957 = vrot.lane.b32.xlu0 %v950, 96
        %v958 = vpop.permute.xlu0 %957
        %959 = vrot.lane.b32.xlu0 %v951, 96
        %v960 = vpop.permute.xlu0 %959
        %v964 = vsel %vm815, %v956, 0.0
        %965 = vadd.xlane.f32.xlu0 %v964
        %v966 = vpop.xlane.xlu0 %965
        %v967 = vsel %vm815, %v958, 0.0
        %968 = vadd.xlane.f32.xlu0 %v967
        %v969 = vpop.xlane.xlu0 %968
        %v970 = vsel %vm815, %v960, 0.0
        %971 = vadd.xlane.f32.xlu0 %v970
        %v972 = vpop.xlane.xlu0 %971
        %v973 = vmul.f32 %v966, %v819
        %v974 = vmul.f32 %v969, %v819
        %v975 = vmul.f32 %v972, %v819
        %v976 = vadd.f32 %v973, 1e-05
        %v977 = vadd.f32 %v974, 1e-05
        %v978 = vadd.f32 %v975, 1e-05
        %v979 = vrsqrt.pop %v976
        %v980 = vrsqrt.pop %v977
        %v981 = vrsqrt.pop %v978
        %v982 = vmul.f32 %v946, %v979
        %v983 = vmul.f32 %v947, %v980
        %v984 = vmul.f32 %v948, %v981
        %v986 = vlaneseq
        %v987 = vshrl.u32 %v986, 7
        %v988 = vsub.s32 0, %v987
        %v989 = vrot.slane %v922, %v988
        %990 = vrot.lane.b32.xlu0 %v989, 32
        %v991 = vpop.permute.xlu0 %990
        %v993 = vmul.f32 %v982, %v991
        %v994 = vmul.f32 %v983, %v991
        %v995 = vmul.f32 %v984, %v991
        %v997 = vlaneseq
        %v998 = vshrl.u32 %v997, 7
        %v999 = vsub.s32 0, %v998
        %v1000 = vrot.slane %v923, %v999
        %1001 = vrot.lane.b32.xlu0 %v1000, 32
        %v1002 = vpop.permute.xlu0 %1001
        %v1004 = vadd.f32 %v993, %v1002
        %v1005 = vadd.f32 %v994, %v1002
        %v1006 = vadd.f32 %v995, %v1002
        %v1007 = vld [vmem:[%s9] sm:$0xff]
        %v1008 = vld [vmem:[%s9 + $0x8] sm:$0xff]
        %v1009 = vld [vmem:[%s9 + $0x10] sm:$0xff]
        %v1010 = vld [vmem:[%s9 + $0x18] sm:$0xff]
        %v1011 = vld [vmem:[%s10] sm:$0x1]
        %v1013 = vlaneseq
        %v1014 = vshrl.u32 %v1013, 7
        %v1015 = vsub.s32 0, %v1014
        %v1016 = vrot.slane %v1011, %v1015
        %1021 = vrot.lane.b32.xlu0 %v1004, 96
        %v1022 = vpop.permute.xlu0 %1021
        %1023 = vrot.lane.b32.xlu0 %v1005, 96
        %v1024 = vpop.permute.xlu0 %1023
        %1025 = vrot.lane.b32.xlu0 %v1006, 96
        %v1026 = vpop.permute.xlu0 %1025
        %v1027 = vsel %vm815, %v1022, 0
        %v1029 = vsel %vm815, %v1024, 0
        %v1031 = vsel %vm815, %v1026, 0
        %1033 = vmatprep.subr.mxu0 0.0
        %1034 = vmatpush1.msra.mxu0 %v1007
        %1035 = vmatprep.subr.mxu0 0.0
        %1036 = vmatpush1.msra.mxu0 %v1008
        %1037 = vmatprep.subr.mxu0 0.0
        %1038 = vmatpush1.msra.mxu0 %v1009
        %1039 = vmatprep.subr.mxu0 0.0
        %1040 = vmatpush1.msra.mxu0 %v1010
        %1041 = vmatprep.subr.mxu0 0.0
        %1042 = vmatpush1.msra.mxu0 0.0
        %1043 = vmatprep.subr.mxu0 0.0
        %1044 = vmatpush1.msra.mxu0 0.0
        %1045 = vmatprep.subr.mxu0 0.0
        %1046 = vmatpush1.msra.mxu0 0.0
        %1047 = vmatprep.subr.mxu0 0.0
        %1048 = vmatpush1.msra.mxu0 0.0
        %1049 = vmatprep.subr.mxu0 0.0
        %1050 = vmatpush1.msra.mxu0 0.0
        %1051 = vmatprep.subr.mxu0 0.0
        %1052 = vmatpush1.msra.mxu0 0.0
        %1053 = vmatprep.subr.mxu0 0.0
        %1054 = vmatpush1.msra.mxu0 0.0
        %1055 = vmatprep.subr.mxu0 0.0
        %1056 = vmatpush1.msra.mxu0 0.0
        %1057 = vmatprep.subr.mxu0 0.0
        %1058 = vmatpush1.msra.mxu0 0.0
        %1059 = vmatprep.subr.mxu0 0.0
        %1060 = vmatpush1.msra.mxu0 0.0
        %1061 = vmatprep.subr.mxu0 0.0
        %1062 = vmatpush1.msra.mxu0 0.0
        %1063 = vmatprep.subr.mxu0 0.0
        %1064 = vmatpush1.msra.mxu0 0.0
        %1065 = vmatprep.subr.mxu0 0.0
        %1066 = vmatpush1.msra.mxu0 0.0
        %1067 = vmatprep.subr.mxu0 0.0
        %1068 = vmatpush1.msra.mxu0 0.0
        %1069 = vmatprep.subr.mxu0 0.0
        %1070 = vmatpush1.msra.mxu0 0.0
        %1071 = vmatprep.subr.mxu0 0.0
        %1072 = vmatpush1.msra.mxu0 0.0
        %1073 = vmatprep.subr.mxu0 0.0
        %1074 = vmatpush1.msra.mxu0 0.0
        %1075 = vmatprep.subr.mxu0 0.0
        %1076 = vmatpush1.msra.mxu0 0.0
        %1077 = vmatprep.subr.mxu0 0.0
        %1078 = vmatpush1.msra.mxu0 0.0
        %1079 = vmatprep.subr.mxu0 0.0
        %1080 = vmatpush1.msra.mxu0 0.0
        %1081 = vmatprep.subr.mxu0 0.0
        %1082 = vmatpush1.msra.mxu0 0.0
        %1083 = vmatprep.subr.mxu0 0.0
        %1084 = vmatpush1.msra.mxu0 0.0
        %1085 = vmatprep.subr.mxu0 0.0
        %1086 = vmatpush1.msra.mxu0 0.0
        %1087 = vmatprep.subr.mxu0 0.0
        %1088 = vmatpush1.msra.mxu0 0.0
        %1089 = vmatprep.subr.mxu0 0.0
        %1090 = vmatpush1.msra.mxu0 0.0
        %1091 = vmatprep.subr.mxu0 0.0
        %1092 = vmatpush1.msra.mxu0 0.0
        %1093 = vmatprep.subr.mxu0 0.0
        %1094 = vmatpush1.msra.mxu0 0.0
        %1095 = vmatprep.subr.mxu0 0.0
        %1096 = vmatpush1.msra.mxu0 0.0
        %1097 = vmatprep.mubr.f32.mxu0 0.0
        %1098 = vmatmul.mubr.f32.gmra.mrb[0].mxu0 %v1027
        %v1099 = vpop.f32.mrb[0].mxu0
        %v1100 = vadd.f32 %v1016, %v1099
        %v1101 = vpop.f32.mrb[0].mxu0
        %1102 = vmatprep.mubr.f32.mxu0 0.0
        %1103 = vmatmul.mubr.f32.gmra.mrb[0].mxu0 %v1029
        %v1104 = vpop.f32.mrb[0].mxu0
        %v1105 = vadd.f32 %v1016, %v1104
        %v1106 = vpop.f32.mrb[0].mxu0
        %1107 = vmatprep.mubr.f32.mxu0 0.0
        %1108 = vmatmul.mubr.f32.gmra.mrb[0].mxu0 %v1031
        %v1109 = vpop.f32.mrb[0].mxu0
        %v1110 = vadd.f32 %v1016, %v1109
        %v1111 = vpop.f32.mrb[0].mxu0
        %1112 = vdwg.mxu0
        %v1113 = vld [vmem:[%s11] sm:$0xff]
        %v1114 = vld [vmem:[%s11 + $0x8] sm:$0xff]
        %v1115 = vld [vmem:[%s11 + $0x10] sm:$0xff]
        %v1116 = vld [vmem:[%s11 + $0x18] sm:$0xff]
        %v1117 = vmul.f32 %v1100, 0.35355338
        %v1118 = vmul.f32 %v1105, 0.35355338
        %v1119 = vmul.f32 %v1110, 0.35355338
        %1123 = vrot.lane.b32.xlu0 %v1100, 96
        %v1124 = vpop.permute.xlu0 %1123
        %1125 = vrot.lane.b32.xlu0 %v1105, 96
        %v1126 = vpop.permute.xlu0 %1125
        %1127 = vrot.lane.b32.xlu0 %v1110, 96
        %v1128 = vpop.permute.xlu0 %1127
        %vm1129 = vcmask 64512
        %v1131 = vsel %vm1129, %v1117, 0
        %v1134 = vsel %vm1129, %v1118, 0
        %v1137 = vsel %vm1129, %v1119, 0
        %v1139 = vsel %vm1129, %v1124, 0
        %v1141 = vsel %vm1129, %v1126, 0
        %v1143 = vsel %vm1129, %v1128, 0
        %1145 = vmatprep.subr.mxu0 0.0
        %1146 = vmatpush1.xpose.msra.mxu0 %v1139
        %1147 = vmatprep.subr.mxu0 0.0
        %1148 = vmatpush1.xpose.msra.mxu0 %v1141
        %1149 = vmatprep.subr.mxu0 0.0
        %1150 = vmatpush1.xpose.msra.mxu0 %v1143
        %1151 = vmatprep.subr.mxu0 0.0
        %1152 = vmatpush1.xpose.msra.mxu0 0.0
        %1153 = vmatprep.subr.mxu0 0.0
        %1154 = vmatpush1.xpose.msra.mxu0 0.0
        %1155 = vmatprep.subr.mxu0 0.0
        %1156 = vmatpush1.xpose.msra.mxu0 0.0
        %1157 = vmatprep.subr.mxu0 0.0
        %1158 = vmatpush1.xpose.msra.mxu0 0.0
        %1159 = vmatprep.subr.mxu0 0.0
        %1160 = vmatpush1.xpose.msra.mxu0 0.0
        %1161 = vmatprep.subr.mxu0 0.0
        %1162 = vmatpush1.xpose.msra.mxu0 0.0
        %1163 = vmatprep.subr.mxu0 0.0
        %1164 = vmatpush1.xpose.msra.mxu0 0.0
        %1165 = vmatprep.subr.mxu0 0.0
        %1166 = vmatpush1.xpose.msra.mxu0 0.0
        %1167 = vmatprep.subr.mxu0 0.0
        %1168 = vmatpush1.xpose.msra.mxu0 0.0
        %1169 = vmatprep.subr.mxu0 0.0
        %1170 = vmatpush1.xpose.msra.mxu0 0.0
        %1171 = vmatprep.subr.mxu0 0.0
        %1172 = vmatpush1.xpose.msra.mxu0 0.0
        %1173 = vmatprep.subr.mxu0 0.0
        %1174 = vmatpush1.xpose.msra.mxu0 0.0
        %1175 = vmatprep.subr.mxu0 0.0
        %1176 = vmatpush1.xpose.msra.mxu0 0.0
        %1177 = vmatprep.subr.mxu0 0.0
        %1178 = vmatpush1.xpose.msra.mxu0 0.0
        %1179 = vmatprep.subr.mxu0 0.0
        %1180 = vmatpush1.xpose.msra.mxu0 0.0
        %1181 = vmatprep.subr.mxu0 0.0
        %1182 = vmatpush1.xpose.msra.mxu0 0.0
        %1183 = vmatprep.subr.mxu0 0.0
        %1184 = vmatpush1.xpose.msra.mxu0 0.0
        %1185 = vmatprep.subr.mxu0 0.0
        %1186 = vmatpush1.xpose.msra.mxu0 0.0
        %1187 = vmatprep.subr.mxu0 0.0
        %1188 = vmatpush1.xpose.msra.mxu0 0.0
        %1189 = vmatprep.subr.mxu0 0.0
        %1190 = vmatpush1.xpose.msra.mxu0 0.0
        %1191 = vmatprep.subr.mxu0 0.0
        %1192 = vmatpush1.xpose.msra.mxu0 0.0
        %1193 = vmatprep.subr.mxu0 0.0
        %1194 = vmatpush1.xpose.msra.mxu0 0.0
        %1195 = vmatprep.subr.mxu0 0.0
        %1196 = vmatpush1.xpose.msra.mxu0 0.0
        %1197 = vmatprep.subr.mxu0 0.0
        %1198 = vmatpush1.xpose.msra.mxu0 0.0
        %1199 = vmatprep.subr.mxu0 0.0
        %1200 = vmatpush1.xpose.msra.mxu0 0.0
        %1201 = vmatprep.subr.mxu0 0.0
        %1202 = vmatpush1.xpose.msra.mxu0 0.0
        %1203 = vmatprep.subr.mxu0 0.0
        %1204 = vmatpush1.xpose.msra.mxu0 0.0
        %1205 = vmatprep.subr.mxu0 0.0
        %1206 = vmatpush1.xpose.msra.mxu0 0.0
        %1207 = vmatprep.subr.mxu0 0.0
        %1208 = vmatpush1.xpose.msra.mxu0 0.0
        %1209 = vmatprep.mubr.f32.mxu0 0.0
        %1210 = vmatmul.mubr.f32.gmra.mrb[0].mxu0 %v1131
        %v1211 = vpop.f32.mrb[0].mxu0
        %v1212 = vadd.f32 %v919, %v1211
        %v1213 = vpop.f32.mrb[0].mxu0
        %1214 = vmatprep.mubr.f32.mxu0 0.0
        %1215 = vmatmul.mubr.f32.gmra.mrb[0].mxu0 %v1134
        %v1216 = vpop.f32.mrb[0].mxu0
        %v1217 = vadd.f32 %v920, %v1216
        %v1218 = vpop.f32.mrb[0].mxu0
        %1219 = vmatprep.mubr.f32.mxu0 0.0
        %1220 = vmatmul.mubr.f32.gmra.mrb[0].mxu0 %v1137
        %v1221 = vpop.f32.mrb[0].mxu0
        %v1222 = vadd.f32 %v921, %v1221
        %v1223 = vpop.f32.mrb[0].mxu0
        %1224 = vdwg.mxu0
        %vm1225 = vcmask 195584
        %v1226 = vsel %vm1225, %v1212, -inf
        %1227 = vmax.xlane.f32.xlu0 %v1226
        %v1228 = vpop.xlane.xlu0 %1227
        %v1229 = vsel %vm1225, %v1217, -inf
        %1230 = vmax.xlane.f32.xlu0 %v1229
        %v1231 = vpop.xlane.xlu0 %1230
        %v1232 = vsel %vm1225, %v1222, -inf
        %1233 = vmax.xlane.f32.xlu0 %v1232
        %v1234 = vpop.xlane.xlu0 %1233
        %v1235 = vsub.f32 %v1212, %v1228
        %v1236 = vsub.f32 %v1217, %v1231
        %v1237 = vsub.f32 %v1222, %v1234
        %v1238 = vmul.f32 %v1235, 1.442695
        %v1239 = vpow.pop %v1238
        %v1240 = vmul.f32 %v1236, 1.442695
        %v1241 = vpow.pop %v1240
        %v1242 = vmul.f32 %v1237, 1.442695
        %v1243 = vpow.pop %v1242
        %v1244 = vsel %vm1225, %v1239, 0.0
        %1245 = vadd.xlane.f32.xlu0 %v1244
        %v1246 = vpop.xlane.xlu0 %1245
        %v1247 = vsel %vm1225, %v1241, 0.0
        %1248 = vadd.xlane.f32.xlu0 %v1247
        %v1249 = vpop.xlane.xlu0 %1248
        %v1250 = vsel %vm1225, %v1243, 0.0
        %1251 = vadd.xlane.f32.xlu0 %v1250
        %v1252 = vpop.xlane.xlu0 %1251
        %v1253 = vrcp.pop %v1246
        %v1254 = vmul.f32 %v1239, %v1253
        %v1255 = vrcp.pop %v1249
        %v1256 = vmul.f32 %v1241, %v1255
        %v1257 = vrcp.pop %v1252
        %v1258 = vmul.f32 %v1243, %v1257
        %1259 = vrot.lane.b32.xlu0 %v1100, 64
        %v1260 = vpop.permute.xlu0 %1259
        %1261 = vrot.lane.b32.xlu0 %v1105, 64
        %v1262 = vpop.permute.xlu0 %1261
        %1263 = vrot.lane.b32.xlu0 %v1110, 64
        %v1264 = vpop.permute.xlu0 %1263
        %v1269 = vsel %vm1225, %v1254, 0
        %v1272 = vsel %vm1225, %v1256, 0
        %v1275 = vsel %vm1225, %v1258, 0
        %1277 = vmatprep.subr.mxu0 0.0
        %1278 = vmatpush1.msra.mxu0 %v1260
        %1279 = vmatprep.subr.mxu0 0.0
        %1280 = vmatpush1.msra.mxu0 %v1262
        %1281 = vmatprep.subr.mxu0 0.0
        %1282 = vmatpush1.msra.mxu0 %v1264
        %1283 = vmatprep.subr.mxu0 0.0
        %1284 = vmatpush1.msra.mxu0 0.0
        %1285 = vmatprep.subr.mxu0 0.0
        %1286 = vmatpush1.msra.mxu0 0.0
        %1287 = vmatprep.subr.mxu0 0.0
        %1288 = vmatpush1.msra.mxu0 0.0
        %1289 = vmatprep.subr.mxu0 0.0
        %1290 = vmatpush1.msra.mxu0 0.0
        %1291 = vmatprep.subr.mxu0 0.0
        %1292 = vmatpush1.msra.mxu0 0.0
        %1293 = vmatprep.subr.mxu0 0.0
        %1294 = vmatpush1.msra.mxu0 0.0
        %1295 = vmatprep.subr.mxu0 0.0
        %1296 = vmatpush1.msra.mxu0 0.0
        %1297 = vmatprep.subr.mxu0 0.0
        %1298 = vmatpush1.msra.mxu0 0.0
        %1299 = vmatprep.subr.mxu0 0.0
        %1300 = vmatpush1.msra.mxu0 0.0
        %1301 = vmatprep.subr.mxu0 0.0
        %1302 = vmatpush1.msra.mxu0 0.0
        %1303 = vmatprep.subr.mxu0 0.0
        %1304 = vmatpush1.msra.mxu0 0.0
        %1305 = vmatprep.subr.mxu0 0.0
        %1306 = vmatpush1.msra.mxu0 0.0
        %1307 = vmatprep.subr.mxu0 0.0
        %1308 = vmatpush1.msra.mxu0 0.0
        %1309 = vmatprep.subr.mxu0 0.0
        %1310 = vmatpush1.msra.mxu0 0.0
        %1311 = vmatprep.subr.mxu0 0.0
        %1312 = vmatpush1.msra.mxu0 0.0
        %1313 = vmatprep.subr.mxu0 0.0
        %1314 = vmatpush1.msra.mxu0 0.0
        %1315 = vmatprep.subr.mxu0 0.0
        %1316 = vmatpush1.msra.mxu0 0.0
        %1317 = vmatprep.subr.mxu0 0.0
        %1318 = vmatpush1.msra.mxu0 0.0
        %1319 = vmatprep.subr.mxu0 0.0
        %1320 = vmatpush1.msra.mxu0 0.0
        %1321 = vmatprep.subr.mxu0 0.0
        %1322 = vmatpush1.msra.mxu0 0.0
        %1323 = vmatprep.subr.mxu0 0.0
        %1324 = vmatpush1.msra.mxu0 0.0
        %1325 = vmatprep.subr.mxu0 0.0
        %1326 = vmatpush1.msra.mxu0 0.0
        %1327 = vmatprep.subr.mxu0 0.0
        %1328 = vmatpush1.msra.mxu0 0.0
        %1329 = vmatprep.subr.mxu0 0.0
        %1330 = vmatpush1.msra.mxu0 0.0
        %1331 = vmatprep.subr.mxu0 0.0
        %1332 = vmatpush1.msra.mxu0 0.0
        %1333 = vmatprep.subr.mxu0 0.0
        %1334 = vmatpush1.msra.mxu0 0.0
        %1335 = vmatprep.subr.mxu0 0.0
        %1336 = vmatpush1.msra.mxu0 0.0
        %1337 = vmatprep.subr.mxu0 0.0
        %1338 = vmatpush1.msra.mxu0 0.0
        %1339 = vmatprep.subr.mxu0 0.0
        %1340 = vmatpush1.msra.mxu0 0.0
        %1341 = vmatprep.mubr.f32.mxu0 0.0
        %1342 = vmatmul.mubr.f32.gmra.mrb[0].mxu0 %v1269
        %v1343 = vpop.f32.mrb[0].mxu0
        %v1344 = vadd.f32 0.0, %v1343
        %v1345 = vpop.f32.mrb[0].mxu0
        %1346 = vmatprep.mubr.f32.mxu0 0.0
        %1347 = vmatmul.mubr.f32.gmra.mrb[0].mxu0 %v1272
        %v1348 = vpop.f32.mrb[0].mxu0
        %v1349 = vadd.f32 0.0, %v1348
        %v1350 = vpop.f32.mrb[0].mxu0
        %1351 = vmatprep.mubr.f32.mxu0 0.0
        %1352 = vmatmul.mubr.f32.gmra.mrb[0].mxu0 %v1275
        %v1353 = vpop.f32.mrb[0].mxu0
        %v1354 = vadd.f32 0.0, %v1353
        %v1355 = vpop.f32.mrb[0].mxu0
        %1356 = vdwg.mxu0
        %1357 = vrot.lane.b32.xlu0 %v1117, 120
        %v1358 = vpop.permute.xlu0 %1357
        %1359 = vrot.lane.b32.xlu0 %v1118, 120
        %v1360 = vpop.permute.xlu0 %1359
        %1361 = vrot.lane.b32.xlu0 %v1119, 120
        %v1362 = vpop.permute.xlu0 %1361
        %1363 = vrot.lane.b32.xlu0 %v1100, 88
        %v1364 = vpop.permute.xlu0 %1363
        %1365 = vrot.lane.b32.xlu0 %v1105, 88
        %v1366 = vpop.permute.xlu0 %1365
        %1367 = vrot.lane.b32.xlu0 %v1110, 88
        %v1368 = vpop.permute.xlu0 %1367
        %v1369 = vsel %vm1129, %v1358, 0
        %v1371 = vsel %vm1129, %v1360, 0
        %v1373 = vsel %vm1129, %v1362, 0
        %v1375 = vsel %vm1129, %v1364, 0
        %v1377 = vsel %vm1129, %v1366, 0
        %v1379 = vsel %vm1129, %v1368, 0
        %1381 = vmatprep.subr.mxu0 0.0
        %1382 = vmatpush1.xpose.msra.mxu0 %v1375
        %1383 = vmatprep.subr.mxu0 0.0
        %1384 = vmatpush1.xpose.msra.mxu0 %v1377
        %1385 = vmatprep.subr.mxu0 0.0
        %1386 = vmatpush1.xpose.msra.mxu0 %v1379
        %1387 = vmatprep.subr.mxu0 0.0
        %1388 = vmatpush1.xpose.msra.mxu0 0.0
        %1389 = vmatprep.subr.mxu0 0.0
        %1390 = vmatpush1.xpose.msra.mxu0 0.0
        %1391 = vmatprep.subr.mxu0 0.0
        %1392 = vmatpush1.xpose.msra.mxu0 0.0
        %1393 = vmatprep.subr.mxu0 0.0
        %1394 = vmatpush1.xpose.msra.mxu0 0.0
        %1395 = vmatprep.subr.mxu0 0.0
        %1396 = vmatpush1.xpose.msra.mxu0 0.0
        %1397 = vmatprep.subr.mxu0 0.0
        %1398 = vmatpush1.xpose.msra.mxu0 0.0
        %1399 = vmatprep.subr.mxu0 0.0
        %1400 = vmatpush1.xpose.msra.mxu0 0.0
        %1401 = vmatprep.subr.mxu0 0.0
        %1402 = vmatpush1.xpose.msra.mxu0 0.0
        %1403 = vmatprep.subr.mxu0 0.0
        %1404 = vmatpush1.xpose.msra.mxu0 0.0
        %1405 = vmatprep.subr.mxu0 0.0
        %1406 = vmatpush1.xpose.msra.mxu0 0.0
        %1407 = vmatprep.subr.mxu0 0.0
        %1408 = vmatpush1.xpose.msra.mxu0 0.0
        %1409 = vmatprep.subr.mxu0 0.0
        %1410 = vmatpush1.xpose.msra.mxu0 0.0
        %1411 = vmatprep.subr.mxu0 0.0
        %1412 = vmatpush1.xpose.msra.mxu0 0.0
        %1413 = vmatprep.subr.mxu0 0.0
        %1414 = vmatpush1.xpose.msra.mxu0 0.0
        %1415 = vmatprep.subr.mxu0 0.0
        %1416 = vmatpush1.xpose.msra.mxu0 0.0
        %1417 = vmatprep.subr.mxu0 0.0
        %1418 = vmatpush1.xpose.msra.mxu0 0.0
        %1419 = vmatprep.subr.mxu0 0.0
        %1420 = vmatpush1.xpose.msra.mxu0 0.0
        %1421 = vmatprep.subr.mxu0 0.0
        %1422 = vmatpush1.xpose.msra.mxu0 0.0
        %1423 = vmatprep.subr.mxu0 0.0
        %1424 = vmatpush1.xpose.msra.mxu0 0.0
        %1425 = vmatprep.subr.mxu0 0.0
        %1426 = vmatpush1.xpose.msra.mxu0 0.0
        %1427 = vmatprep.subr.mxu0 0.0
        %1428 = vmatpush1.xpose.msra.mxu0 0.0
        %1429 = vmatprep.subr.mxu0 0.0
        %1430 = vmatpush1.xpose.msra.mxu0 0.0
        %1431 = vmatprep.subr.mxu0 0.0
        %1432 = vmatpush1.xpose.msra.mxu0 0.0
        %1433 = vmatprep.subr.mxu0 0.0
        %1434 = vmatpush1.xpose.msra.mxu0 0.0
        %1435 = vmatprep.subr.mxu0 0.0
        %1436 = vmatpush1.xpose.msra.mxu0 0.0
        %1437 = vmatprep.subr.mxu0 0.0
        %1438 = vmatpush1.xpose.msra.mxu0 0.0
        %1439 = vmatprep.subr.mxu0 0.0
        %1440 = vmatpush1.xpose.msra.mxu0 0.0
        %1441 = vmatprep.subr.mxu0 0.0
        %1442 = vmatpush1.xpose.msra.mxu0 0.0
        %1443 = vmatprep.subr.mxu0 0.0
        %1444 = vmatpush1.xpose.msra.mxu0 0.0
        %1445 = vmatprep.mubr.f32.mxu0 0.0
        %1446 = vmatmul.mubr.f32.gmra.mrb[0].mxu0 %v1369
        %v1447 = vpop.f32.mrb[0].mxu0
        %v1448 = vadd.f32 %v919, %v1447
        %v1449 = vpop.f32.mrb[0].mxu0
        %1450 = vmatprep.mubr.f32.mxu0 0.0
        %1451 = vmatmul.mubr.f32.gmra.mrb[0].mxu0 %v1371
        %v1452 = vpop.f32.mrb[0].mxu0
        %v1453 = vadd.f32 %v920, %v1452
        %v1454 = vpop.f32.mrb[0].mxu0
        %1455 = vmatprep.mubr.f32.mxu0 0.0
        %1456 = vmatmul.mubr.f32.gmra.mrb[0].mxu0 %v1373
        %v1457 = vpop.f32.mrb[0].mxu0
        %v1458 = vadd.f32 %v921, %v1457
        %v1459 = vpop.f32.mrb[0].mxu0
        %1460 = vdwg.mxu0
        %v1461 = vsel %vm1225, %v1448, -inf
        %1462 = vmax.xlane.f32.xlu0 %v1461
        %v1463 = vpop.xlane.xlu0 %1462
        %v1464 = vsel %vm1225, %v1453, -inf
        %1465 = vmax.xlane.f32.xlu0 %v1464
        %v1466 = vpop.xlane.xlu0 %1465
        %v1467 = vsel %vm1225, %v1458, -inf
        %1468 = vmax.xlane.f32.xlu0 %v1467
        %v1469 = vpop.xlane.xlu0 %1468
        %v1470 = vsub.f32 %v1448, %v1463
        %v1471 = vsub.f32 %v1453, %v1466
        %v1472 = vsub.f32 %v1458, %v1469
        %v1473 = vmul.f32 %v1470, 1.442695
        %v1474 = vpow.pop %v1473
        %v1475 = vmul.f32 %v1471, 1.442695
        %v1476 = vpow.pop %v1475
        %v1477 = vmul.f32 %v1472, 1.442695
        %v1478 = vpow.pop %v1477
        %v1479 = vsel %vm1225, %v1474, 0.0
        %1480 = vadd.xlane.f32.xlu0 %v1479
        %v1481 = vpop.xlane.xlu0 %1480
        %v1482 = vsel %vm1225, %v1476, 0.0
        %1483 = vadd.xlane.f32.xlu0 %v1482
        %v1484 = vpop.xlane.xlu0 %1483
        %v1485 = vsel %vm1225, %v1478, 0.0
        %1486 = vadd.xlane.f32.xlu0 %v1485
        %v1487 = vpop.xlane.xlu0 %1486
        %v1488 = vrcp.pop %v1481
        %v1489 = vmul.f32 %v1474, %v1488
        %v1490 = vrcp.pop %v1484
        %v1491 = vmul.f32 %v1476, %v1490
        %v1492 = vrcp.pop %v1487
        %v1493 = vmul.f32 %v1478, %v1492
        %1494 = vrot.lane.b32.xlu0 %v1100, 56
        %v1495 = vpop.permute.xlu0 %1494
        %1496 = vrot.lane.b32.xlu0 %v1105, 56
        %v1497 = vpop.permute.xlu0 %1496
        %1498 = vrot.lane.b32.xlu0 %v1110, 56
        %v1499 = vpop.permute.xlu0 %1498
        %v1504 = vsel %vm1225, %v1489, 0
        %v1507 = vsel %vm1225, %v1491, 0
        %v1510 = vsel %vm1225, %v1493, 0
        %1512 = vmatprep.subr.mxu0 0.0
        %1513 = vmatpush1.msra.mxu0 %v1495
        %1514 = vmatprep.subr.mxu0 0.0
        %1515 = vmatpush1.msra.mxu0 %v1497
        %1516 = vmatprep.subr.mxu0 0.0
        %1517 = vmatpush1.msra.mxu0 %v1499
        %1518 = vmatprep.subr.mxu0 0.0
        %1519 = vmatpush1.msra.mxu0 0.0
        %1520 = vmatprep.subr.mxu0 0.0
        %1521 = vmatpush1.msra.mxu0 0.0
        %1522 = vmatprep.subr.mxu0 0.0
        %1523 = vmatpush1.msra.mxu0 0.0
        %1524 = vmatprep.subr.mxu0 0.0
        %1525 = vmatpush1.msra.mxu0 0.0
        %1526 = vmatprep.subr.mxu0 0.0
        %1527 = vmatpush1.msra.mxu0 0.0
        %1528 = vmatprep.subr.mxu0 0.0
        %1529 = vmatpush1.msra.mxu0 0.0
        %1530 = vmatprep.subr.mxu0 0.0
        %1531 = vmatpush1.msra.mxu0 0.0
        %1532 = vmatprep.subr.mxu0 0.0
        %1533 = vmatpush1.msra.mxu0 0.0
        %1534 = vmatprep.subr.mxu0 0.0
        %1535 = vmatpush1.msra.mxu0 0.0
        %1536 = vmatprep.subr.mxu0 0.0
        %1537 = vmatpush1.msra.mxu0 0.0
        %1538 = vmatprep.subr.mxu0 0.0
        %1539 = vmatpush1.msra.mxu0 0.0
        %1540 = vmatprep.subr.mxu0 0.0
        %1541 = vmatpush1.msra.mxu0 0.0
        %1542 = vmatprep.subr.mxu0 0.0
        %1543 = vmatpush1.msra.mxu0 0.0
        %1544 = vmatprep.subr.mxu0 0.0
        %1545 = vmatpush1.msra.mxu0 0.0
        %1546 = vmatprep.subr.mxu0 0.0
        %1547 = vmatpush1.msra.mxu0 0.0
        %1548 = vmatprep.subr.mxu0 0.0
        %1549 = vmatpush1.msra.mxu0 0.0
        %1550 = vmatprep.subr.mxu0 0.0
        %1551 = vmatpush1.msra.mxu0 0.0
        %1552 = vmatprep.subr.mxu0 0.0
        %1553 = vmatpush1.msra.mxu0 0.0
        %1554 = vmatprep.subr.mxu0 0.0
        %1555 = vmatpush1.msra.mxu0 0.0
        %1556 = vmatprep.subr.mxu0 0.0
        %1557 = vmatpush1.msra.mxu0 0.0
        %1558 = vmatprep.subr.mxu0 0.0
        %1559 = vmatpush1.msra.mxu0 0.0
        %1560 = vmatprep.subr.mxu0 0.0
        %1561 = vmatpush1.msra.mxu0 0.0
        %1562 = vmatprep.subr.mxu0 0.0
        %1563 = vmatpush1.msra.mxu0 0.0
        %1564 = vmatprep.subr.mxu0 0.0
        %1565 = vmatpush1.msra.mxu0 0.0
        %1566 = vmatprep.subr.mxu0 0.0
        %1567 = vmatpush1.msra.mxu0 0.0
        %1568 = vmatprep.subr.mxu0 0.0
        %1569 = vmatpush1.msra.mxu0 0.0
        %1570 = vmatprep.subr.mxu0 0.0
        %1571 = vmatpush1.msra.mxu0 0.0
        %1572 = vmatprep.subr.mxu0 0.0
        %1573 = vmatpush1.msra.mxu0 0.0
        %1574 = vmatprep.subr.mxu0 0.0
        %1575 = vmatpush1.msra.mxu0 0.0
        %1576 = vmatprep.mubr.f32.mxu0 0.0
        %1577 = vmatmul.mubr.f32.gmra.mrb[0].mxu0 %v1504
        %v1578 = vpop.f32.mrb[0].mxu0
        %v1579 = vadd.f32 0.0, %v1578
        %v1580 = vpop.f32.mrb[0].mxu0
        %1581 = vmatprep.mubr.f32.mxu0 0.0
        %1582 = vmatmul.mubr.f32.gmra.mrb[0].mxu0 %v1507
        %v1583 = vpop.f32.mrb[0].mxu0
        %v1584 = vadd.f32 0.0, %v1583
        %v1585 = vpop.f32.mrb[0].mxu0
        %1586 = vmatprep.mubr.f32.mxu0 0.0
        %1587 = vmatmul.mubr.f32.gmra.mrb[0].mxu0 %v1510
        %v1588 = vpop.f32.mrb[0].mxu0
        %v1589 = vadd.f32 0.0, %v1588
        %v1590 = vpop.f32.mrb[0].mxu0
        %1591 = vdwg.mxu0
        %v1593 = vsel %vm1129, %v1579, 0
        %v1596 = vsel %vm1129, %v1584, 0
        %v1599 = vsel %vm1129, %v1589, 0
        %1601 = vmatprep.subr.mxu0 0.0
        %1602 = vmatpush1.msra.mxu0 %v1114
        %1603 = vmatprep.subr.mxu0 0.0
        %1604 = vmatpush1.msra.mxu0 0.0
        %1605 = vmatprep.subr.mxu0 0.0
        %1606 = vmatpush1.msra.mxu0 0.0
        %1607 = vmatprep.subr.mxu0 0.0
        %1608 = vmatpush1.msra.mxu0 0.0
        %1609 = vmatprep.subr.mxu0 0.0
        %1610 = vmatpush1.msra.mxu0 0.0
        %1611 = vmatprep.subr.mxu0 0.0
        %1612 = vmatpush1.msra.mxu0 0.0
        %1613 = vmatprep.subr.mxu0 0.0
        %1614 = vmatpush1.msra.mxu0 0.0
        %1615 = vmatprep.subr.mxu0 0.0
        %1616 = vmatpush1.msra.mxu0 0.0
        %1617 = vmatprep.subr.mxu0 0.0
        %1618 = vmatpush1.msra.mxu0 0.0
        %1619 = vmatprep.subr.mxu0 0.0
        %1620 = vmatpush1.msra.mxu0 0.0
        %1621 = vmatprep.subr.mxu0 0.0
        %1622 = vmatpush1.msra.mxu0 0.0
        %1623 = vmatprep.subr.mxu0 0.0
        %1624 = vmatpush1.msra.mxu0 0.0
        %1625 = vmatprep.subr.mxu0 0.0
        %1626 = vmatpush1.msra.mxu0 0.0
        %1627 = vmatprep.subr.mxu0 0.0
        %1628 = vmatpush1.msra.mxu0 0.0
        %1629 = vmatprep.subr.mxu0 0.0
        %1630 = vmatpush1.msra.mxu0 0.0
        %1631 = vmatprep.subr.mxu0 0.0
        %1632 = vmatpush1.msra.mxu0 0.0
        %1633 = vmatprep.subr.mxu0 0.0
        %1634 = vmatpush1.msra.mxu0 0.0
        %1635 = vmatprep.subr.mxu0 0.0
        %1636 = vmatpush1.msra.mxu0 0.0
        %1637 = vmatprep.subr.mxu0 0.0
        %1638 = vmatpush1.msra.mxu0 0.0
        %1639 = vmatprep.subr.mxu0 0.0
        %1640 = vmatpush1.msra.mxu0 0.0
        %1641 = vmatprep.subr.mxu0 0.0
        %1642 = vmatpush1.msra.mxu0 0.0
        %1643 = vmatprep.subr.mxu0 0.0
        %1644 = vmatpush1.msra.mxu0 0.0
        %1645 = vmatprep.subr.mxu0 0.0
        %1646 = vmatpush1.msra.mxu0 0.0
        %1647 = vmatprep.subr.mxu0 0.0
        %1648 = vmatpush1.msra.mxu0 0.0
        %1649 = vmatprep.subr.mxu0 0.0
        %1650 = vmatpush1.msra.mxu0 0.0
        %1651 = vmatprep.subr.mxu0 0.0
        %1652 = vmatpush1.msra.mxu0 0.0
        %1653 = vmatprep.subr.mxu0 0.0
        %1654 = vmatpush1.msra.mxu0 0.0
        %1655 = vmatprep.subr.mxu0 0.0
        %1656 = vmatpush1.msra.mxu0 0.0
        %1657 = vmatprep.subr.mxu0 0.0
        %1658 = vmatpush1.msra.mxu0 0.0
        %1659 = vmatprep.subr.mxu0 0.0
        %1660 = vmatpush1.msra.mxu0 0.0
        %1661 = vmatprep.subr.mxu0 0.0
        %1662 = vmatpush1.msra.mxu0 0.0
        %1663 = vmatprep.subr.mxu0 0.0
        %1664 = vmatpush1.msra.mxu0 0.0
        %1665 = vmatprep.mubr.f32.mxu0 0.0
        %1666 = vmatmul.mubr.f32.gmra.mrb[0].mxu0 %v1593
        %v1667 = vpop.f32.mrb[0].mxu0
        %v1668 = vadd.f32 0.0, %v1667
        %v1669 = vpop.f32.mrb[0].mxu0
        %1670 = vmatprep.mubr.f32.mxu0 0.0
        %1671 = vmatmul.mubr.f32.gmra.mrb[0].mxu0 %v1596
        %v1672 = vpop.f32.mrb[0].mxu0
        %v1673 = vadd.f32 0.0, %v1672
        %v1674 = vpop.f32.mrb[0].mxu0
        %1675 = vmatprep.mubr.f32.mxu0 0.0
        %1676 = vmatmul.mubr.f32.gmra.mrb[0].mxu0 %v1599
        %v1677 = vpop.f32.mrb[0].mxu0
        %v1678 = vadd.f32 0.0, %v1677
        %v1679 = vpop.f32.mrb[0].mxu0
        %1680 = vdwg.mxu0
        %v1682 = vsel %vm1129, %v1344, 0
        %v1685 = vsel %vm1129, %v1349, 0
        %v1688 = vsel %vm1129, %v1354, 0
        %1690 = vmatprep.subr.mxu0 0.0
        %1691 = vmatpush1.msra.mxu0 %v1113
        %1692 = vmatprep.subr.mxu0 0.0
        %1693 = vmatpush1.msra.mxu0 0.0
        %1694 = vmatprep.subr.mxu0 0.0
        %1695 = vmatpush1.msra.mxu0 0.0
        %1696 = vmatprep.subr.mxu0 0.0
        %1697 = vmatpush1.msra.mxu0 0.0
        %1698 = vmatprep.subr.mxu0 0.0
        %1699 = vmatpush1.msra.mxu0 0.0
        %1700 = vmatprep.subr.mxu0 0.0
        %1701 = vmatpush1.msra.mxu0 0.0
        %1702 = vmatprep.subr.mxu0 0.0
        %1703 = vmatpush1.msra.mxu0 0.0
        %1704 = vmatprep.subr.mxu0 0.0
        %1705 = vmatpush1.msra.mxu0 0.0
        %1706 = vmatprep.subr.mxu0 0.0
        %1707 = vmatpush1.msra.mxu0 0.0
        %1708 = vmatprep.subr.mxu0 0.0
        %1709 = vmatpush1.msra.mxu0 0.0
        %1710 = vmatprep.subr.mxu0 0.0
        %1711 = vmatpush1.msra.mxu0 0.0
        %1712 = vmatprep.subr.mxu0 0.0
        %1713 = vmatpush1.msra.mxu0 0.0
        %1714 = vmatprep.subr.mxu0 0.0
        %1715 = vmatpush1.msra.mxu0 0.0
        %1716 = vmatprep.subr.mxu0 0.0
        %1717 = vmatpush1.msra.mxu0 0.0
        %1718 = vmatprep.subr.mxu0 0.0
        %1719 = vmatpush1.msra.mxu0 0.0
        %1720 = vmatprep.subr.mxu0 0.0
        %1721 = vmatpush1.msra.mxu0 0.0
        %1722 = vmatprep.subr.mxu0 0.0
        %1723 = vmatpush1.msra.mxu0 0.0
        %1724 = vmatprep.subr.mxu0 0.0
        %1725 = vmatpush1.msra.mxu0 0.0
        %1726 = vmatprep.subr.mxu0 0.0
        %1727 = vmatpush1.msra.mxu0 0.0
        %1728 = vmatprep.subr.mxu0 0.0
        %1729 = vmatpush1.msra.mxu0 0.0
        %1730 = vmatprep.subr.mxu0 0.0
        %1731 = vmatpush1.msra.mxu0 0.0
        %1732 = vmatprep.subr.mxu0 0.0
        %1733 = vmatpush1.msra.mxu0 0.0
        %1734 = vmatprep.subr.mxu0 0.0
        %1735 = vmatpush1.msra.mxu0 0.0
        %1736 = vmatprep.subr.mxu0 0.0
        %1737 = vmatpush1.msra.mxu0 0.0
        %1738 = vmatprep.subr.mxu0 0.0
        %1739 = vmatpush1.msra.mxu0 0.0
        %1740 = vmatprep.subr.mxu0 0.0
        %1741 = vmatpush1.msra.mxu0 0.0
        %1742 = vmatprep.subr.mxu0 0.0
        %1743 = vmatpush1.msra.mxu0 0.0
        %1744 = vmatprep.subr.mxu0 0.0
        %1745 = vmatpush1.msra.mxu0 0.0
        %1746 = vmatprep.subr.mxu0 0.0
        %1747 = vmatpush1.msra.mxu0 0.0
        %1748 = vmatprep.subr.mxu0 0.0
        %1749 = vmatpush1.msra.mxu0 0.0
        %1750 = vmatprep.subr.mxu0 0.0
        %1751 = vmatpush1.msra.mxu0 0.0
        %1752 = vmatprep.subr.mxu0 0.0
        %1753 = vmatpush1.msra.mxu0 0.0
        %1754 = vmatprep.mubr.f32.mxu0 0.0
        %1755 = vmatmul.mubr.f32.gmra.mrb[0].mxu0 %v1682
        %v1756 = vpop.f32.mrb[0].mxu0
        %v1757 = vadd.f32 %v1668, %v1756
        %v1758 = vpop.f32.mrb[0].mxu0
        %1759 = vmatprep.mubr.f32.mxu0 0.0
        %1760 = vmatmul.mubr.f32.gmra.mrb[0].mxu0 %v1685
        %v1761 = vpop.f32.mrb[0].mxu0
        %v1762 = vadd.f32 %v1673, %v1761
        %v1763 = vpop.f32.mrb[0].mxu0
        %1764 = vmatprep.mubr.f32.mxu0 0.0
        %1765 = vmatmul.mubr.f32.gmra.mrb[0].mxu0 %v1688
        %v1766 = vpop.f32.mrb[0].mxu0
        %v1767 = vadd.f32 %v1678, %v1766
        %v1768 = vpop.f32.mrb[0].mxu0
        %1769 = vdwg.mxu0
        %1770 = vrot.lane.b32.xlu0 %v1117, 112
        %v1771 = vpop.permute.xlu0 %1770
        %1772 = vrot.lane.b32.xlu0 %v1118, 112
        %v1773 = vpop.permute.xlu0 %1772
        %1774 = vrot.lane.b32.xlu0 %v1119, 112
        %v1775 = vpop.permute.xlu0 %1774
        %1776 = vrot.lane.b32.xlu0 %v1100, 80
        %v1777 = vpop.permute.xlu0 %1776
        %1778 = vrot.lane.b32.xlu0 %v1105, 80
        %v1779 = vpop.permute.xlu0 %1778
        %1780 = vrot.lane.b32.xlu0 %v1110, 80
        %v1781 = vpop.permute.xlu0 %1780
        %v1782 = vsel %vm1129, %v1771, 0
        %v1784 = vsel %vm1129, %v1773, 0
        %v1786 = vsel %vm1129, %v1775, 0
        %v1788 = vsel %vm1129, %v1777, 0
        %v1790 = vsel %vm1129, %v1779, 0
        %v1792 = vsel %vm1129, %v1781, 0
        %1794 = vmatprep.subr.mxu0 0.0
        %1795 = vmatpush1.xpose.msra.mxu0 %v1788
        %1796 = vmatprep.subr.mxu0 0.0
        %1797 = vmatpush1.xpose.msra.mxu0 %v1790
        %1798 = vmatprep.subr.mxu0 0.0
        %1799 = vmatpush1.xpose.msra.mxu0 %v1792
        %1800 = vmatprep.subr.mxu0 0.0
        %1801 = vmatpush1.xpose.msra.mxu0 0.0
        %1802 = vmatprep.subr.mxu0 0.0
        %1803 = vmatpush1.xpose.msra.mxu0 0.0
        %1804 = vmatprep.subr.mxu0 0.0
        %1805 = vmatpush1.xpose.msra.mxu0 0.0
        %1806 = vmatprep.subr.mxu0 0.0
        %1807 = vmatpush1.xpose.msra.mxu0 0.0
        %1808 = vmatprep.subr.mxu0 0.0
        %1809 = vmatpush1.xpose.msra.mxu0 0.0
        %1810 = vmatprep.subr.mxu0 0.0
        %1811 = vmatpush1.xpose.msra.mxu0 0.0
        %1812 = vmatprep.subr.mxu0 0.0
        %1813 = vmatpush1.xpose.msra.mxu0 0.0
        %1814 = vmatprep.subr.mxu0 0.0
        %1815 = vmatpush1.xpose.msra.mxu0 0.0
        %1816 = vmatprep.subr.mxu0 0.0
        %1817 = vmatpush1.xpose.msra.mxu0 0.0
        %1818 = vmatprep.subr.mxu0 0.0
        %1819 = vmatpush1.xpose.msra.mxu0 0.0
        %1820 = vmatprep.subr.mxu0 0.0
        %1821 = vmatpush1.xpose.msra.mxu0 0.0
        %1822 = vmatprep.subr.mxu0 0.0
        %1823 = vmatpush1.xpose.msra.mxu0 0.0
        %1824 = vmatprep.subr.mxu0 0.0
        %1825 = vmatpush1.xpose.msra.mxu0 0.0
        %1826 = vmatprep.subr.mxu0 0.0
        %1827 = vmatpush1.xpose.msra.mxu0 0.0
        %1828 = vmatprep.subr.mxu0 0.0
        %1829 = vmatpush1.xpose.msra.mxu0 0.0
        %1830 = vmatprep.subr.mxu0 0.0
        %1831 = vmatpush1.xpose.msra.mxu0 0.0
        %1832 = vmatprep.subr.mxu0 0.0
        %1833 = vmatpush1.xpose.msra.mxu0 0.0
        %1834 = vmatprep.subr.mxu0 0.0
        %1835 = vmatpush1.xpose.msra.mxu0 0.0
        %1836 = vmatprep.subr.mxu0 0.0
        %1837 = vmatpush1.xpose.msra.mxu0 0.0
        %1838 = vmatprep.subr.mxu0 0.0
        %1839 = vmatpush1.xpose.msra.mxu0 0.0
        %1840 = vmatprep.subr.mxu0 0.0
        %1841 = vmatpush1.xpose.msra.mxu0 0.0
        %1842 = vmatprep.subr.mxu0 0.0
        %1843 = vmatpush1.xpose.msra.mxu0 0.0
        %1844 = vmatprep.subr.mxu0 0.0
        %1845 = vmatpush1.xpose.msra.mxu0 0.0
        %1846 = vmatprep.subr.mxu0 0.0
        %1847 = vmatpush1.xpose.msra.mxu0 0.0
        %1848 = vmatprep.subr.mxu0 0.0
        %1849 = vmatpush1.xpose.msra.mxu0 0.0
        %1850 = vmatprep.subr.mxu0 0.0
        %1851 = vmatpush1.xpose.msra.mxu0 0.0
        %1852 = vmatprep.subr.mxu0 0.0
        %1853 = vmatpush1.xpose.msra.mxu0 0.0
        %1854 = vmatprep.subr.mxu0 0.0
        %1855 = vmatpush1.xpose.msra.mxu0 0.0
        %1856 = vmatprep.subr.mxu0 0.0
        %1857 = vmatpush1.xpose.msra.mxu0 0.0
        %1858 = vmatprep.mubr.f32.mxu0 0.0
        %1859 = vmatmul.mubr.f32.gmra.mrb[0].mxu0 %v1782
        %v1860 = vpop.f32.mrb[0].mxu0
        %v1861 = vadd.f32 %v919, %v1860
        %v1862 = vpop.f32.mrb[0].mxu0
        %1863 = vmatprep.mubr.f32.mxu0 0.0
        %1864 = vmatmul.mubr.f32.gmra.mrb[0].mxu0 %v1784
        %v1865 = vpop.f32.mrb[0].mxu0
        %v1866 = vadd.f32 %v920, %v1865
        %v1867 = vpop.f32.mrb[0].mxu0
        %1868 = vmatprep.mubr.f32.mxu0 0.0
        %1869 = vmatmul.mubr.f32.gmra.mrb[0].mxu0 %v1786
        %v1870 = vpop.f32.mrb[0].mxu0
        %v1871 = vadd.f32 %v921, %v1870
        %v1872 = vpop.f32.mrb[0].mxu0
        %1873 = vdwg.mxu0
        %v1874 = vsel %vm1225, %v1861, -inf
        %1875 = vmax.xlane.f32.xlu0 %v1874
        %v1876 = vpop.xlane.xlu0 %1875
        %v1877 = vsel %vm1225, %v1866, -inf
        %1878 = vmax.xlane.f32.xlu0 %v1877
        %v1879 = vpop.xlane.xlu0 %1878
        %v1880 = vsel %vm1225, %v1871, -inf
        %1881 = vmax.xlane.f32.xlu0 %v1880
        %v1882 = vpop.xlane.xlu0 %1881
        %v1883 = vsub.f32 %v1861, %v1876
        %v1884 = vsub.f32 %v1866, %v1879
        %v1885 = vsub.f32 %v1871, %v1882
        %v1886 = vmul.f32 %v1883, 1.442695
        %v1887 = vpow.pop %v1886
        %v1888 = vmul.f32 %v1884, 1.442695
        %v1889 = vpow.pop %v1888
        %v1890 = vmul.f32 %v1885, 1.442695
        %v1891 = vpow.pop %v1890
        %v1892 = vsel %vm1225, %v1887, 0.0
        %1893 = vadd.xlane.f32.xlu0 %v1892
        %v1894 = vpop.xlane.xlu0 %1893
        %v1895 = vsel %vm1225, %v1889, 0.0
        %1896 = vadd.xlane.f32.xlu0 %v1895
        %v1897 = vpop.xlane.xlu0 %1896
        %v1898 = vsel %vm1225, %v1891, 0.0
        %1899 = vadd.xlane.f32.xlu0 %v1898
        %v1900 = vpop.xlane.xlu0 %1899
        %v1901 = vrcp.pop %v1894
        %v1902 = vmul.f32 %v1887, %v1901
        %v1903 = vrcp.pop %v1897
        %v1904 = vmul.f32 %v1889, %v1903
        %v1905 = vrcp.pop %v1900
        %v1906 = vmul.f32 %v1891, %v1905
        %1907 = vrot.lane.b32.xlu0 %v1100, 48
        %v1908 = vpop.permute.xlu0 %1907
        %1909 = vrot.lane.b32.xlu0 %v1105, 48
        %v1910 = vpop.permute.xlu0 %1909
        %1911 = vrot.lane.b32.xlu0 %v1110, 48
        %v1912 = vpop.permute.xlu0 %1911
        %v1917 = vsel %vm1225, %v1902, 0
        %v1920 = vsel %vm1225, %v1904, 0
        %v1923 = vsel %vm1225, %v1906, 0
        %1925 = vmatprep.subr.mxu0 0.0
        %1926 = vmatpush1.msra.mxu0 %v1908
        %1927 = vmatprep.subr.mxu0 0.0
        %1928 = vmatpush1.msra.mxu0 %v1910
        %1929 = vmatprep.subr.mxu0 0.0
        %1930 = vmatpush1.msra.mxu0 %v1912
        %1931 = vmatprep.subr.mxu0 0.0
        %1932 = vmatpush1.msra.mxu0 0.0
        %1933 = vmatprep.subr.mxu0 0.0
        %1934 = vmatpush1.msra.mxu0 0.0
        %1935 = vmatprep.subr.mxu0 0.0
        %1936 = vmatpush1.msra.mxu0 0.0
        %1937 = vmatprep.subr.mxu0 0.0
        %1938 = vmatpush1.msra.mxu0 0.0
        %1939 = vmatprep.subr.mxu0 0.0
        %1940 = vmatpush1.msra.mxu0 0.0
        %1941 = vmatprep.subr.mxu0 0.0
        %1942 = vmatpush1.msra.mxu0 0.0
        %1943 = vmatprep.subr.mxu0 0.0
        %1944 = vmatpush1.msra.mxu0 0.0
        %1945 = vmatprep.subr.mxu0 0.0
        %1946 = vmatpush1.msra.mxu0 0.0
        %1947 = vmatprep.subr.mxu0 0.0
        %1948 = vmatpush1.msra.mxu0 0.0
        %1949 = vmatprep.subr.mxu0 0.0
        %1950 = vmatpush1.msra.mxu0 0.0
        %1951 = vmatprep.subr.mxu0 0.0
        %1952 = vmatpush1.msra.mxu0 0.0
        %1953 = vmatprep.subr.mxu0 0.0
        %1954 = vmatpush1.msra.mxu0 0.0
        %1955 = vmatprep.subr.mxu0 0.0
        %1956 = vmatpush1.msra.mxu0 0.0
        %1957 = vmatprep.subr.mxu0 0.0
        %1958 = vmatpush1.msra.mxu0 0.0
        %1959 = vmatprep.subr.mxu0 0.0
        %1960 = vmatpush1.msra.mxu0 0.0
        %1961 = vmatprep.subr.mxu0 0.0
        %1962 = vmatpush1.msra.mxu0 0.0
        %1963 = vmatprep.subr.mxu0 0.0
        %1964 = vmatpush1.msra.mxu0 0.0
        %1965 = vmatprep.subr.mxu0 0.0
        %1966 = vmatpush1.msra.mxu0 0.0
        %1967 = vmatprep.subr.mxu0 0.0
        %1968 = vmatpush1.msra.mxu0 0.0
        %1969 = vmatprep.subr.mxu0 0.0
        %1970 = vmatpush1.msra.mxu0 0.0
        %1971 = vmatprep.subr.mxu0 0.0
        %1972 = vmatpush1.msra.mxu0 0.0
        %1973 = vmatprep.subr.mxu0 0.0
        %1974 = vmatpush1.msra.mxu0 0.0
        %1975 = vmatprep.subr.mxu0 0.0
        %1976 = vmatpush1.msra.mxu0 0.0
        %1977 = vmatprep.subr.mxu0 0.0
        %1978 = vmatpush1.msra.mxu0 0.0
        %1979 = vmatprep.subr.mxu0 0.0
        %1980 = vmatpush1.msra.mxu0 0.0
        %1981 = vmatprep.subr.mxu0 0.0
        %1982 = vmatpush1.msra.mxu0 0.0
        %1983 = vmatprep.subr.mxu0 0.0
        %1984 = vmatpush1.msra.mxu0 0.0
        %1985 = vmatprep.subr.mxu0 0.0
        %1986 = vmatpush1.msra.mxu0 0.0
        %1987 = vmatprep.subr.mxu0 0.0
        %1988 = vmatpush1.msra.mxu0 0.0
        %1989 = vmatprep.mubr.f32.mxu0 0.0
        %1990 = vmatmul.mubr.f32.gmra.mrb[0].mxu0 %v1917
        %v1991 = vpop.f32.mrb[0].mxu0
        %v1992 = vadd.f32 0.0, %v1991
        %v1993 = vpop.f32.mrb[0].mxu0
        %1994 = vmatprep.mubr.f32.mxu0 0.0
        %1995 = vmatmul.mubr.f32.gmra.mrb[0].mxu0 %v1920
        %v1996 = vpop.f32.mrb[0].mxu0
        %v1997 = vadd.f32 0.0, %v1996
        %v1998 = vpop.f32.mrb[0].mxu0
        %1999 = vmatprep.mubr.f32.mxu0 0.0
        %2000 = vmatmul.mubr.f32.gmra.mrb[0].mxu0 %v1923
        %v2001 = vpop.f32.mrb[0].mxu0
        %v2002 = vadd.f32 0.0, %v2001
        %v2003 = vpop.f32.mrb[0].mxu0
        %2004 = vdwg.mxu0
        %v2006 = vsel %vm1129, %v1992, 0
        %v2009 = vsel %vm1129, %v1997, 0
        %v2012 = vsel %vm1129, %v2002, 0
        %2014 = vmatprep.subr.mxu0 0.0
        %2015 = vmatpush1.msra.mxu0 %v1115
        %2016 = vmatprep.subr.mxu0 0.0
        %2017 = vmatpush1.msra.mxu0 0.0
        %2018 = vmatprep.subr.mxu0 0.0
        %2019 = vmatpush1.msra.mxu0 0.0
        %2020 = vmatprep.subr.mxu0 0.0
        %2021 = vmatpush1.msra.mxu0 0.0
        %2022 = vmatprep.subr.mxu0 0.0
        %2023 = vmatpush1.msra.mxu0 0.0
        %2024 = vmatprep.subr.mxu0 0.0
        %2025 = vmatpush1.msra.mxu0 0.0
        %2026 = vmatprep.subr.mxu0 0.0
        %2027 = vmatpush1.msra.mxu0 0.0
        %2028 = vmatprep.subr.mxu0 0.0
        %2029 = vmatpush1.msra.mxu0 0.0
        %2030 = vmatprep.subr.mxu0 0.0
        %2031 = vmatpush1.msra.mxu0 0.0
        %2032 = vmatprep.subr.mxu0 0.0
        %2033 = vmatpush1.msra.mxu0 0.0
        %2034 = vmatprep.subr.mxu0 0.0
        %2035 = vmatpush1.msra.mxu0 0.0
        %2036 = vmatprep.subr.mxu0 0.0
        %2037 = vmatpush1.msra.mxu0 0.0
        %2038 = vmatprep.subr.mxu0 0.0
        %2039 = vmatpush1.msra.mxu0 0.0
        %2040 = vmatprep.subr.mxu0 0.0
        %2041 = vmatpush1.msra.mxu0 0.0
        %2042 = vmatprep.subr.mxu0 0.0
        %2043 = vmatpush1.msra.mxu0 0.0
        %2044 = vmatprep.subr.mxu0 0.0
        %2045 = vmatpush1.msra.mxu0 0.0
        %2046 = vmatprep.subr.mxu0 0.0
        %2047 = vmatpush1.msra.mxu0 0.0
        %2048 = vmatprep.subr.mxu0 0.0
        %2049 = vmatpush1.msra.mxu0 0.0
        %2050 = vmatprep.subr.mxu0 0.0
        %2051 = vmatpush1.msra.mxu0 0.0
        %2052 = vmatprep.subr.mxu0 0.0
        %2053 = vmatpush1.msra.mxu0 0.0
        %2054 = vmatprep.subr.mxu0 0.0
        %2055 = vmatpush1.msra.mxu0 0.0
        %2056 = vmatprep.subr.mxu0 0.0
        %2057 = vmatpush1.msra.mxu0 0.0
        %2058 = vmatprep.subr.mxu0 0.0
        %2059 = vmatpush1.msra.mxu0 0.0
        %2060 = vmatprep.subr.mxu0 0.0
        %2061 = vmatpush1.msra.mxu0 0.0
        %2062 = vmatprep.subr.mxu0 0.0
        %2063 = vmatpush1.msra.mxu0 0.0
        %2064 = vmatprep.subr.mxu0 0.0
        %2065 = vmatpush1.msra.mxu0 0.0
        %2066 = vmatprep.subr.mxu0 0.0
        %2067 = vmatpush1.msra.mxu0 0.0
        %2068 = vmatprep.subr.mxu0 0.0
        %2069 = vmatpush1.msra.mxu0 0.0
        %2070 = vmatprep.subr.mxu0 0.0
        %2071 = vmatpush1.msra.mxu0 0.0
        %2072 = vmatprep.subr.mxu0 0.0
        %2073 = vmatpush1.msra.mxu0 0.0
        %2074 = vmatprep.subr.mxu0 0.0
        %2075 = vmatpush1.msra.mxu0 0.0
        %2076 = vmatprep.subr.mxu0 0.0
        %2077 = vmatpush1.msra.mxu0 0.0
        %2078 = vmatprep.mubr.f32.mxu0 0.0
        %2079 = vmatmul.mubr.f32.gmra.mrb[0].mxu0 %v2006
        %v2080 = vpop.f32.mrb[0].mxu0
        %v2081 = vadd.f32 0.0, %v2080
        %v2082 = vpop.f32.mrb[0].mxu0
        %2083 = vmatprep.mubr.f32.mxu0 0.0
        %2084 = vmatmul.mubr.f32.gmra.mrb[0].mxu0 %v2009
        %v2085 = vpop.f32.mrb[0].mxu0
        %v2086 = vadd.f32 0.0, %v2085
        %v2087 = vpop.f32.mrb[0].mxu0
        %2088 = vmatprep.mubr.f32.mxu0 0.0
        %2089 = vmatmul.mubr.f32.gmra.mrb[0].mxu0 %v2012
        %v2090 = vpop.f32.mrb[0].mxu0
        %v2091 = vadd.f32 0.0, %v2090
        %v2092 = vpop.f32.mrb[0].mxu0
        %2093 = vdwg.mxu0
        %v2094 = vadd.f32 %v1757, %v2081
        %v2095 = vadd.f32 %v1762, %v2086
        %v2096 = vadd.f32 %v1767, %v2091
        %2097 = vrot.lane.b32.xlu0 %v1117, 104
        %v2098 = vpop.permute.xlu0 %2097
        %2099 = vrot.lane.b32.xlu0 %v1118, 104
        %v2100 = vpop.permute.xlu0 %2099
        %2101 = vrot.lane.b32.xlu0 %v1119, 104
        %v2102 = vpop.permute.xlu0 %2101
        %2103 = vrot.lane.b32.xlu0 %v1100, 72
        %v2104 = vpop.permute.xlu0 %2103
        %2105 = vrot.lane.b32.xlu0 %v1105, 72
        %v2106 = vpop.permute.xlu0 %2105
        %2107 = vrot.lane.b32.xlu0 %v1110, 72
        %v2108 = vpop.permute.xlu0 %2107
        %v2109 = vsel %vm1129, %v2098, 0
        %v2111 = vsel %vm1129, %v2100, 0
        %v2113 = vsel %vm1129, %v2102, 0
        %v2115 = vsel %vm1129, %v2104, 0
        %v2117 = vsel %vm1129, %v2106, 0
        %v2119 = vsel %vm1129, %v2108, 0
        %2121 = vmatprep.subr.mxu0 0.0
        %2122 = vmatpush1.xpose.msra.mxu0 %v2115
        %2123 = vmatprep.subr.mxu0 0.0
        %2124 = vmatpush1.xpose.msra.mxu0 %v2117
        %2125 = vmatprep.subr.mxu0 0.0
        %2126 = vmatpush1.xpose.msra.mxu0 %v2119
        %2127 = vmatprep.subr.mxu0 0.0
        %2128 = vmatpush1.xpose.msra.mxu0 0.0
        %2129 = vmatprep.subr.mxu0 0.0
        %2130 = vmatpush1.xpose.msra.mxu0 0.0
        %2131 = vmatprep.subr.mxu0 0.0
        %2132 = vmatpush1.xpose.msra.mxu0 0.0
        %2133 = vmatprep.subr.mxu0 0.0
        %2134 = vmatpush1.xpose.msra.mxu0 0.0
        %2135 = vmatprep.subr.mxu0 0.0
        %2136 = vmatpush1.xpose.msra.mxu0 0.0
        %2137 = vmatprep.subr.mxu0 0.0
        %2138 = vmatpush1.xpose.msra.mxu0 0.0
        %2139 = vmatprep.subr.mxu0 0.0
        %2140 = vmatpush1.xpose.msra.mxu0 0.0
        %2141 = vmatprep.subr.mxu0 0.0
        %2142 = vmatpush1.xpose.msra.mxu0 0.0
        %2143 = vmatprep.subr.mxu0 0.0
        %2144 = vmatpush1.xpose.msra.mxu0 0.0
        %2145 = vmatprep.subr.mxu0 0.0
        %2146 = vmatpush1.xpose.msra.mxu0 0.0
        %2147 = vmatprep.subr.mxu0 0.0
        %2148 = vmatpush1.xpose.msra.mxu0 0.0
        %2149 = vmatprep.subr.mxu0 0.0
        %2150 = vmatpush1.xpose.msra.mxu0 0.0
        %2151 = vmatprep.subr.mxu0 0.0
        %2152 = vmatpush1.xpose.msra.mxu0 0.0
        %2153 = vmatprep.subr.mxu0 0.0
        %2154 = vmatpush1.xpose.msra.mxu0 0.0
        %2155 = vmatprep.subr.mxu0 0.0
        %2156 = vmatpush1.xpose.msra.mxu0 0.0
        %2157 = vmatprep.subr.mxu0 0.0
        %2158 = vmatpush1.xpose.msra.mxu0 0.0
        %2159 = vmatprep.subr.mxu0 0.0
        %2160 = vmatpush1.xpose.msra.mxu0 0.0
        %2161 = vmatprep.subr.mxu0 0.0
        %2162 = vmatpush1.xpose.msra.mxu0 0.0
        %2163 = vmatprep.subr.mxu0 0.0
        %2164 = vmatpush1.xpose.msra.mxu0 0.0
        %2165 = vmatprep.subr.mxu0 0.0
        %2166 = vmatpush1.xpose.msra.mxu0 0.0
        %2167 = vmatprep.subr.mxu0 0.0
        %2168 = vmatpush1.xpose.msra.mxu0 0.0
        %2169 = vmatprep.subr.mxu0 0.0
        %2170 = vmatpush1.xpose.msra.mxu0 0.0
        %2171 = vmatprep.subr.mxu0 0.0
        %2172 = vmatpush1.xpose.msra.mxu0 0.0
        %2173 = vmatprep.subr.mxu0 0.0
        %2174 = vmatpush1.xpose.msra.mxu0 0.0
        %2175 = vmatprep.subr.mxu0 0.0
        %2176 = vmatpush1.xpose.msra.mxu0 0.0
        %2177 = vmatprep.subr.mxu0 0.0
        %2178 = vmatpush1.xpose.msra.mxu0 0.0
        %2179 = vmatprep.subr.mxu0 0.0
        %2180 = vmatpush1.xpose.msra.mxu0 0.0
        %2181 = vmatprep.subr.mxu0 0.0
        %2182 = vmatpush1.xpose.msra.mxu0 0.0
        %2183 = vmatprep.subr.mxu0 0.0
        %2184 = vmatpush1.xpose.msra.mxu0 0.0
        %2185 = vmatprep.mubr.f32.mxu0 0.0
        %2186 = vmatmul.mubr.f32.gmra.mrb[0].mxu0 %v2109
        %v2187 = vpop.f32.mrb[0].mxu0
        %v2188 = vadd.f32 %v919, %v2187
        %v2189 = vpop.f32.mrb[0].mxu0
        %2190 = vmatprep.mubr.f32.mxu0 0.0
        %2191 = vmatmul.mubr.f32.gmra.mrb[0].mxu0 %v2111
        %v2192 = vpop.f32.mrb[0].mxu0
        %v2193 = vadd.f32 %v920, %v2192
        %v2194 = vpop.f32.mrb[0].mxu0
        %2195 = vmatprep.mubr.f32.mxu0 0.0
        %2196 = vmatmul.mubr.f32.gmra.mrb[0].mxu0 %v2113
        %v2197 = vpop.f32.mrb[0].mxu0
        %v2198 = vadd.f32 %v921, %v2197
        %v2199 = vpop.f32.mrb[0].mxu0
        %2200 = vdwg.mxu0
        %v2201 = vsel %vm1225, %v2188, -inf
        %2202 = vmax.xlane.f32.xlu0 %v2201
        %v2203 = vpop.xlane.xlu0 %2202
        %v2204 = vsel %vm1225, %v2193, -inf
        %2205 = vmax.xlane.f32.xlu0 %v2204
        %v2206 = vpop.xlane.xlu0 %2205
        %v2207 = vsel %vm1225, %v2198, -inf
        %2208 = vmax.xlane.f32.xlu0 %v2207
        %v2209 = vpop.xlane.xlu0 %2208
        %v2210 = vsub.f32 %v2188, %v2203
        %v2211 = vsub.f32 %v2193, %v2206
        %v2212 = vsub.f32 %v2198, %v2209
        %v2213 = vmul.f32 %v2210, 1.442695
        %v2214 = vpow.pop %v2213
        %v2215 = vmul.f32 %v2211, 1.442695
        %v2216 = vpow.pop %v2215
        %v2217 = vmul.f32 %v2212, 1.442695
        %v2218 = vpow.pop %v2217
        %v2219 = vsel %vm1225, %v2214, 0.0
        %2220 = vadd.xlane.f32.xlu0 %v2219
        %v2221 = vpop.xlane.xlu0 %2220
        %v2222 = vsel %vm1225, %v2216, 0.0
        %2223 = vadd.xlane.f32.xlu0 %v2222
        %v2224 = vpop.xlane.xlu0 %2223
        %v2225 = vsel %vm1225, %v2218, 0.0
        %2226 = vadd.xlane.f32.xlu0 %v2225
        %v2227 = vpop.xlane.xlu0 %2226
        %v2228 = vrcp.pop %v2221
        %v2229 = vmul.f32 %v2214, %v2228
        %v2230 = vrcp.pop %v2224
        %v2231 = vmul.f32 %v2216, %v2230
        %v2232 = vrcp.pop %v2227
        %v2233 = vmul.f32 %v2218, %v2232
        %2234 = vrot.lane.b32.xlu0 %v1100, 40
        %v2235 = vpop.permute.xlu0 %2234
        %2236 = vrot.lane.b32.xlu0 %v1105, 40
        %v2237 = vpop.permute.xlu0 %2236
        %2238 = vrot.lane.b32.xlu0 %v1110, 40
        %v2239 = vpop.permute.xlu0 %2238
        %v2244 = vsel %vm1225, %v2229, 0
        %v2247 = vsel %vm1225, %v2231, 0
        %v2250 = vsel %vm1225, %v2233, 0
        %2252 = vmatprep.subr.mxu0 0.0
        %2253 = vmatpush1.msra.mxu0 %v2235
        %2254 = vmatprep.subr.mxu0 0.0
        %2255 = vmatpush1.msra.mxu0 %v2237
        %2256 = vmatprep.subr.mxu0 0.0
        %2257 = vmatpush1.msra.mxu0 %v2239
        %2258 = vmatprep.subr.mxu0 0.0
        %2259 = vmatpush1.msra.mxu0 0.0
        %2260 = vmatprep.subr.mxu0 0.0
        %2261 = vmatpush1.msra.mxu0 0.0
        %2262 = vmatprep.subr.mxu0 0.0
        %2263 = vmatpush1.msra.mxu0 0.0
        %2264 = vmatprep.subr.mxu0 0.0
        %2265 = vmatpush1.msra.mxu0 0.0
        %2266 = vmatprep.subr.mxu0 0.0
        %2267 = vmatpush1.msra.mxu0 0.0
        %2268 = vmatprep.subr.mxu0 0.0
        %2269 = vmatpush1.msra.mxu0 0.0
        %2270 = vmatprep.subr.mxu0 0.0
        %2271 = vmatpush1.msra.mxu0 0.0
        %2272 = vmatprep.subr.mxu0 0.0
        %2273 = vmatpush1.msra.mxu0 0.0
        %2274 = vmatprep.subr.mxu0 0.0
        %2275 = vmatpush1.msra.mxu0 0.0
        %2276 = vmatprep.subr.mxu0 0.0
        %2277 = vmatpush1.msra.mxu0 0.0
        %2278 = vmatprep.subr.mxu0 0.0
        %2279 = vmatpush1.msra.mxu0 0.0
        %2280 = vmatprep.subr.mxu0 0.0
        %2281 = vmatpush1.msra.mxu0 0.0
        %2282 = vmatprep.subr.mxu0 0.0
        %2283 = vmatpush1.msra.mxu0 0.0
        %2284 = vmatprep.subr.mxu0 0.0
        %2285 = vmatpush1.msra.mxu0 0.0
        %2286 = vmatprep.subr.mxu0 0.0
        %2287 = vmatpush1.msra.mxu0 0.0
        %2288 = vmatprep.subr.mxu0 0.0
        %2289 = vmatpush1.msra.mxu0 0.0
        %2290 = vmatprep.subr.mxu0 0.0
        %2291 = vmatpush1.msra.mxu0 0.0
        %2292 = vmatprep.subr.mxu0 0.0
        %2293 = vmatpush1.msra.mxu0 0.0
        %2294 = vmatprep.subr.mxu0 0.0
        %2295 = vmatpush1.msra.mxu0 0.0
        %2296 = vmatprep.subr.mxu0 0.0
        %2297 = vmatpush1.msra.mxu0 0.0
        %2298 = vmatprep.subr.mxu0 0.0
        %2299 = vmatpush1.msra.mxu0 0.0
        %2300 = vmatprep.subr.mxu0 0.0
        %2301 = vmatpush1.msra.mxu0 0.0
        %2302 = vmatprep.subr.mxu0 0.0
        %2303 = vmatpush1.msra.mxu0 0.0
        %2304 = vmatprep.subr.mxu0 0.0
        %2305 = vmatpush1.msra.mxu0 0.0
        %2306 = vmatprep.subr.mxu0 0.0
        %2307 = vmatpush1.msra.mxu0 0.0
        %2308 = vmatprep.subr.mxu0 0.0
        %2309 = vmatpush1.msra.mxu0 0.0
        %2310 = vmatprep.subr.mxu0 0.0
        %2311 = vmatpush1.msra.mxu0 0.0
        %2312 = vmatprep.subr.mxu0 0.0
        %2313 = vmatpush1.msra.mxu0 0.0
        %2314 = vmatprep.subr.mxu0 0.0
        %2315 = vmatpush1.msra.mxu0 0.0
        %2316 = vmatprep.mubr.f32.mxu0 0.0
        %2317 = vmatmul.mubr.f32.gmra.mrb[0].mxu0 %v2244
        %v2318 = vpop.f32.mrb[0].mxu0
        %v2319 = vadd.f32 0.0, %v2318
        %v2320 = vpop.f32.mrb[0].mxu0
        %2321 = vmatprep.mubr.f32.mxu0 0.0
        %2322 = vmatmul.mubr.f32.gmra.mrb[0].mxu0 %v2247
        %v2323 = vpop.f32.mrb[0].mxu0
        %v2324 = vadd.f32 0.0, %v2323
        %v2325 = vpop.f32.mrb[0].mxu0
        %2326 = vmatprep.mubr.f32.mxu0 0.0
        %2327 = vmatmul.mubr.f32.gmra.mrb[0].mxu0 %v2250
        %v2328 = vpop.f32.mrb[0].mxu0
        %v2329 = vadd.f32 0.0, %v2328
        %v2330 = vpop.f32.mrb[0].mxu0
        %2331 = vdwg.mxu0
        %v2333 = vsel %vm1129, %v2319, 0
        %v2336 = vsel %vm1129, %v2324, 0
        %v2339 = vsel %vm1129, %v2329, 0
        %2341 = vmatprep.subr.mxu0 0.0
        %2342 = vmatpush1.msra.mxu0 %v1116
        %2343 = vmatprep.subr.mxu0 0.0
        %2344 = vmatpush1.msra.mxu0 0.0
        %2345 = vmatprep.subr.mxu0 0.0
        %2346 = vmatpush1.msra.mxu0 0.0
        %2347 = vmatprep.subr.mxu0 0.0
        %2348 = vmatpush1.msra.mxu0 0.0
        %2349 = vmatprep.subr.mxu0 0.0
        %2350 = vmatpush1.msra.mxu0 0.0
        %2351 = vmatprep.subr.mxu0 0.0
        %2352 = vmatpush1.msra.mxu0 0.0
        %2353 = vmatprep.subr.mxu0 0.0
        %2354 = vmatpush1.msra.mxu0 0.0
        %2355 = vmatprep.subr.mxu0 0.0
        %2356 = vmatpush1.msra.mxu0 0.0
        %2357 = vmatprep.subr.mxu0 0.0
        %2358 = vmatpush1.msra.mxu0 0.0
        %2359 = vmatprep.subr.mxu0 0.0
        %2360 = vmatpush1.msra.mxu0 0.0
        %2361 = vmatprep.subr.mxu0 0.0
        %2362 = vmatpush1.msra.mxu0 0.0
        %2363 = vmatprep.subr.mxu0 0.0
        %2364 = vmatpush1.msra.mxu0 0.0
        %2365 = vmatprep.subr.mxu0 0.0
        %2366 = vmatpush1.msra.mxu0 0.0
        %2367 = vmatprep.subr.mxu0 0.0
        %2368 = vmatpush1.msra.mxu0 0.0
        %2369 = vmatprep.subr.mxu0 0.0
        %2370 = vmatpush1.msra.mxu0 0.0
        %2371 = vmatprep.subr.mxu0 0.0
        %2372 = vmatpush1.msra.mxu0 0.0
        %2373 = vmatprep.subr.mxu0 0.0
        %2374 = vmatpush1.msra.mxu0 0.0
        %2375 = vmatprep.subr.mxu0 0.0
        %2376 = vmatpush1.msra.mxu0 0.0
        %2377 = vmatprep.subr.mxu0 0.0
        %2378 = vmatpush1.msra.mxu0 0.0
        %2379 = vmatprep.subr.mxu0 0.0
        %2380 = vmatpush1.msra.mxu0 0.0
        %2381 = vmatprep.subr.mxu0 0.0
        %2382 = vmatpush1.msra.mxu0 0.0
        %2383 = vmatprep.subr.mxu0 0.0
        %2384 = vmatpush1.msra.mxu0 0.0
        %2385 = vmatprep.subr.mxu0 0.0
        %2386 = vmatpush1.msra.mxu0 0.0
        %2387 = vmatprep.subr.mxu0 0.0
        %2388 = vmatpush1.msra.mxu0 0.0
        %2389 = vmatprep.subr.mxu0 0.0
        %2390 = vmatpush1.msra.mxu0 0.0
        %2391 = vmatprep.subr.mxu0 0.0
        %2392 = vmatpush1.msra.mxu0 0.0
        %2393 = vmatprep.subr.mxu0 0.0
        %2394 = vmatpush1.msra.mxu0 0.0
        %2395 = vmatprep.subr.mxu0 0.0
        %2396 = vmatpush1.msra.mxu0 0.0
        %2397 = vmatprep.subr.mxu0 0.0
        %2398 = vmatpush1.msra.mxu0 0.0
        %2399 = vmatprep.subr.mxu0 0.0
        %2400 = vmatpush1.msra.mxu0 0.0
        %2401 = vmatprep.subr.mxu0 0.0
        %2402 = vmatpush1.msra.mxu0 0.0
        %2403 = vmatprep.subr.mxu0 0.0
        %2404 = vmatpush1.msra.mxu0 0.0
        %2405 = vmatprep.mubr.f32.mxu0 0.0
        %2406 = vmatmul.mubr.f32.gmra.mrb[0].mxu0 %v2333
        %v2407 = vpop.f32.mrb[0].mxu0
        %v2408 = vadd.f32 0.0, %v2407
        %v2409 = vpop.f32.mrb[0].mxu0
        %2410 = vmatprep.mubr.f32.mxu0 0.0
        %2411 = vmatmul.mubr.f32.gmra.mrb[0].mxu0 %v2336
        %v2412 = vpop.f32.mrb[0].mxu0
        %v2413 = vadd.f32 0.0, %v2412
        %v2414 = vpop.f32.mrb[0].mxu0
        %2415 = vmatprep.mubr.f32.mxu0 0.0
        %2416 = vmatmul.mubr.f32.gmra.mrb[0].mxu0 %v2339
        %v2417 = vpop.f32.mrb[0].mxu0
        %v2418 = vadd.f32 0.0, %v2417
        %v2419 = vpop.f32.mrb[0].mxu0
        %2420 = vdwg.mxu0
        %v2421 = vadd.f32 %v2094, %v2408
        %v2422 = vadd.f32 %v2095, %v2413
        %v2423 = vadd.f32 %v2096, %v2418
        %2427 = vrot.lane.b32.xlu0 %v2421, 32
        %v2428 = vpop.permute.xlu0 %2427
        %2429 = vrot.lane.b32.xlu0 %v2422, 32
        %v2430 = vpop.permute.xlu0 %2429
        %2431 = vrot.lane.b32.xlu0 %v2423, 32
        %v2432 = vpop.permute.xlu0 %2431
        %v2436 = vadd.f32 %v877, %v2428
        %v2437 = vadd.f32 %v913, %v2430
        %v2438 = vadd.f32 %v917, %v2432
        %v2439 = vld [vmem:[%s12] sm:$0x1]
        %v2441 = vlaneseq
        %v2442 = vshrl.u32 %v2441, 7
        %v2443 = vsub.s32 0, %v2442
        %v2444 = vrot.slane %v2439, %v2443
        %2445 = vrot.lane.b32.xlu0 %v2444, 32
        %v2446 = vpop.permute.xlu0 %2445
        %v2448 = vadd.f32 %v2436, %v2446
        %v2449 = vadd.f32 %v2437, %v2446
        %v2450 = vadd.f32 %v2438, %v2446
        %v2451 = vld [vmem:[%s13] sm:$0x1]
        %v2452 = vld [vmem:[%s14] sm:$0x1]
        %2456 = vrot.lane.b32.xlu0 %v2448, 96
        %v2457 = vpop.permute.xlu0 %2456
        %2458 = vrot.lane.b32.xlu0 %v2449, 96
        %v2459 = vpop.permute.xlu0 %2458
        %2460 = vrot.lane.b32.xlu0 %v2450, 96
        %v2461 = vpop.permute.xlu0 %2460
        %v2465 = vsel %vm815, %v2457, 0.0
        %2466 = vadd.xlane.f32.xlu0 %v2465
        %v2467 = vpop.xlane.xlu0 %2466
        %v2468 = vsel %vm815, %v2459, 0.0
        %2469 = vadd.xlane.f32.xlu0 %v2468
        %v2470 = vpop.xlane.xlu0 %2469
        %v2471 = vsel %vm815, %v2461, 0.0
        %2472 = vadd.xlane.f32.xlu0 %v2471
        %v2473 = vpop.xlane.xlu0 %2472
        %v2474 = vmul.f32 %v2467, %v819
        %v2475 = vmul.f32 %v2470, %v819
        %v2476 = vmul.f32 %v2473, %v819
        %v2477 = vsub.f32 %v2448, %v2474
        %v2478 = vsub.f32 %v2449, %v2475
        %v2479 = vsub.f32 %v2450, %v2476
        %v2480 = vmul.f32 %v2477, %v2477
        %v2481 = vmul.f32 %v2478, %v2478
        %v2482 = vmul.f32 %v2479, %v2479
        %2486 = vrot.lane.b32.xlu0 %v2480, 96
        %v2487 = vpop.permute.xlu0 %2486
        %2488 = vrot.lane.b32.xlu0 %v2481, 96
        %v2489 = vpop.permute.xlu0 %2488
        %2490 = vrot.lane.b32.xlu0 %v2482, 96
        %v2491 = vpop.permute.xlu0 %2490
        %v2495 = vsel %vm815, %v2487, 0.0
        %2496 = vadd.xlane.f32.xlu0 %v2495
        %v2497 = vpop.xlane.xlu0 %2496
        %v2498 = vsel %vm815, %v2489, 0.0
        %2499 = vadd.xlane.f32.xlu0 %v2498
        %v2500 = vpop.xlane.xlu0 %2499
        %v2501 = vsel %vm815, %v2491, 0.0
        %2502 = vadd.xlane.f32.xlu0 %v2501
        %v2503 = vpop.xlane.xlu0 %2502
        %v2504 = vmul.f32 %v2497, %v819
        %v2505 = vmul.f32 %v2500, %v819
        %v2506 = vmul.f32 %v2503, %v819
        %v2507 = vadd.f32 %v2504, 1e-05
        %v2508 = vadd.f32 %v2505, 1e-05
        %v2509 = vadd.f32 %v2506, 1e-05
        %v2510 = vrsqrt.pop %v2507
        %v2511 = vrsqrt.pop %v2508
        %v2512 = vrsqrt.pop %v2509
        %v2513 = vmul.f32 %v2477, %v2510
        %v2514 = vmul.f32 %v2478, %v2511
        %v2515 = vmul.f32 %v2479, %v2512
        %v2517 = vlaneseq
        %v2518 = vshrl.u32 %v2517, 7
        %v2519 = vsub.s32 0, %v2518
        %v2520 = vrot.slane %v2451, %v2519
        %2521 = vrot.lane.b32.xlu0 %v2520, 32
        %v2522 = vpop.permute.xlu0 %2521
        %v2524 = vmul.f32 %v2513, %v2522
        %v2525 = vmul.f32 %v2514, %v2522
        %v2526 = vmul.f32 %v2515, %v2522
        %v2528 = vlaneseq
        %v2529 = vshrl.u32 %v2528, 7
        %v2530 = vsub.s32 0, %v2529
        %v2531 = vrot.slane %v2452, %v2530
        %2532 = vrot.lane.b32.xlu0 %v2531, 32
        %v2533 = vpop.permute.xlu0 %2532
        %v2535 = vadd.f32 %v2524, %v2533
        %v2536 = vadd.f32 %v2525, %v2533
        %v2537 = vadd.f32 %v2526, %v2533
        %v2538 = vld [vmem:[%s15] sm:$0xff]
        %v2539 = vld [vmem:[%s15 + $0x8] sm:$0xff]
        %v2540 = vld [vmem:[%s15 + $0x10] sm:$0xff]
        %v2541 = vld [vmem:[%s15 + $0x18] sm:$0xff]
        %v2542 = vld [vmem:[%s16] sm:$0x1]
        %v2544 = vlaneseq
        %v2545 = vshrl.u32 %v2544, 7
        %v2546 = vsub.s32 0, %v2545
        %v2547 = vrot.slane %v2542, %v2546
        %2552 = vrot.lane.b32.xlu0 %v2535, 96
        %v2553 = vpop.permute.xlu0 %2552
        %2554 = vrot.lane.b32.xlu0 %v2536, 96
        %v2555 = vpop.permute.xlu0 %2554
        %2556 = vrot.lane.b32.xlu0 %v2537, 96
        %v2557 = vpop.permute.xlu0 %2556
        %v2558 = vsel %vm815, %v2553, 0
        %v2560 = vsel %vm815, %v2555, 0
        %v2562 = vsel %vm815, %v2557, 0
        %2564 = vmatprep.subr.mxu0 0.0
        %2565 = vmatpush1.msra.mxu0 %v2538
        %2566 = vmatprep.subr.mxu0 0.0
        %2567 = vmatpush1.msra.mxu0 %v2539
        %2568 = vmatprep.subr.mxu0 0.0
        %2569 = vmatpush1.msra.mxu0 %v2540
        %2570 = vmatprep.subr.mxu0 0.0
        %2571 = vmatpush1.msra.mxu0 %v2541
        %2572 = vmatprep.subr.mxu0 0.0
        %2573 = vmatpush1.msra.mxu0 0.0
        %2574 = vmatprep.subr.mxu0 0.0
        %2575 = vmatpush1.msra.mxu0 0.0
        %2576 = vmatprep.subr.mxu0 0.0
        %2577 = vmatpush1.msra.mxu0 0.0
        %2578 = vmatprep.subr.mxu0 0.0
        %2579 = vmatpush1.msra.mxu0 0.0
        %2580 = vmatprep.subr.mxu0 0.0
        %2581 = vmatpush1.msra.mxu0 0.0
        %2582 = vmatprep.subr.mxu0 0.0
        %2583 = vmatpush1.msra.mxu0 0.0
        %2584 = vmatprep.subr.mxu0 0.0
        %2585 = vmatpush1.msra.mxu0 0.0
        %2586 = vmatprep.subr.mxu0 0.0
        %2587 = vmatpush1.msra.mxu0 0.0
        %2588 = vmatprep.subr.mxu0 0.0
        %2589 = vmatpush1.msra.mxu0 0.0
        %2590 = vmatprep.subr.mxu0 0.0
        %2591 = vmatpush1.msra.mxu0 0.0
        %2592 = vmatprep.subr.mxu0 0.0
        %2593 = vmatpush1.msra.mxu0 0.0
        %2594 = vmatprep.subr.mxu0 0.0
        %2595 = vmatpush1.msra.mxu0 0.0
        %2596 = vmatprep.subr.mxu0 0.0
        %2597 = vmatpush1.msra.mxu0 0.0
        %2598 = vmatprep.subr.mxu0 0.0
        %2599 = vmatpush1.msra.mxu0 0.0
        %2600 = vmatprep.subr.mxu0 0.0
        %2601 = vmatpush1.msra.mxu0 0.0
        %2602 = vmatprep.subr.mxu0 0.0
        %2603 = vmatpush1.msra.mxu0 0.0
        %2604 = vmatprep.subr.mxu0 0.0
        %2605 = vmatpush1.msra.mxu0 0.0
        %2606 = vmatprep.subr.mxu0 0.0
        %2607 = vmatpush1.msra.mxu0 0.0
        %2608 = vmatprep.subr.mxu0 0.0
        %2609 = vmatpush1.msra.mxu0 0.0
        %2610 = vmatprep.subr.mxu0 0.0
        %2611 = vmatpush1.msra.mxu0 0.0
        %2612 = vmatprep.subr.mxu0 0.0
        %2613 = vmatpush1.msra.mxu0 0.0
        %2614 = vmatprep.subr.mxu0 0.0
        %2615 = vmatpush1.msra.mxu0 0.0
        %2616 = vmatprep.subr.mxu0 0.0
        %2617 = vmatpush1.msra.mxu0 0.0
        %2618 = vmatprep.subr.mxu0 0.0
        %2619 = vmatpush1.msra.mxu0 0.0
        %2620 = vmatprep.subr.mxu0 0.0
        %2621 = vmatpush1.msra.mxu0 0.0
        %2622 = vmatprep.subr.mxu0 0.0
        %2623 = vmatpush1.msra.mxu0 0.0
        %2624 = vmatprep.subr.mxu0 0.0
        %2625 = vmatpush1.msra.mxu0 0.0
        %2626 = vmatprep.subr.mxu0 0.0
        %2627 = vmatpush1.msra.mxu0 0.0
        %2628 = vmatprep.mubr.f32.mxu0 0.0
        %2629 = vmatmul.mubr.f32.gmra.mrb[0].mxu0 %v2558
        %v2630 = vpop.f32.mrb[0].mxu0
        %v2631 = vadd.f32 %v2547, %v2630
        %v2632 = vpop.f32.mrb[0].mxu0
        %2633 = vmatprep.mubr.f32.mxu0 0.0
        %2634 = vmatmul.mubr.f32.gmra.mrb[0].mxu0 %v2560
        %v2635 = vpop.f32.mrb[0].mxu0
        %v2636 = vadd.f32 %v2547, %v2635
        %v2637 = vpop.f32.mrb[0].mxu0
        %2638 = vmatprep.mubr.f32.mxu0 0.0
        %2639 = vmatmul.mubr.f32.gmra.mrb[0].mxu0 %v2562
        %v2640 = vpop.f32.mrb[0].mxu0
        %v2641 = vadd.f32 %v2547, %v2640
        %v2642 = vpop.f32.mrb[0].mxu0
        %2643 = vdwg.mxu0
        %v2644 = vmul.f32 %v2631, 0.5
        %v2645 = vmul.f32 %v2636, 0.5
        %v2646 = vmul.f32 %v2641, 0.5
        %v2647 = vrcp.pop 1.4142135
        %v2648 = vmul.f32 %v2631, %v2647
        %v2649 = vmul.f32 %v2636, %v2647
        %v2650 = vmul.f32 %v2641, %v2647
        %v2651 = verf.f32.pop %v2648
        %v2652 = verf.f32.pop %v2649
        %v2653 = verf.f32.pop %v2650
        %v2654 = vadd.f32 %v2651, 1.0
        %v2655 = vadd.f32 %v2652, 1.0
        %v2656 = vadd.f32 %v2653, 1.0
        %v2657 = vmul.f32 %v2644, %v2654
        %v2658 = vmul.f32 %v2645, %v2655
        %v2659 = vmul.f32 %v2646, %v2656
        %v2660 = vld [vmem:[%s17] sm:$0xff]
        %v2661 = vld [vmem:[%s17 + $0x8] sm:$0xff]
        %v2662 = vld [vmem:[%s17 + $0x10] sm:$0xff]
        %v2663 = vld [vmem:[%s17 + $0x18] sm:$0xff]
        %v2664 = vld [vmem:[%s17 + $0x20] sm:$0xff]
        %v2665 = vld [vmem:[%s17 + $0x28] sm:$0xff]
        %v2666 = vld [vmem:[%s17 + $0x30] sm:$0xff]
        %v2667 = vld [vmem:[%s17 + $0x38] sm:$0xff]
        %v2668 = vld [vmem:[%s17 + $0x40] sm:$0xff]
        %v2669 = vld [vmem:[%s17 + $0x48] sm:$0xff]
        %v2670 = vld [vmem:[%s17 + $0x50] sm:$0xff]
        %v2671 = vld [vmem:[%s17 + $0x58] sm:$0xff]
        %v2672 = vld [vmem:[%s17 + $0x60] sm:$0xff]
        %v2673 = vld [vmem:[%s17 + $0x68] sm:$0xff]
        %v2674 = vld [vmem:[%s17 + $0x70] sm:$0xff]
        %v2675 = vld [vmem:[%s17 + $0x78] sm:$0xff]
        %2676 = vmatprep.subr.mxu0 0.0
        %2677 = vmatpush1.msra.mxu0 %v2660
        %2678 = vmatprep.subr.mxu0 0.0
        %2679 = vmatpush1.msra.mxu0 %v2661
        %2680 = vmatprep.subr.mxu0 0.0
        %2681 = vmatpush1.msra.mxu0 %v2662
        %2682 = vmatprep.subr.mxu0 0.0
        %2683 = vmatpush1.msra.mxu0 %v2663
        %2684 = vmatprep.subr.mxu0 0.0
        %2685 = vmatpush1.msra.mxu0 %v2664
        %2686 = vmatprep.subr.mxu0 0.0
        %2687 = vmatpush1.msra.mxu0 %v2665
        %2688 = vmatprep.subr.mxu0 0.0
        %2689 = vmatpush1.msra.mxu0 %v2666
        %2690 = vmatprep.subr.mxu0 0.0
        %2691 = vmatpush1.msra.mxu0 %v2667
        %2692 = vmatprep.subr.mxu0 0.0
        %2693 = vmatpush1.msra.mxu0 %v2668
        %2694 = vmatprep.subr.mxu0 0.0
        %2695 = vmatpush1.msra.mxu0 %v2669
        %2696 = vmatprep.subr.mxu0 0.0
        %2697 = vmatpush1.msra.mxu0 %v2670
        %2698 = vmatprep.subr.mxu0 0.0
        %2699 = vmatpush1.msra.mxu0 %v2671
        %2700 = vmatprep.subr.mxu0 0.0
        %2701 = vmatpush1.msra.mxu0 %v2672
        %2702 = vmatprep.subr.mxu0 0.0
        %2703 = vmatpush1.msra.mxu0 %v2673
        %2704 = vmatprep.subr.mxu0 0.0
        %2705 = vmatpush1.msra.mxu0 %v2674
        %2706 = vmatprep.subr.mxu0 0.0
        %2707 = vmatpush1.msra.mxu0 %v2675
        %2708 = vmatprep.subr.mxu0 0.0
        %2709 = vmatpush1.msra.mxu0 0.0
        %2710 = vmatprep.subr.mxu0 0.0
        %2711 = vmatpush1.msra.mxu0 0.0
        %2712 = vmatprep.subr.mxu0 0.0
        %2713 = vmatpush1.msra.mxu0 0.0
        %2714 = vmatprep.subr.mxu0 0.0
        %2715 = vmatpush1.msra.mxu0 0.0
        %2716 = vmatprep.subr.mxu0 0.0
        %2717 = vmatpush1.msra.mxu0 0.0
        %2718 = vmatprep.subr.mxu0 0.0
        %2719 = vmatpush1.msra.mxu0 0.0
        %2720 = vmatprep.subr.mxu0 0.0
        %2721 = vmatpush1.msra.mxu0 0.0
        %2722 = vmatprep.subr.mxu0 0.0
        %2723 = vmatpush1.msra.mxu0 0.0
        %2724 = vmatprep.subr.mxu0 0.0
        %2725 = vmatpush1.msra.mxu0 0.0
        %2726 = vmatprep.subr.mxu0 0.0
        %2727 = vmatpush1.msra.mxu0 0.0
        %2728 = vmatprep.subr.mxu0 0.0
        %2729 = vmatpush1.msra.mxu0 0.0
        %2730 = vmatprep.subr.mxu0 0.0
        %2731 = vmatpush1.msra.mxu0 0.0
        %2732 = vmatprep.subr.mxu0 0.0
        %2733 = vmatpush1.msra.mxu0 0.0
        %2734 = vmatprep.subr.mxu0 0.0
        %2735 = vmatpush1.msra.mxu0 0.0
        %2736 = vmatprep.subr.mxu0 0.0
        %2737 = vmatpush1.msra.mxu0 0.0
        %2738 = vmatprep.subr.mxu0 0.0
        %2739 = vmatpush1.msra.mxu0 0.0
        %2740 = vmatprep.mubr.f32.mxu0 0.0
        %2741 = vmatmul.mubr.f32.gmra.mrb[0].mxu0 %v2657
        %v2742 = vpop.f32.mrb[0].mxu0
        %v2743 = vadd.f32 0.0, %v2742
        %v2744 = vpop.f32.mrb[0].mxu0
        %2745 = vmatprep.mubr.f32.mxu0 0.0
        %2746 = vmatmul.mubr.f32.gmra.mrb[0].mxu0 %v2658
        %v2747 = vpop.f32.mrb[0].mxu0
        %v2748 = vadd.f32 0.0, %v2747
        %v2749 = vpop.f32.mrb[0].mxu0
        %2750 = vmatprep.mubr.f32.mxu0 0.0
        %2751 = vmatmul.mubr.f32.gmra.mrb[0].mxu0 %v2659
        %v2752 = vpop.f32.mrb[0].mxu0
        %v2753 = vadd.f32 0.0, %v2752
        %v2754 = vpop.f32.mrb[0].mxu0
        %2755 = vdwg.mxu0
        %2759 = vrot.lane.b32.xlu0 %v2743, 32
        %v2760 = vpop.permute.xlu0 %2759
        %2761 = vrot.lane.b32.xlu0 %v2748, 32
        %v2762 = vpop.permute.xlu0 %2761
        %2763 = vrot.lane.b32.xlu0 %v2753, 32
        %v2764 = vpop.permute.xlu0 %2763
        %v2768 = vadd.f32 %v2448, %v2760
        %v2769 = vadd.f32 %v2449, %v2762
        %v2770 = vadd.f32 %v2450, %v2764
        %v2771 = vld [vmem:[%s18] sm:$0x1]
        %v2773 = vlaneseq
        %v2774 = vshrl.u32 %v2773, 7
        %v2775 = vsub.s32 0, %v2774
        %v2776 = vrot.slane %v2771, %v2775
        %2777 = vrot.lane.b32.xlu0 %v2776, 32
        %v2778 = vpop.permute.xlu0 %2777
        %v2780 = vadd.f32 %v2768, %v2778
        %v2781 = vadd.f32 %v2769, %v2778
        %v2782 = vadd.f32 %v2770, %v2778
        %s2783 = scalar_lea.vmem %s7, 1
        %v2784 = vld [vmem:[%s2783] sm:$0x1]
        %s2785 = scalar_lea.vmem %s8, 1
        %v2786 = vld [vmem:[%s2785] sm:$0x1]
        %2790 = vrot.lane.b32.xlu0 %v2780, 96
        %v2791 = vpop.permute.xlu0 %2790
        %2792 = vrot.lane.b32.xlu0 %v2781, 96
        %v2793 = vpop.permute.xlu0 %2792
        %2794 = vrot.lane.b32.xlu0 %v2782, 96
        %v2795 = vpop.permute.xlu0 %2794
        %v2799 = vsel %vm815, %v2791, 0.0
        %2800 = vadd.xlane.f32.xlu0 %v2799
        %v2801 = vpop.xlane.xlu0 %2800
        %v2802 = vsel %vm815, %v2793, 0.0
        %2803 = vadd.xlane.f32.xlu0 %v2802
        %v2804 = vpop.xlane.xlu0 %2803
        %v2805 = vsel %vm815, %v2795, 0.0
        %2806 = vadd.xlane.f32.xlu0 %v2805
        %v2807 = vpop.xlane.xlu0 %2806
        %v2808 = vmul.f32 %v2801, %v819
        %v2809 = vmul.f32 %v2804, %v819
        %v2810 = vmul.f32 %v2807, %v819
        %v2811 = vsub.f32 %v2780, %v2808
        %v2812 = vsub.f32 %v2781, %v2809
        %v2813 = vsub.f32 %v2782, %v2810
        %v2814 = vmul.f32 %v2811, %v2811
        %v2815 = vmul.f32 %v2812, %v2812
        %v2816 = vmul.f32 %v2813, %v2813
        %2820 = vrot.lane.b32.xlu0 %v2814, 96
        %v2821 = vpop.permute.xlu0 %2820
        %2822 = vrot.lane.b32.xlu0 %v2815, 96
        %v2823 = vpop.permute.xlu0 %2822
        %2824 = vrot.lane.b32.xlu0 %v2816, 96
        %v2825 = vpop.permute.xlu0 %2824
        %v2829 = vsel %vm815, %v2821, 0.0
        %2830 = vadd.xlane.f32.xlu0 %v2829
        %v2831 = vpop.xlane.xlu0 %2830
        %v2832 = vsel %vm815, %v2823, 0.0
        %2833 = vadd.xlane.f32.xlu0 %v2832
        %v2834 = vpop.xlane.xlu0 %2833
        %v2835 = vsel %vm815, %v2825, 0.0
        %2836 = vadd.xlane.f32.xlu0 %v2835
        %v2837 = vpop.xlane.xlu0 %2836
        %v2838 = vmul.f32 %v2831, %v819
        %v2839 = vmul.f32 %v2834, %v819
        %v2840 = vmul.f32 %v2837, %v819
        %v2841 = vadd.f32 %v2838, 1e-05
        %v2842 = vadd.f32 %v2839, 1e-05
        %v2843 = vadd.f32 %v2840, 1e-05
        %v2844 = vrsqrt.pop %v2841
        %v2845 = vrsqrt.pop %v2842
        %v2846 = vrsqrt.pop %v2843
        %v2847 = vmul.f32 %v2811, %v2844
        %v2848 = vmul.f32 %v2812, %v2845
        %v2849 = vmul.f32 %v2813, %v2846
        %v2851 = vlaneseq
        %v2852 = vshrl.u32 %v2851, 7
        %v2853 = vsub.s32 0, %v2852
        %v2854 = vrot.slane %v2784, %v2853
        %2855 = vrot.lane.b32.xlu0 %v2854, 32
        %v2856 = vpop.permute.xlu0 %2855
        %v2858 = vmul.f32 %v2847, %v2856
        %v2859 = vmul.f32 %v2848, %v2856
        %v2860 = vmul.f32 %v2849, %v2856
        %v2862 = vlaneseq
        %v2863 = vshrl.u32 %v2862, 7
        %v2864 = vsub.s32 0, %v2863
        %v2865 = vrot.slane %v2786, %v2864
        %2866 = vrot.lane.b32.xlu0 %v2865, 32
        %v2867 = vpop.permute.xlu0 %2866
        %v2869 = vadd.f32 %v2858, %v2867
        %v2870 = vadd.f32 %v2859, %v2867
        %v2871 = vadd.f32 %v2860, %v2867
        %s2872 = scalar_lea.vmem %s9, 32
        %v2873 = vld [vmem:[%s2872] sm:$0xff]
        %v2874 = vld [vmem:[%s2872 + $0x8] sm:$0xff]
        %v2875 = vld [vmem:[%s2872 + $0x10] sm:$0xff]
        %v2876 = vld [vmem:[%s2872 + $0x18] sm:$0xff]
        %s2877 = scalar_lea.vmem %s10, 1
        %v2878 = vld [vmem:[%s2877] sm:$0x1]
        %v2880 = vlaneseq
        %v2881 = vshrl.u32 %v2880, 7
        %v2882 = vsub.s32 0, %v2881
        %v2883 = vrot.slane %v2878, %v2882
        %2888 = vrot.lane.b32.xlu0 %v2869, 96
        %v2889 = vpop.permute.xlu0 %2888
        %2890 = vrot.lane.b32.xlu0 %v2870, 96
        %v2891 = vpop.permute.xlu0 %2890
        %2892 = vrot.lane.b32.xlu0 %v2871, 96
        %v2893 = vpop.permute.xlu0 %2892
        %v2894 = vsel %vm815, %v2889, 0
        %v2896 = vsel %vm815, %v2891, 0
        %v2898 = vsel %vm815, %v2893, 0
        %2900 = vmatprep.subr.mxu0 0.0
        %2901 = vmatpush1.msra.mxu0 %v2873
        %2902 = vmatprep.subr.mxu0 0.0
        %2903 = vmatpush1.msra.mxu0 %v2874
        %2904 = vmatprep.subr.mxu0 0.0
        %2905 = vmatpush1.msra.mxu0 %v2875
        %2906 = vmatprep.subr.mxu0 0.0
        %2907 = vmatpush1.msra.mxu0 %v2876
        %2908 = vmatprep.subr.mxu0 0.0
        %2909 = vmatpush1.msra.mxu0 0.0
        %2910 = vmatprep.subr.mxu0 0.0
        %2911 = vmatpush1.msra.mxu0 0.0
        %2912 = vmatprep.subr.mxu0 0.0
        %2913 = vmatpush1.msra.mxu0 0.0
        %2914 = vmatprep.subr.mxu0 0.0
        %2915 = vmatpush1.msra.mxu0 0.0
        %2916 = vmatprep.subr.mxu0 0.0
        %2917 = vmatpush1.msra.mxu0 0.0
        %2918 = vmatprep.subr.mxu0 0.0
        %2919 = vmatpush1.msra.mxu0 0.0
        %2920 = vmatprep.subr.mxu0 0.0
        %2921 = vmatpush1.msra.mxu0 0.0
        %2922 = vmatprep.subr.mxu0 0.0
        %2923 = vmatpush1.msra.mxu0 0.0
        %2924 = vmatprep.subr.mxu0 0.0
        %2925 = vmatpush1.msra.mxu0 0.0
        %2926 = vmatprep.subr.mxu0 0.0
        %2927 = vmatpush1.msra.mxu0 0.0
        %2928 = vmatprep.subr.mxu0 0.0
        %2929 = vmatpush1.msra.mxu0 0.0
        %2930 = vmatprep.subr.mxu0 0.0
        %2931 = vmatpush1.msra.mxu0 0.0
        %2932 = vmatprep.subr.mxu0 0.0
        %2933 = vmatpush1.msra.mxu0 0.0
        %2934 = vmatprep.subr.mxu0 0.0
        %2935 = vmatpush1.msra.mxu0 0.0
        %2936 = vmatprep.subr.mxu0 0.0
        %2937 = vmatpush1.msra.mxu0 0.0
        %2938 = vmatprep.subr.mxu0 0.0
        %2939 = vmatpush1.msra.mxu0 0.0
        %2940 = vmatprep.subr.mxu0 0.0
        %2941 = vmatpush1.msra.mxu0 0.0
        %2942 = vmatprep.subr.mxu0 0.0
        %2943 = vmatpush1.msra.mxu0 0.0
        %2944 = vmatprep.subr.mxu0 0.0
        %2945 = vmatpush1.msra.mxu0 0.0
        %2946 = vmatprep.subr.mxu0 0.0
        %2947 = vmatpush1.msra.mxu0 0.0
        %2948 = vmatprep.subr.mxu0 0.0
        %2949 = vmatpush1.msra.mxu0 0.0
        %2950 = vmatprep.subr.mxu0 0.0
        %2951 = vmatpush1.msra.mxu0 0.0
        %2952 = vmatprep.subr.mxu0 0.0
        %2953 = vmatpush1.msra.mxu0 0.0
        %2954 = vmatprep.subr.mxu0 0.0
        %2955 = vmatpush1.msra.mxu0 0.0
        %2956 = vmatprep.subr.mxu0 0.0
        %2957 = vmatpush1.msra.mxu0 0.0
        %2958 = vmatprep.subr.mxu0 0.0
        %2959 = vmatpush1.msra.mxu0 0.0
        %2960 = vmatprep.subr.mxu0 0.0
        %2961 = vmatpush1.msra.mxu0 0.0
        %2962 = vmatprep.subr.mxu0 0.0
        %2963 = vmatpush1.msra.mxu0 0.0
        %2964 = vmatprep.mubr.f32.mxu0 0.0
        %2965 = vmatmul.mubr.f32.gmra.mrb[0].mxu0 %v2894
        %v2966 = vpop.f32.mrb[0].mxu0
        %v2967 = vadd.f32 %v2883, %v2966
        %v2968 = vpop.f32.mrb[0].mxu0
        %2969 = vmatprep.mubr.f32.mxu0 0.0
        %2970 = vmatmul.mubr.f32.gmra.mrb[0].mxu0 %v2896
        %v2971 = vpop.f32.mrb[0].mxu0
        %v2972 = vadd.f32 %v2883, %v2971
        %v2973 = vpop.f32.mrb[0].mxu0
        %2974 = vmatprep.mubr.f32.mxu0 0.0
        %2975 = vmatmul.mubr.f32.gmra.mrb[0].mxu0 %v2898
        %v2976 = vpop.f32.mrb[0].mxu0
        %v2977 = vadd.f32 %v2883, %v2976
        %v2978 = vpop.f32.mrb[0].mxu0
        %2979 = vdwg.mxu0
        %s2980 = scalar_lea.vmem %s11, 32
        %v2981 = vld [vmem:[%s2980] sm:$0xff]
        %v2982 = vld [vmem:[%s2980 + $0x8] sm:$0xff]
        %v2983 = vld [vmem:[%s2980 + $0x10] sm:$0xff]
        %v2984 = vld [vmem:[%s2980 + $0x18] sm:$0xff]
        %v2985 = vmul.f32 %v2967, 0.35355338
        %v2986 = vmul.f32 %v2972, 0.35355338
        %v2987 = vmul.f32 %v2977, 0.35355338
        %2991 = vrot.lane.b32.xlu0 %v2967, 96
        %v2992 = vpop.permute.xlu0 %2991
        %2993 = vrot.lane.b32.xlu0 %v2972, 96
        %v2994 = vpop.permute.xlu0 %2993
        %2995 = vrot.lane.b32.xlu0 %v2977, 96
        %v2996 = vpop.permute.xlu0 %2995
        %v2998 = vsel %vm1129, %v2985, 0
        %v3001 = vsel %vm1129, %v2986, 0
        %v3004 = vsel %vm1129, %v2987, 0
        %v3006 = vsel %vm1129, %v2992, 0
        %v3008 = vsel %vm1129, %v2994, 0
        %v3010 = vsel %vm1129, %v2996, 0
        %3012 = vmatprep.subr.mxu0 0.0
        %3013 = vmatpush1.xpose.msra.mxu0 %v3006
        %3014 = vmatprep.subr.mxu0 0.0
        %3015 = vmatpush1.xpose.msra.mxu0 %v3008
        %3016 = vmatprep.subr.mxu0 0.0
        %3017 = vmatpush1.xpose.msra.mxu0 %v3010
        %3018 = vmatprep.subr.mxu0 0.0
        %3019 = vmatpush1.xpose.msra.mxu0 0.0
        %3020 = vmatprep.subr.mxu0 0.0
        %3021 = vmatpush1.xpose.msra.mxu0 0.0
        %3022 = vmatprep.subr.mxu0 0.0
        %3023 = vmatpush1.xpose.msra.mxu0 0.0
        %3024 = vmatprep.subr.mxu0 0.0
        %3025 = vmatpush1.xpose.msra.mxu0 0.0
        %3026 = vmatprep.subr.mxu0 0.0
        %3027 = vmatpush1.xpose.msra.mxu0 0.0
        %3028 = vmatprep.subr.mxu0 0.0
        %3029 = vmatpush1.xpose.msra.mxu0 0.0
        %3030 = vmatprep.subr.mxu0 0.0
        %3031 = vmatpush1.xpose.msra.mxu0 0.0
        %3032 = vmatprep.subr.mxu0 0.0
        %3033 = vmatpush1.xpose.msra.mxu0 0.0
        %3034 = vmatprep.subr.mxu0 0.0
        %3035 = vmatpush1.xpose.msra.mxu0 0.0
        %3036 = vmatprep.subr.mxu0 0.0
        %3037 = vmatpush1.xpose.msra.mxu0 0.0
        %3038 = vmatprep.subr.mxu0 0.0
        %3039 = vmatpush1.xpose.msra.mxu0 0.0
        %3040 = vmatprep.subr.mxu0 0.0
        %3041 = vmatpush1.xpose.msra.mxu0 0.0
        %3042 = vmatprep.subr.mxu0 0.0
        %3043 = vmatpush1.xpose.msra.mxu0 0.0
        %3044 = vmatprep.subr.mxu0 0.0
        %3045 = vmatpush1.xpose.msra.mxu0 0.0
        %3046 = vmatprep.subr.mxu0 0.0
        %3047 = vmatpush1.xpose.msra.mxu0 0.0
        %3048 = vmatprep.subr.mxu0 0.0
        %3049 = vmatpush1.xpose.msra.mxu0 0.0
        %3050 = vmatprep.subr.mxu0 0.0
        %3051 = vmatpush1.xpose.msra.mxu0 0.0
        %3052 = vmatprep.subr.mxu0 0.0
        %3053 = vmatpush1.xpose.msra.mxu0 0.0
        %3054 = vmatprep.subr.mxu0 0.0
        %3055 = vmatpush1.xpose.msra.mxu0 0.0
        %3056 = vmatprep.subr.mxu0 0.0
        %3057 = vmatpush1.xpose.msra.mxu0 0.0
        %3058 = vmatprep.subr.mxu0 0.0
        %3059 = vmatpush1.xpose.msra.mxu0 0.0
        %3060 = vmatprep.subr.mxu0 0.0
        %3061 = vmatpush1.xpose.msra.mxu0 0.0
        %3062 = vmatprep.subr.mxu0 0.0
        %3063 = vmatpush1.xpose.msra.mxu0 0.0
        %3064 = vmatprep.subr.mxu0 0.0
        %3065 = vmatpush1.xpose.msra.mxu0 0.0
        %3066 = vmatprep.subr.mxu0 0.0
        %3067 = vmatpush1.xpose.msra.mxu0 0.0
        %3068 = vmatprep.subr.mxu0 0.0
        %3069 = vmatpush1.xpose.msra.mxu0 0.0
        %3070 = vmatprep.subr.mxu0 0.0
        %3071 = vmatpush1.xpose.msra.mxu0 0.0
        %3072 = vmatprep.subr.mxu0 0.0
        %3073 = vmatpush1.xpose.msra.mxu0 0.0
        %3074 = vmatprep.subr.mxu0 0.0
        %3075 = vmatpush1.xpose.msra.mxu0 0.0
        %3076 = vmatprep.mubr.f32.mxu0 0.0
        %3077 = vmatmul.mubr.f32.gmra.mrb[0].mxu0 %v2998
        %v3078 = vpop.f32.mrb[0].mxu0
        %v3079 = vadd.f32 %v919, %v3078
        %v3080 = vpop.f32.mrb[0].mxu0
        %3081 = vmatprep.mubr.f32.mxu0 0.0
        %3082 = vmatmul.mubr.f32.gmra.mrb[0].mxu0 %v3001
        %v3083 = vpop.f32.mrb[0].mxu0
        %v3084 = vadd.f32 %v920, %v3083
        %v3085 = vpop.f32.mrb[0].mxu0
        %3086 = vmatprep.mubr.f32.mxu0 0.0
        %3087 = vmatmul.mubr.f32.gmra.mrb[0].mxu0 %v3004
        %v3088 = vpop.f32.mrb[0].mxu0
        %v3089 = vadd.f32 %v921, %v3088
        %v3090 = vpop.f32.mrb[0].mxu0
        %3091 = vdwg.mxu0
        %v3092 = vsel %vm1225, %v3079, -inf
        %3093 = vmax.xlane.f32.xlu0 %v3092
        %v3094 = vpop.xlane.xlu0 %3093
        %v3095 = vsel %vm1225, %v3084, -inf
        %3096 = vmax.xlane.f32.xlu0 %v3095
        %v3097 = vpop.xlane.xlu0 %3096
        %v3098 = vsel %vm1225, %v3089, -inf
        %3099 = vmax.xlane.f32.xlu0 %v3098
        %v3100 = vpop.xlane.xlu0 %3099
        %v3101 = vsub.f32 %v3079, %v3094
        %v3102 = vsub.f32 %v3084, %v3097
        %v3103 = vsub.f32 %v3089, %v3100
        %v3104 = vmul.f32 %v3101, 1.442695
        %v3105 = vpow.pop %v3104
        %v3106 = vmul.f32 %v3102, 1.442695
        %v3107 = vpow.pop %v3106
        %v3108 = vmul.f32 %v3103, 1.442695
        %v3109 = vpow.pop %v3108
        %v3110 = vsel %vm1225, %v3105, 0.0
        %3111 = vadd.xlane.f32.xlu0 %v3110
        %v3112 = vpop.xlane.xlu0 %3111
        %v3113 = vsel %vm1225, %v3107, 0.0
        %3114 = vadd.xlane.f32.xlu0 %v3113
        %v3115 = vpop.xlane.xlu0 %3114
        %v3116 = vsel %vm1225, %v3109, 0.0
        %3117 = vadd.xlane.f32.xlu0 %v3116
        %v3118 = vpop.xlane.xlu0 %3117
        %v3119 = vrcp.pop %v3112
        %v3120 = vmul.f32 %v3105, %v3119
        %v3121 = vrcp.pop %v3115
        %v3122 = vmul.f32 %v3107, %v3121
        %v3123 = vrcp.pop %v3118
        %v3124 = vmul.f32 %v3109, %v3123
        %3125 = vrot.lane.b32.xlu0 %v2967, 64
        %v3126 = vpop.permute.xlu0 %3125
        %3127 = vrot.lane.b32.xlu0 %v2972, 64
        %v3128 = vpop.permute.xlu0 %3127
        %3129 = vrot.lane.b32.xlu0 %v2977, 64
        %v3130 = vpop.permute.xlu0 %3129
        %v3135 = vsel %vm1225, %v3120, 0
        %v3138 = vsel %vm1225, %v3122, 0
        %v3141 = vsel %vm1225, %v3124, 0
        %3143 = vmatprep.subr.mxu0 0.0
        %3144 = vmatpush1.msra.mxu0 %v3126
        %3145 = vmatprep.subr.mxu0 0.0
        %3146 = vmatpush1.msra.mxu0 %v3128
        %3147 = vmatprep.subr.mxu0 0.0
        %3148 = vmatpush1.msra.mxu0 %v3130
        %3149 = vmatprep.subr.mxu0 0.0
        %3150 = vmatpush1.msra.mxu0 0.0
        %3151 = vmatprep.subr.mxu0 0.0
        %3152 = vmatpush1.msra.mxu0 0.0
        %3153 = vmatprep.subr.mxu0 0.0
        %3154 = vmatpush1.msra.mxu0 0.0
        %3155 = vmatprep.subr.mxu0 0.0
        %3156 = vmatpush1.msra.mxu0 0.0
        %3157 = vmatprep.subr.mxu0 0.0
        %3158 = vmatpush1.msra.mxu0 0.0
        %3159 = vmatprep.subr.mxu0 0.0
        %3160 = vmatpush1.msra.mxu0 0.0
        %3161 = vmatprep.subr.mxu0 0.0
        %3162 = vmatpush1.msra.mxu0 0.0
        %3163 = vmatprep.subr.mxu0 0.0
        %3164 = vmatpush1.msra.mxu0 0.0
        %3165 = vmatprep.subr.mxu0 0.0
        %3166 = vmatpush1.msra.mxu0 0.0
        %3167 = vmatprep.subr.mxu0 0.0
        %3168 = vmatpush1.msra.mxu0 0.0
        %3169 = vmatprep.subr.mxu0 0.0
        %3170 = vmatpush1.msra.mxu0 0.0
        %3171 = vmatprep.subr.mxu0 0.0
        %3172 = vmatpush1.msra.mxu0 0.0
        %3173 = vmatprep.subr.mxu0 0.0
        %3174 = vmatpush1.msra.mxu0 0.0
        %3175 = vmatprep.subr.mxu0 0.0
        %3176 = vmatpush1.msra.mxu0 0.0
        %3177 = vmatprep.subr.mxu0 0.0
        %3178 = vmatpush1.msra.mxu0 0.0
        %3179 = vmatprep.subr.mxu0 0.0
        %3180 = vmatpush1.msra.mxu0 0.0
        %3181 = vmatprep.subr.mxu0 0.0
        %3182 = vmatpush1.msra.mxu0 0.0
        %3183 = vmatprep.subr.mxu0 0.0
        %3184 = vmatpush1.msra.mxu0 0.0
        %3185 = vmatprep.subr.mxu0 0.0
        %3186 = vmatpush1.msra.mxu0 0.0
        %3187 = vmatprep.subr.mxu0 0.0
        %3188 = vmatpush1.msra.mxu0 0.0
        %3189 = vmatprep.subr.mxu0 0.0
        %3190 = vmatpush1.msra.mxu0 0.0
        %3191 = vmatprep.subr.mxu0 0.0
        %3192 = vmatpush1.msra.mxu0 0.0
        %3193 = vmatprep.subr.mxu0 0.0
        %3194 = vmatpush1.msra.mxu0 0.0
        %3195 = vmatprep.subr.mxu0 0.0
        %3196 = vmatpush1.msra.mxu0 0.0
        %3197 = vmatprep.subr.mxu0 0.0
        %3198 = vmatpush1.msra.mxu0 0.0
        %3199 = vmatprep.subr.mxu0 0.0
        %3200 = vmatpush1.msra.mxu0 0.0
        %3201 = vmatprep.subr.mxu0 0.0
        %3202 = vmatpush1.msra.mxu0 0.0
        %3203 = vmatprep.subr.mxu0 0.0
        %3204 = vmatpush1.msra.mxu0 0.0
        %3205 = vmatprep.subr.mxu0 0.0
        %3206 = vmatpush1.msra.mxu0 0.0
        %3207 = vmatprep.mubr.f32.mxu0 0.0
        %3208 = vmatmul.mubr.f32.gmra.mrb[0].mxu0 %v3135
        %v3209 = vpop.f32.mrb[0].mxu0
        %v3210 = vadd.f32 0.0, %v3209
        %v3211 = vpop.f32.mrb[0].mxu0
        %3212 = vmatprep.mubr.f32.mxu0 0.0
        %3213 = vmatmul.mubr.f32.gmra.mrb[0].mxu0 %v3138
        %v3214 = vpop.f32.mrb[0].mxu0
        %v3215 = vadd.f32 0.0, %v3214
        %v3216 = vpop.f32.mrb[0].mxu0
        %3217 = vmatprep.mubr.f32.mxu0 0.0
        %3218 = vmatmul.mubr.f32.gmra.mrb[0].mxu0 %v3141
        %v3219 = vpop.f32.mrb[0].mxu0
        %v3220 = vadd.f32 0.0, %v3219
        %v3221 = vpop.f32.mrb[0].mxu0
        %3222 = vdwg.mxu0
        %3223 = vrot.lane.b32.xlu0 %v2985, 120
        %v3224 = vpop.permute.xlu0 %3223
        %3225 = vrot.lane.b32.xlu0 %v2986, 120
        %v3226 = vpop.permute.xlu0 %3225
        %3227 = vrot.lane.b32.xlu0 %v2987, 120
        %v3228 = vpop.permute.xlu0 %3227
        %3229 = vrot.lane.b32.xlu0 %v2967, 88
        %v3230 = vpop.permute.xlu0 %3229
        %3231 = vrot.lane.b32.xlu0 %v2972, 88
        %v3232 = vpop.permute.xlu0 %3231
        %3233 = vrot.lane.b32.xlu0 %v2977, 88
        %v3234 = vpop.permute.xlu0 %3233
        %v3235 = vsel %vm1129, %v3224, 0
        %v3237 = vsel %vm1129, %v3226, 0
        %v3239 = vsel %vm1129, %v3228, 0
        %v3241 = vsel %vm1129, %v3230, 0
        %v3243 = vsel %vm1129, %v3232, 0
        %v3245 = vsel %vm1129, %v3234, 0
        %3247 = vmatprep.subr.mxu0 0.0
        %3248 = vmatpush1.xpose.msra.mxu0 %v3241
        %3249 = vmatprep.subr.mxu0 0.0
        %3250 = vmatpush1.xpose.msra.mxu0 %v3243
        %3251 = vmatprep.subr.mxu0 0.0
        %3252 = vmatpush1.xpose.msra.mxu0 %v3245
        %3253 = vmatprep.subr.mxu0 0.0
        %3254 = vmatpush1.xpose.msra.mxu0 0.0
        %3255 = vmatprep.subr.mxu0 0.0
        %3256 = vmatpush1.xpose.msra.mxu0 0.0
        %3257 = vmatprep.subr.mxu0 0.0
        %3258 = vmatpush1.xpose.msra.mxu0 0.0
        %3259 = vmatprep.subr.mxu0 0.0
        %3260 = vmatpush1.xpose.msra.mxu0 0.0
        %3261 = vmatprep.subr.mxu0 0.0
        %3262 = vmatpush1.xpose.msra.mxu0 0.0
        %3263 = vmatprep.subr.mxu0 0.0
        %3264 = vmatpush1.xpose.msra.mxu0 0.0
        %3265 = vmatprep.subr.mxu0 0.0
        %3266 = vmatpush1.xpose.msra.mxu0 0.0
        %3267 = vmatprep.subr.mxu0 0.0
        %3268 = vmatpush1.xpose.msra.mxu0 0.0
        %3269 = vmatprep.subr.mxu0 0.0
        %3270 = vmatpush1.xpose.msra.mxu0 0.0
        %3271 = vmatprep.subr.mxu0 0.0
        %3272 = vmatpush1.xpose.msra.mxu0 0.0
        %3273 = vmatprep.subr.mxu0 0.0
        %3274 = vmatpush1.xpose.msra.mxu0 0.0
        %3275 = vmatprep.subr.mxu0 0.0
        %3276 = vmatpush1.xpose.msra.mxu0 0.0
        %3277 = vmatprep.subr.mxu0 0.0
        %3278 = vmatpush1.xpose.msra.mxu0 0.0
        %3279 = vmatprep.subr.mxu0 0.0
        %3280 = vmatpush1.xpose.msra.mxu0 0.0
        %3281 = vmatprep.subr.mxu0 0.0
        %3282 = vmatpush1.xpose.msra.mxu0 0.0
        %3283 = vmatprep.subr.mxu0 0.0
        %3284 = vmatpush1.xpose.msra.mxu0 0.0
        %3285 = vmatprep.subr.mxu0 0.0
        %3286 = vmatpush1.xpose.msra.mxu0 0.0
        %3287 = vmatprep.subr.mxu0 0.0
        %3288 = vmatpush1.xpose.msra.mxu0 0.0
        %3289 = vmatprep.subr.mxu0 0.0
        %3290 = vmatpush1.xpose.msra.mxu0 0.0
        %3291 = vmatprep.subr.mxu0 0.0
        %3292 = vmatpush1.xpose.msra.mxu0 0.0
        %3293 = vmatprep.subr.mxu0 0.0
        %3294 = vmatpush1.xpose.msra.mxu0 0.0
        %3295 = vmatprep.subr.mxu0 0.0
        %3296 = vmatpush1.xpose.msra.mxu0 0.0
        %3297 = vmatprep.subr.mxu0 0.0
        %3298 = vmatpush1.xpose.msra.mxu0 0.0
        %3299 = vmatprep.subr.mxu0 0.0
        %3300 = vmatpush1.xpose.msra.mxu0 0.0
        %3301 = vmatprep.subr.mxu0 0.0
        %3302 = vmatpush1.xpose.msra.mxu0 0.0
        %3303 = vmatprep.subr.mxu0 0.0
        %3304 = vmatpush1.xpose.msra.mxu0 0.0
        %3305 = vmatprep.subr.mxu0 0.0
        %3306 = vmatpush1.xpose.msra.mxu0 0.0
        %3307 = vmatprep.subr.mxu0 0.0
        %3308 = vmatpush1.xpose.msra.mxu0 0.0
        %3309 = vmatprep.subr.mxu0 0.0
        %3310 = vmatpush1.xpose.msra.mxu0 0.0
        %3311 = vmatprep.mubr.f32.mxu0 0.0
        %3312 = vmatmul.mubr.f32.gmra.mrb[0].mxu0 %v3235
        %v3313 = vpop.f32.mrb[0].mxu0
        %v3314 = vadd.f32 %v919, %v3313
        %v3315 = vpop.f32.mrb[0].mxu0
        %3316 = vmatprep.mubr.f32.mxu0 0.0
        %3317 = vmatmul.mubr.f32.gmra.mrb[0].mxu0 %v3237
        %v3318 = vpop.f32.mrb[0].mxu0
        %v3319 = vadd.f32 %v920, %v3318
        %v3320 = vpop.f32.mrb[0].mxu0
        %3321 = vmatprep.mubr.f32.mxu0 0.0
        %3322 = vmatmul.mubr.f32.gmra.mrb[0].mxu0 %v3239
        %v3323 = vpop.f32.mrb[0].mxu0
        %v3324 = vadd.f32 %v921, %v3323
        %v3325 = vpop.f32.mrb[0].mxu0
        %3326 = vdwg.mxu0
        %v3327 = vsel %vm1225, %v3314, -inf
        %3328 = vmax.xlane.f32.xlu0 %v3327
        %v3329 = vpop.xlane.xlu0 %3328
        %v3330 = vsel %vm1225, %v3319, -inf
        %3331 = vmax.xlane.f32.xlu0 %v3330
        %v3332 = vpop.xlane.xlu0 %3331
        %v3333 = vsel %vm1225, %v3324, -inf
        %3334 = vmax.xlane.f32.xlu0 %v3333
        %v3335 = vpop.xlane.xlu0 %3334
        %v3336 = vsub.f32 %v3314, %v3329
        %v3337 = vsub.f32 %v3319, %v3332
        %v3338 = vsub.f32 %v3324, %v3335
        %v3339 = vmul.f32 %v3336, 1.442695
        %v3340 = vpow.pop %v3339
        %v3341 = vmul.f32 %v3337, 1.442695
        %v3342 = vpow.pop %v3341
        %v3343 = vmul.f32 %v3338, 1.442695
        %v3344 = vpow.pop %v3343
        %v3345 = vsel %vm1225, %v3340, 0.0
        %3346 = vadd.xlane.f32.xlu0 %v3345
        %v3347 = vpop.xlane.xlu0 %3346
        %v3348 = vsel %vm1225, %v3342, 0.0
        %3349 = vadd.xlane.f32.xlu0 %v3348
        %v3350 = vpop.xlane.xlu0 %3349
        %v3351 = vsel %vm1225, %v3344, 0.0
        %3352 = vadd.xlane.f32.xlu0 %v3351
        %v3353 = vpop.xlane.xlu0 %3352
        %v3354 = vrcp.pop %v3347
        %v3355 = vmul.f32 %v3340, %v3354
        %v3356 = vrcp.pop %v3350
        %v3357 = vmul.f32 %v3342, %v3356
        %v3358 = vrcp.pop %v3353
        %v3359 = vmul.f32 %v3344, %v3358
        %3360 = vrot.lane.b32.xlu0 %v2967, 56
        %v3361 = vpop.permute.xlu0 %3360
        %3362 = vrot.lane.b32.xlu0 %v2972, 56
        %v3363 = vpop.permute.xlu0 %3362
        %3364 = vrot.lane.b32.xlu0 %v2977, 56
        %v3365 = vpop.permute.xlu0 %3364
        %v3370 = vsel %vm1225, %v3355, 0
        %v3373 = vsel %vm1225, %v3357, 0
        %v3376 = vsel %vm1225, %v3359, 0
        %3378 = vmatprep.subr.mxu0 0.0
        %3379 = vmatpush1.msra.mxu0 %v3361
        %3380 = vmatprep.subr.mxu0 0.0
        %3381 = vmatpush1.msra.mxu0 %v3363
        %3382 = vmatprep.subr.mxu0 0.0
        %3383 = vmatpush1.msra.mxu0 %v3365
        %3384 = vmatprep.subr.mxu0 0.0
        %3385 = vmatpush1.msra.mxu0 0.0
        %3386 = vmatprep.subr.mxu0 0.0
        %3387 = vmatpush1.msra.mxu0 0.0
        %3388 = vmatprep.subr.mxu0 0.0
        %3389 = vmatpush1.msra.mxu0 0.0
        %3390 = vmatprep.subr.mxu0 0.0
        %3391 = vmatpush1.msra.mxu0 0.0
        %3392 = vmatprep.subr.mxu0 0.0
        %3393 = vmatpush1.msra.mxu0 0.0
        %3394 = vmatprep.subr.mxu0 0.0
        %3395 = vmatpush1.msra.mxu0 0.0
        %3396 = vmatprep.subr.mxu0 0.0
        %3397 = vmatpush1.msra.mxu0 0.0
        %3398 = vmatprep.subr.mxu0 0.0
        %3399 = vmatpush1.msra.mxu0 0.0
        %3400 = vmatprep.subr.mxu0 0.0
        %3401 = vmatpush1.msra.mxu0 0.0
        %3402 = vmatprep.subr.mxu0 0.0
        %3403 = vmatpush1.msra.mxu0 0.0
        %3404 = vmatprep.subr.mxu0 0.0
        %3405 = vmatpush1.msra.mxu0 0.0
        %3406 = vmatprep.subr.mxu0 0.0
        %3407 = vmatpush1.msra.mxu0 0.0
        %3408 = vmatprep.subr.mxu0 0.0
        %3409 = vmatpush1.msra.mxu0 0.0
        %3410 = vmatprep.subr.mxu0 0.0
        %3411 = vmatpush1.msra.mxu0 0.0
        %3412 = vmatprep.subr.mxu0 0.0
        %3413 = vmatpush1.msra.mxu0 0.0
        %3414 = vmatprep.subr.mxu0 0.0
        %3415 = vmatpush1.msra.mxu0 0.0
        %3416 = vmatprep.subr.mxu0 0.0
        %3417 = vmatpush1.msra.mxu0 0.0
        %3418 = vmatprep.subr.mxu0 0.0
        %3419 = vmatpush1.msra.mxu0 0.0
        %3420 = vmatprep.subr.mxu0 0.0
        %3421 = vmatpush1.msra.mxu0 0.0
        %3422 = vmatprep.subr.mxu0 0.0
        %3423 = vmatpush1.msra.mxu0 0.0
        %3424 = vmatprep.subr.mxu0 0.0
        %3425 = vmatpush1.msra.mxu0 0.0
        %3426 = vmatprep.subr.mxu0 0.0
        %3427 = vmatpush1.msra.mxu0 0.0
        %3428 = vmatprep.subr.mxu0 0.0
        %3429 = vmatpush1.msra.mxu0 0.0
        %3430 = vmatprep.subr.mxu0 0.0
        %3431 = vmatpush1.msra.mxu0 0.0
        %3432 = vmatprep.subr.mxu0 0.0
        %3433 = vmatpush1.msra.mxu0 0.0
        %3434 = vmatprep.subr.mxu0 0.0
        %3435 = vmatpush1.msra.mxu0 0.0
        %3436 = vmatprep.subr.mxu0 0.0
        %3437 = vmatpush1.msra.mxu0 0.0
        %3438 = vmatprep.subr.mxu0 0.0
        %3439 = vmatpush1.msra.mxu0 0.0
        %3440 = vmatprep.subr.mxu0 0.0
        %3441 = vmatpush1.msra.mxu0 0.0
        %3442 = vmatprep.mubr.f32.mxu0 0.0
        %3443 = vmatmul.mubr.f32.gmra.mrb[0].mxu0 %v3370
        %v3444 = vpop.f32.mrb[0].mxu0
        %v3445 = vadd.f32 0.0, %v3444
        %v3446 = vpop.f32.mrb[0].mxu0
        %3447 = vmatprep.mubr.f32.mxu0 0.0
        %3448 = vmatmul.mubr.f32.gmra.mrb[0].mxu0 %v3373
        %v3449 = vpop.f32.mrb[0].mxu0
        %v3450 = vadd.f32 0.0, %v3449
        %v3451 = vpop.f32.mrb[0].mxu0
        %3452 = vmatprep.mubr.f32.mxu0 0.0
        %3453 = vmatmul.mubr.f32.gmra.mrb[0].mxu0 %v3376
        %v3454 = vpop.f32.mrb[0].mxu0
        %v3455 = vadd.f32 0.0, %v3454
        %v3456 = vpop.f32.mrb[0].mxu0
        %3457 = vdwg.mxu0
        %v3459 = vsel %vm1129, %v3445, 0
        %v3462 = vsel %vm1129, %v3450, 0
        %v3465 = vsel %vm1129, %v3455, 0
        %3467 = vmatprep.subr.mxu0 0.0
        %3468 = vmatpush1.msra.mxu0 %v2982
        %3469 = vmatprep.subr.mxu0 0.0
        %3470 = vmatpush1.msra.mxu0 0.0
        %3471 = vmatprep.subr.mxu0 0.0
        %3472 = vmatpush1.msra.mxu0 0.0
        %3473 = vmatprep.subr.mxu0 0.0
        %3474 = vmatpush1.msra.mxu0 0.0
        %3475 = vmatprep.subr.mxu0 0.0
        %3476 = vmatpush1.msra.mxu0 0.0
        %3477 = vmatprep.subr.mxu0 0.0
        %3478 = vmatpush1.msra.mxu0 0.0
        %3479 = vmatprep.subr.mxu0 0.0
        %3480 = vmatpush1.msra.mxu0 0.0
        %3481 = vmatprep.subr.mxu0 0.0
        %3482 = vmatpush1.msra.mxu0 0.0
        %3483 = vmatprep.subr.mxu0 0.0
        %3484 = vmatpush1.msra.mxu0 0.0
        %3485 = vmatprep.subr.mxu0 0.0
        %3486 = vmatpush1.msra.mxu0 0.0
        %3487 = vmatprep.subr.mxu0 0.0
        %3488 = vmatpush1.msra.mxu0 0.0
        %3489 = vmatprep.subr.mxu0 0.0
        %3490 = vmatpush1.msra.mxu0 0.0
        %3491 = vmatprep.subr.mxu0 0.0
        %3492 = vmatpush1.msra.mxu0 0.0
        %3493 = vmatprep.subr.mxu0 0.0
        %3494 = vmatpush1.msra.mxu0 0.0
        %3495 = vmatprep.subr.mxu0 0.0
        %3496 = vmatpush1.msra.mxu0 0.0
        %3497 = vmatprep.subr.mxu0 0.0
        %3498 = vmatpush1.msra.mxu0 0.0
        %3499 = vmatprep.subr.mxu0 0.0
        %3500 = vmatpush1.msra.mxu0 0.0
        %3501 = vmatprep.subr.mxu0 0.0
        %3502 = vmatpush1.msra.mxu0 0.0
        %3503 = vmatprep.subr.mxu0 0.0
        %3504 = vmatpush1.msra.mxu0 0.0
        %3505 = vmatprep.subr.mxu0 0.0
        %3506 = vmatpush1.msra.mxu0 0.0
        %3507 = vmatprep.subr.mxu0 0.0
        %3508 = vmatpush1.msra.mxu0 0.0
        %3509 = vmatprep.subr.mxu0 0.0
        %3510 = vmatpush1.msra.mxu0 0.0
        %3511 = vmatprep.subr.mxu0 0.0
        %3512 = vmatpush1.msra.mxu0 0.0
        %3513 = vmatprep.subr.mxu0 0.0
        %3514 = vmatpush1.msra.mxu0 0.0
        %3515 = vmatprep.subr.mxu0 0.0
        %3516 = vmatpush1.msra.mxu0 0.0
        %3517 = vmatprep.subr.mxu0 0.0
        %3518 = vmatpush1.msra.mxu0 0.0
        %3519 = vmatprep.subr.mxu0 0.0
        %3520 = vmatpush1.msra.mxu0 0.0
        %3521 = vmatprep.subr.mxu0 0.0
        %3522 = vmatpush1.msra.mxu0 0.0
        %3523 = vmatprep.subr.mxu0 0.0
        %3524 = vmatpush1.msra.mxu0 0.0
        %3525 = vmatprep.subr.mxu0 0.0
        %3526 = vmatpush1.msra.mxu0 0.0
        %3527 = vmatprep.subr.mxu0 0.0
        %3528 = vmatpush1.msra.mxu0 0.0
        %3529 = vmatprep.subr.mxu0 0.0
        %3530 = vmatpush1.msra.mxu0 0.0
        %3531 = vmatprep.mubr.f32.mxu0 0.0
        %3532 = vmatmul.mubr.f32.gmra.mrb[0].mxu0 %v3459
        %v3533 = vpop.f32.mrb[0].mxu0
        %v3534 = vadd.f32 0.0, %v3533
        %v3535 = vpop.f32.mrb[0].mxu0
        %3536 = vmatprep.mubr.f32.mxu0 0.0
        %3537 = vmatmul.mubr.f32.gmra.mrb[0].mxu0 %v3462
        %v3538 = vpop.f32.mrb[0].mxu0
        %v3539 = vadd.f32 0.0, %v3538
        %v3540 = vpop.f32.mrb[0].mxu0
        %3541 = vmatprep.mubr.f32.mxu0 0.0
        %3542 = vmatmul.mubr.f32.gmra.mrb[0].mxu0 %v3465
        %v3543 = vpop.f32.mrb[0].mxu0
        %v3544 = vadd.f32 0.0, %v3543
        %v3545 = vpop.f32.mrb[0].mxu0
        %3546 = vdwg.mxu0
        %v3548 = vsel %vm1129, %v3210, 0
        %v3551 = vsel %vm1129, %v3215, 0
        %v3554 = vsel %vm1129, %v3220, 0
        %3556 = vmatprep.subr.mxu0 0.0
        %3557 = vmatpush1.msra.mxu0 %v2981
        %3558 = vmatprep.subr.mxu0 0.0
        %3559 = vmatpush1.msra.mxu0 0.0
        %3560 = vmatprep.subr.mxu0 0.0
        %3561 = vmatpush1.msra.mxu0 0.0
        %3562 = vmatprep.subr.mxu0 0.0
        %3563 = vmatpush1.msra.mxu0 0.0
        %3564 = vmatprep.subr.mxu0 0.0
        %3565 = vmatpush1.msra.mxu0 0.0
        %3566 = vmatprep.subr.mxu0 0.0
        %3567 = vmatpush1.msra.mxu0 0.0
        %3568 = vmatprep.subr.mxu0 0.0
        %3569 = vmatpush1.msra.mxu0 0.0
        %3570 = vmatprep.subr.mxu0 0.0
        %3571 = vmatpush1.msra.mxu0 0.0
        %3572 = vmatprep.subr.mxu0 0.0
        %3573 = vmatpush1.msra.mxu0 0.0
        %3574 = vmatprep.subr.mxu0 0.0
        %3575 = vmatpush1.msra.mxu0 0.0
        %3576 = vmatprep.subr.mxu0 0.0
        %3577 = vmatpush1.msra.mxu0 0.0
        %3578 = vmatprep.subr.mxu0 0.0
        %3579 = vmatpush1.msra.mxu0 0.0
        %3580 = vmatprep.subr.mxu0 0.0
        %3581 = vmatpush1.msra.mxu0 0.0
        %3582 = vmatprep.subr.mxu0 0.0
        %3583 = vmatpush1.msra.mxu0 0.0
        %3584 = vmatprep.subr.mxu0 0.0
        %3585 = vmatpush1.msra.mxu0 0.0
        %3586 = vmatprep.subr.mxu0 0.0
        %3587 = vmatpush1.msra.mxu0 0.0
        %3588 = vmatprep.subr.mxu0 0.0
        %3589 = vmatpush1.msra.mxu0 0.0
        %3590 = vmatprep.subr.mxu0 0.0
        %3591 = vmatpush1.msra.mxu0 0.0
        %3592 = vmatprep.subr.mxu0 0.0
        %3593 = vmatpush1.msra.mxu0 0.0
        %3594 = vmatprep.subr.mxu0 0.0
        %3595 = vmatpush1.msra.mxu0 0.0
        %3596 = vmatprep.subr.mxu0 0.0
        %3597 = vmatpush1.msra.mxu0 0.0
        %3598 = vmatprep.subr.mxu0 0.0
        %3599 = vmatpush1.msra.mxu0 0.0
        %3600 = vmatprep.subr.mxu0 0.0
        %3601 = vmatpush1.msra.mxu0 0.0
        %3602 = vmatprep.subr.mxu0 0.0
        %3603 = vmatpush1.msra.mxu0 0.0
        %3604 = vmatprep.subr.mxu0 0.0
        %3605 = vmatpush1.msra.mxu0 0.0
        %3606 = vmatprep.subr.mxu0 0.0
        %3607 = vmatpush1.msra.mxu0 0.0
        %3608 = vmatprep.subr.mxu0 0.0
        %3609 = vmatpush1.msra.mxu0 0.0
        %3610 = vmatprep.subr.mxu0 0.0
        %3611 = vmatpush1.msra.mxu0 0.0
        %3612 = vmatprep.subr.mxu0 0.0
        %3613 = vmatpush1.msra.mxu0 0.0
        %3614 = vmatprep.subr.mxu0 0.0
        %3615 = vmatpush1.msra.mxu0 0.0
        %3616 = vmatprep.subr.mxu0 0.0
        %3617 = vmatpush1.msra.mxu0 0.0
        %3618 = vmatprep.subr.mxu0 0.0
        %3619 = vmatpush1.msra.mxu0 0.0
        %3620 = vmatprep.mubr.f32.mxu0 0.0
        %3621 = vmatmul.mubr.f32.gmra.mrb[0].mxu0 %v3548
        %v3622 = vpop.f32.mrb[0].mxu0
        %v3623 = vadd.f32 %v3534, %v3622
        %v3624 = vpop.f32.mrb[0].mxu0
        %3625 = vmatprep.mubr.f32.mxu0 0.0
        %3626 = vmatmul.mubr.f32.gmra.mrb[0].mxu0 %v3551
        %v3627 = vpop.f32.mrb[0].mxu0
        %v3628 = vadd.f32 %v3539, %v3627
        %v3629 = vpop.f32.mrb[0].mxu0
        %3630 = vmatprep.mubr.f32.mxu0 0.0
        %3631 = vmatmul.mubr.f32.gmra.mrb[0].mxu0 %v3554
        %v3632 = vpop.f32.mrb[0].mxu0
        %v3633 = vadd.f32 %v3544, %v3632
        %v3634 = vpop.f32.mrb[0].mxu0
        %3635 = vdwg.mxu0
        %3636 = vrot.lane.b32.xlu0 %v2985, 112
        %v3637 = vpop.permute.xlu0 %3636
        %3638 = vrot.lane.b32.xlu0 %v2986, 112
        %v3639 = vpop.permute.xlu0 %3638
        %3640 = vrot.lane.b32.xlu0 %v2987, 112
        %v3641 = vpop.permute.xlu0 %3640
        %3642 = vrot.lane.b32.xlu0 %v2967, 80
        %v3643 = vpop.permute.xlu0 %3642
        %3644 = vrot.lane.b32.xlu0 %v2972, 80
        %v3645 = vpop.permute.xlu0 %3644
        %3646 = vrot.lane.b32.xlu0 %v2977, 80
        %v3647 = vpop.permute.xlu0 %3646
        %v3648 = vsel %vm1129, %v3637, 0
        %v3650 = vsel %vm1129, %v3639, 0
        %v3652 = vsel %vm1129, %v3641, 0
        %v3654 = vsel %vm1129, %v3643, 0
        %v3656 = vsel %vm1129, %v3645, 0
        %v3658 = vsel %vm1129, %v3647, 0
        %3660 = vmatprep.subr.mxu0 0.0
        %3661 = vmatpush1.xpose.msra.mxu0 %v3654
        %3662 = vmatprep.subr.mxu0 0.0
        %3663 = vmatpush1.xpose.msra.mxu0 %v3656
        %3664 = vmatprep.subr.mxu0 0.0
        %3665 = vmatpush1.xpose.msra.mxu0 %v3658
        %3666 = vmatprep.subr.mxu0 0.0
        %3667 = vmatpush1.xpose.msra.mxu0 0.0
        %3668 = vmatprep.subr.mxu0 0.0
        %3669 = vmatpush1.xpose.msra.mxu0 0.0
        %3670 = vmatprep.subr.mxu0 0.0
        %3671 = vmatpush1.xpose.msra.mxu0 0.0
        %3672 = vmatprep.subr.mxu0 0.0
        %3673 = vmatpush1.xpose.msra.mxu0 0.0
        %3674 = vmatprep.subr.mxu0 0.0
        %3675 = vmatpush1.xpose.msra.mxu0 0.0
        %3676 = vmatprep.subr.mxu0 0.0
        %3677 = vmatpush1.xpose.msra.mxu0 0.0
        %3678 = vmatprep.subr.mxu0 0.0
        %3679 = vmatpush1.xpose.msra.mxu0 0.0
        %3680 = vmatprep.subr.mxu0 0.0
        %3681 = vmatpush1.xpose.msra.mxu0 0.0
        %3682 = vmatprep.subr.mxu0 0.0
        %3683 = vmatpush1.xpose.msra.mxu0 0.0
        %3684 = vmatprep.subr.mxu0 0.0
        %3685 = vmatpush1.xpose.msra.mxu0 0.0
        %3686 = vmatprep.subr.mxu0 0.0
        %3687 = vmatpush1.xpose.msra.mxu0 0.0
        %3688 = vmatprep.subr.mxu0 0.0
        %3689 = vmatpush1.xpose.msra.mxu0 0.0
        %3690 = vmatprep.subr.mxu0 0.0
        %3691 = vmatpush1.xpose.msra.mxu0 0.0
        %3692 = vmatprep.subr.mxu0 0.0
        %3693 = vmatpush1.xpose.msra.mxu0 0.0
        %3694 = vmatprep.subr.mxu0 0.0
        %3695 = vmatpush1.xpose.msra.mxu0 0.0
        %3696 = vmatprep.subr.mxu0 0.0
        %3697 = vmatpush1.xpose.msra.mxu0 0.0
        %3698 = vmatprep.subr.mxu0 0.0
        %3699 = vmatpush1.xpose.msra.mxu0 0.0
        %3700 = vmatprep.subr.mxu0 0.0
        %3701 = vmatpush1.xpose.msra.mxu0 0.0
        %3702 = vmatprep.subr.mxu0 0.0
        %3703 = vmatpush1.xpose.msra.mxu0 0.0
        %3704 = vmatprep.subr.mxu0 0.0
        %3705 = vmatpush1.xpose.msra.mxu0 0.0
        %3706 = vmatprep.subr.mxu0 0.0
        %3707 = vmatpush1.xpose.msra.mxu0 0.0
        %3708 = vmatprep.subr.mxu0 0.0
        %3709 = vmatpush1.xpose.msra.mxu0 0.0
        %3710 = vmatprep.subr.mxu0 0.0
        %3711 = vmatpush1.xpose.msra.mxu0 0.0
        %3712 = vmatprep.subr.mxu0 0.0
        %3713 = vmatpush1.xpose.msra.mxu0 0.0
        %3714 = vmatprep.subr.mxu0 0.0
        %3715 = vmatpush1.xpose.msra.mxu0 0.0
        %3716 = vmatprep.subr.mxu0 0.0
        %3717 = vmatpush1.xpose.msra.mxu0 0.0
        %3718 = vmatprep.subr.mxu0 0.0
        %3719 = vmatpush1.xpose.msra.mxu0 0.0
        %3720 = vmatprep.subr.mxu0 0.0
        %3721 = vmatpush1.xpose.msra.mxu0 0.0
        %3722 = vmatprep.subr.mxu0 0.0
        %3723 = vmatpush1.xpose.msra.mxu0 0.0
        %3724 = vmatprep.mubr.f32.mxu0 0.0
        %3725 = vmatmul.mubr.f32.gmra.mrb[0].mxu0 %v3648
        %v3726 = vpop.f32.mrb[0].mxu0
        %v3727 = vadd.f32 %v919, %v3726
        %v3728 = vpop.f32.mrb[0].mxu0
        %3729 = vmatprep.mubr.f32.mxu0 0.0
        %3730 = vmatmul.mubr.f32.gmra.mrb[0].mxu0 %v3650
        %v3731 = vpop.f32.mrb[0].mxu0
        %v3732 = vadd.f32 %v920, %v3731
        %v3733 = vpop.f32.mrb[0].mxu0
        %3734 = vmatprep.mubr.f32.mxu0 0.0
        %3735 = vmatmul.mubr.f32.gmra.mrb[0].mxu0 %v3652
        %v3736 = vpop.f32.mrb[0].mxu0
        %v3737 = vadd.f32 %v921, %v3736
        %v3738 = vpop.f32.mrb[0].mxu0
        %3739 = vdwg.mxu0
        %v3740 = vsel %vm1225, %v3727, -inf
        %3741 = vmax.xlane.f32.xlu0 %v3740
        %v3742 = vpop.xlane.xlu0 %3741
        %v3743 = vsel %vm1225, %v3732, -inf
        %3744 = vmax.xlane.f32.xlu0 %v3743
        %v3745 = vpop.xlane.xlu0 %3744
        %v3746 = vsel %vm1225, %v3737, -inf
        %3747 = vmax.xlane.f32.xlu0 %v3746
        %v3748 = vpop.xlane.xlu0 %3747
        %v3749 = vsub.f32 %v3727, %v3742
        %v3750 = vsub.f32 %v3732, %v3745
        %v3751 = vsub.f32 %v3737, %v3748
        %v3752 = vmul.f32 %v3749, 1.442695
        %v3753 = vpow.pop %v3752
        %v3754 = vmul.f32 %v3750, 1.442695
        %v3755 = vpow.pop %v3754
        %v3756 = vmul.f32 %v3751, 1.442695
        %v3757 = vpow.pop %v3756
        %v3758 = vsel %vm1225, %v3753, 0.0
        %3759 = vadd.xlane.f32.xlu0 %v3758
        %v3760 = vpop.xlane.xlu0 %3759
        %v3761 = vsel %vm1225, %v3755, 0.0
        %3762 = vadd.xlane.f32.xlu0 %v3761
        %v3763 = vpop.xlane.xlu0 %3762
        %v3764 = vsel %vm1225, %v3757, 0.0
        %3765 = vadd.xlane.f32.xlu0 %v3764
        %v3766 = vpop.xlane.xlu0 %3765
        %v3767 = vrcp.pop %v3760
        %v3768 = vmul.f32 %v3753, %v3767
        %v3769 = vrcp.pop %v3763
        %v3770 = vmul.f32 %v3755, %v3769
        %v3771 = vrcp.pop %v3766
        %v3772 = vmul.f32 %v3757, %v3771
        %3773 = vrot.lane.b32.xlu0 %v2967, 48
        %v3774 = vpop.permute.xlu0 %3773
        %3775 = vrot.lane.b32.xlu0 %v2972, 48
        %v3776 = vpop.permute.xlu0 %3775
        %3777 = vrot.lane.b32.xlu0 %v2977, 48
        %v3778 = vpop.permute.xlu0 %3777
        %v3783 = vsel %vm1225, %v3768, 0
        %v3786 = vsel %vm1225, %v3770, 0
        %v3789 = vsel %vm1225, %v3772, 0
        %3791 = vmatprep.subr.mxu0 0.0
        %3792 = vmatpush1.msra.mxu0 %v3774
        %3793 = vmatprep.subr.mxu0 0.0
        %3794 = vmatpush1.msra.mxu0 %v3776
        %3795 = vmatprep.subr.mxu0 0.0
        %3796 = vmatpush1.msra.mxu0 %v3778
        %3797 = vmatprep.subr.mxu0 0.0
        %3798 = vmatpush1.msra.mxu0 0.0
        %3799 = vmatprep.subr.mxu0 0.0
        %3800 = vmatpush1.msra.mxu0 0.0
        %3801 = vmatprep.subr.mxu0 0.0
        %3802 = vmatpush1.msra.mxu0 0.0
        %3803 = vmatprep.subr.mxu0 0.0
        %3804 = vmatpush1.msra.mxu0 0.0
        %3805 = vmatprep.subr.mxu0 0.0
        %3806 = vmatpush1.msra.mxu0 0.0
        %3807 = vmatprep.subr.mxu0 0.0
        %3808 = vmatpush1.msra.mxu0 0.0
        %3809 = vmatprep.subr.mxu0 0.0
        %3810 = vmatpush1.msra.mxu0 0.0
        %3811 = vmatprep.subr.mxu0 0.0
        %3812 = vmatpush1.msra.mxu0 0.0
        %3813 = vmatprep.subr.mxu0 0.0
        %3814 = vmatpush1.msra.mxu0 0.0
        %3815 = vmatprep.subr.mxu0 0.0
        %3816 = vmatpush1.msra.mxu0 0.0
        %3817 = vmatprep.subr.mxu0 0.0
        %3818 = vmatpush1.msra.mxu0 0.0
        %3819 = vmatprep.subr.mxu0 0.0
        %3820 = vmatpush1.msra.mxu0 0.0
        %3821 = vmatprep.subr.mxu0 0.0
        %3822 = vmatpush1.msra.mxu0 0.0
        %3823 = vmatprep.subr.mxu0 0.0
        %3824 = vmatpush1.msra.mxu0 0.0
        %3825 = vmatprep.subr.mxu0 0.0
        %3826 = vmatpush1.msra.mxu0 0.0
        %3827 = vmatprep.subr.mxu0 0.0
        %3828 = vmatpush1.msra.mxu0 0.0
        %3829 = vmatprep.subr.mxu0 0.0
        %3830 = vmatpush1.msra.mxu0 0.0
        %3831 = vmatprep.subr.mxu0 0.0
        %3832 = vmatpush1.msra.mxu0 0.0
        %3833 = vmatprep.subr.mxu0 0.0
        %3834 = vmatpush1.msra.mxu0 0.0
        %3835 = vmatprep.subr.mxu0 0.0
        %3836 = vmatpush1.msra.mxu0 0.0
        %3837 = vmatprep.subr.mxu0 0.0
        %3838 = vmatpush1.msra.mxu0 0.0
        %3839 = vmatprep.subr.mxu0 0.0
        %3840 = vmatpush1.msra.mxu0 0.0
        %3841 = vmatprep.subr.mxu0 0.0
        %3842 = vmatpush1.msra.mxu0 0.0
        %3843 = vmatprep.subr.mxu0 0.0
        %3844 = vmatpush1.msra.mxu0 0.0
        %3845 = vmatprep.subr.mxu0 0.0
        %3846 = vmatpush1.msra.mxu0 0.0
        %3847 = vmatprep.subr.mxu0 0.0
        %3848 = vmatpush1.msra.mxu0 0.0
        %3849 = vmatprep.subr.mxu0 0.0
        %3850 = vmatpush1.msra.mxu0 0.0
        %3851 = vmatprep.subr.mxu0 0.0
        %3852 = vmatpush1.msra.mxu0 0.0
        %3853 = vmatprep.subr.mxu0 0.0
        %3854 = vmatpush1.msra.mxu0 0.0
        %3855 = vmatprep.mubr.f32.mxu0 0.0
        %3856 = vmatmul.mubr.f32.gmra.mrb[0].mxu0 %v3783
        %v3857 = vpop.f32.mrb[0].mxu0
        %v3858 = vadd.f32 0.0, %v3857
        %v3859 = vpop.f32.mrb[0].mxu0
        %3860 = vmatprep.mubr.f32.mxu0 0.0
        %3861 = vmatmul.mubr.f32.gmra.mrb[0].mxu0 %v3786
        %v3862 = vpop.f32.mrb[0].mxu0
        %v3863 = vadd.f32 0.0, %v3862
        %v3864 = vpop.f32.mrb[0].mxu0
        %3865 = vmatprep.mubr.f32.mxu0 0.0
        %3866 = vmatmul.mubr.f32.gmra.mrb[0].mxu0 %v3789
        %v3867 = vpop.f32.mrb[0].mxu0
        %v3868 = vadd.f32 0.0, %v3867
        %v3869 = vpop.f32.mrb[0].mxu0
        %3870 = vdwg.mxu0
        %v3872 = vsel %vm1129, %v3858, 0
        %v3875 = vsel %vm1129, %v3863, 0
        %v3878 = vsel %vm1129, %v3868, 0
        %3880 = vmatprep.subr.mxu0 0.0
        %3881 = vmatpush1.msra.mxu0 %v2983
        %3882 = vmatprep.subr.mxu0 0.0
        %3883 = vmatpush1.msra.mxu0 0.0
        %3884 = vmatprep.subr.mxu0 0.0
        %3885 = vmatpush1.msra.mxu0 0.0
        %3886 = vmatprep.subr.mxu0 0.0
        %3887 = vmatpush1.msra.mxu0 0.0
        %3888 = vmatprep.subr.mxu0 0.0
        %3889 = vmatpush1.msra.mxu0 0.0
        %3890 = vmatprep.subr.mxu0 0.0
        %3891 = vmatpush1.msra.mxu0 0.0
        %3892 = vmatprep.subr.mxu0 0.0
        %3893 = vmatpush1.msra.mxu0 0.0
        %3894 = vmatprep.subr.mxu0 0.0
        %3895 = vmatpush1.msra.mxu0 0.0
        %3896 = vmatprep.subr.mxu0 0.0
        %3897 = vmatpush1.msra.mxu0 0.0
        %3898 = vmatprep.subr.mxu0 0.0
        %3899 = vmatpush1.msra.mxu0 0.0
        %3900 = vmatprep.subr.mxu0 0.0
        %3901 = vmatpush1.msra.mxu0 0.0
        %3902 = vmatprep.subr.mxu0 0.0
        %3903 = vmatpush1.msra.mxu0 0.0
        %3904 = vmatprep.subr.mxu0 0.0
        %3905 = vmatpush1.msra.mxu0 0.0
        %3906 = vmatprep.subr.mxu0 0.0
        %3907 = vmatpush1.msra.mxu0 0.0
        %3908 = vmatprep.subr.mxu0 0.0
        %3909 = vmatpush1.msra.mxu0 0.0
        %3910 = vmatprep.subr.mxu0 0.0
        %3911 = vmatpush1.msra.mxu0 0.0
        %3912 = vmatprep.subr.mxu0 0.0
        %3913 = vmatpush1.msra.mxu0 0.0
        %3914 = vmatprep.subr.mxu0 0.0
        %3915 = vmatpush1.msra.mxu0 0.0
        %3916 = vmatprep.subr.mxu0 0.0
        %3917 = vmatpush1.msra.mxu0 0.0
        %3918 = vmatprep.subr.mxu0 0.0
        %3919 = vmatpush1.msra.mxu0 0.0
        %3920 = vmatprep.subr.mxu0 0.0
        %3921 = vmatpush1.msra.mxu0 0.0
        %3922 = vmatprep.subr.mxu0 0.0
        %3923 = vmatpush1.msra.mxu0 0.0
        %3924 = vmatprep.subr.mxu0 0.0
        %3925 = vmatpush1.msra.mxu0 0.0
        %3926 = vmatprep.subr.mxu0 0.0
        %3927 = vmatpush1.msra.mxu0 0.0
        %3928 = vmatprep.subr.mxu0 0.0
        %3929 = vmatpush1.msra.mxu0 0.0
        %3930 = vmatprep.subr.mxu0 0.0
        %3931 = vmatpush1.msra.mxu0 0.0
        %3932 = vmatprep.subr.mxu0 0.0
        %3933 = vmatpush1.msra.mxu0 0.0
        %3934 = vmatprep.subr.mxu0 0.0
        %3935 = vmatpush1.msra.mxu0 0.0
        %3936 = vmatprep.subr.mxu0 0.0
        %3937 = vmatpush1.msra.mxu0 0.0
        %3938 = vmatprep.subr.mxu0 0.0
        %3939 = vmatpush1.msra.mxu0 0.0
        %3940 = vmatprep.subr.mxu0 0.0
        %3941 = vmatpush1.msra.mxu0 0.0
        %3942 = vmatprep.subr.mxu0 0.0
        %3943 = vmatpush1.msra.mxu0 0.0
        %3944 = vmatprep.mubr.f32.mxu0 0.0
        %3945 = vmatmul.mubr.f32.gmra.mrb[0].mxu0 %v3872
        %v3946 = vpop.f32.mrb[0].mxu0
        %v3947 = vadd.f32 0.0, %v3946
        %v3948 = vpop.f32.mrb[0].mxu0
        %3949 = vmatprep.mubr.f32.mxu0 0.0
        %3950 = vmatmul.mubr.f32.gmra.mrb[0].mxu0 %v3875
        %v3951 = vpop.f32.mrb[0].mxu0
        %v3952 = vadd.f32 0.0, %v3951
        %v3953 = vpop.f32.mrb[0].mxu0
        %3954 = vmatprep.mubr.f32.mxu0 0.0
        %3955 = vmatmul.mubr.f32.gmra.mrb[0].mxu0 %v3878
        %v3956 = vpop.f32.mrb[0].mxu0
        %v3957 = vadd.f32 0.0, %v3956
        %v3958 = vpop.f32.mrb[0].mxu0
        %3959 = vdwg.mxu0
        %v3960 = vadd.f32 %v3623, %v3947
        %v3961 = vadd.f32 %v3628, %v3952
        %v3962 = vadd.f32 %v3633, %v3957
        %3963 = vrot.lane.b32.xlu0 %v2985, 104
        %v3964 = vpop.permute.xlu0 %3963
        %3965 = vrot.lane.b32.xlu0 %v2986, 104
        %v3966 = vpop.permute.xlu0 %3965
        %3967 = vrot.lane.b32.xlu0 %v2987, 104
        %v3968 = vpop.permute.xlu0 %3967
        %3969 = vrot.lane.b32.xlu0 %v2967, 72
        %v3970 = vpop.permute.xlu0 %3969
        %3971 = vrot.lane.b32.xlu0 %v2972, 72
        %v3972 = vpop.permute.xlu0 %3971
        %3973 = vrot.lane.b32.xlu0 %v2977, 72
        %v3974 = vpop.permute.xlu0 %3973
        %v3975 = vsel %vm1129, %v3964, 0
        %v3977 = vsel %vm1129, %v3966, 0
        %v3979 = vsel %vm1129, %v3968, 0
        %v3981 = vsel %vm1129, %v3970, 0
        %v3983 = vsel %vm1129, %v3972, 0
        %v3985 = vsel %vm1129, %v3974, 0
        %3987 = vmatprep.subr.mxu0 0.0
        %3988 = vmatpush1.xpose.msra.mxu0 %v3981
        %3989 = vmatprep.subr.mxu0 0.0
        %3990 = vmatpush1.xpose.msra.mxu0 %v3983
        %3991 = vmatprep.subr.mxu0 0.0
        %3992 = vmatpush1.xpose.msra.mxu0 %v3985
        %3993 = vmatprep.subr.mxu0 0.0
        %3994 = vmatpush1.xpose.msra.mxu0 0.0
        %3995 = vmatprep.subr.mxu0 0.0
        %3996 = vmatpush1.xpose.msra.mxu0 0.0
        %3997 = vmatprep.subr.mxu0 0.0
        %3998 = vmatpush1.xpose.msra.mxu0 0.0
        %3999 = vmatprep.subr.mxu0 0.0
        %4000 = vmatpush1.xpose.msra.mxu0 0.0
        %4001 = vmatprep.subr.mxu0 0.0
        %4002 = vmatpush1.xpose.msra.mxu0 0.0
        %4003 = vmatprep.subr.mxu0 0.0
        %4004 = vmatpush1.xpose.msra.mxu0 0.0
        %4005 = vmatprep.subr.mxu0 0.0
        %4006 = vmatpush1.xpose.msra.mxu0 0.0
        %4007 = vmatprep.subr.mxu0 0.0
        %4008 = vmatpush1.xpose.msra.mxu0 0.0
        %4009 = vmatprep.subr.mxu0 0.0
        %4010 = vmatpush1.xpose.msra.mxu0 0.0
        %4011 = vmatprep.subr.mxu0 0.0
        %4012 = vmatpush1.xpose.msra.mxu0 0.0
        %4013 = vmatprep.subr.mxu0 0.0
        %4014 = vmatpush1.xpose.msra.mxu0 0.0
        %4015 = vmatprep.subr.mxu0 0.0
        %4016 = vmatpush1.xpose.msra.mxu0 0.0
        %4017 = vmatprep.subr.mxu0 0.0
        %4018 = vmatpush1.xpose.msra.mxu0 0.0
        %4019 = vmatprep.subr.mxu0 0.0
        %4020 = vmatpush1.xpose.msra.mxu0 0.0
        %4021 = vmatprep.subr.mxu0 0.0
        %4022 = vmatpush1.xpose.msra.mxu0 0.0
        %4023 = vmatprep.subr.mxu0 0.0
        %4024 = vmatpush1.xpose.msra.mxu0 0.0
        %4025 = vmatprep.subr.mxu0 0.0
        %4026 = vmatpush1.xpose.msra.mxu0 0.0
        %4027 = vmatprep.subr.mxu0 0.0
        %4028 = vmatpush1.xpose.msra.mxu0 0.0
        %4029 = vmatprep.subr.mxu0 0.0
        %4030 = vmatpush1.xpose.msra.mxu0 0.0
        %4031 = vmatprep.subr.mxu0 0.0
        %4032 = vmatpush1.xpose.msra.mxu0 0.0
        %4033 = vmatprep.subr.mxu0 0.0
        %4034 = vmatpush1.xpose.msra.mxu0 0.0
        %4035 = vmatprep.subr.mxu0 0.0
        %4036 = vmatpush1.xpose.msra.mxu0 0.0
        %4037 = vmatprep.subr.mxu0 0.0
        %4038 = vmatpush1.xpose.msra.mxu0 0.0
        %4039 = vmatprep.subr.mxu0 0.0
        %4040 = vmatpush1.xpose.msra.mxu0 0.0
        %4041 = vmatprep.subr.mxu0 0.0
        %4042 = vmatpush1.xpose.msra.mxu0 0.0
        %4043 = vmatprep.subr.mxu0 0.0
        %4044 = vmatpush1.xpose.msra.mxu0 0.0
        %4045 = vmatprep.subr.mxu0 0.0
        %4046 = vmatpush1.xpose.msra.mxu0 0.0
        %4047 = vmatprep.subr.mxu0 0.0
        %4048 = vmatpush1.xpose.msra.mxu0 0.0
        %4049 = vmatprep.subr.mxu0 0.0
        %4050 = vmatpush1.xpose.msra.mxu0 0.0
        %4051 = vmatprep.mubr.f32.mxu0 0.0
        %4052 = vmatmul.mubr.f32.gmra.mrb[0].mxu0 %v3975
        %v4053 = vpop.f32.mrb[0].mxu0
        %v4054 = vadd.f32 %v919, %v4053
        %v4055 = vpop.f32.mrb[0].mxu0
        %4056 = vmatprep.mubr.f32.mxu0 0.0
        %4057 = vmatmul.mubr.f32.gmra.mrb[0].mxu0 %v3977
        %v4058 = vpop.f32.mrb[0].mxu0
        %v4059 = vadd.f32 %v920, %v4058
        %v4060 = vpop.f32.mrb[0].mxu0
        %4061 = vmatprep.mubr.f32.mxu0 0.0
        %4062 = vmatmul.mubr.f32.gmra.mrb[0].mxu0 %v3979
        %v4063 = vpop.f32.mrb[0].mxu0
        %v4064 = vadd.f32 %v921, %v4063
        %v4065 = vpop.f32.mrb[0].mxu0
        %4066 = vdwg.mxu0
        %v4067 = vsel %vm1225, %v4054, -inf
        %4068 = vmax.xlane.f32.xlu0 %v4067
        %v4069 = vpop.xlane.xlu0 %4068
        %v4070 = vsel %vm1225, %v4059, -inf
        %4071 = vmax.xlane.f32.xlu0 %v4070
        %v4072 = vpop.xlane.xlu0 %4071
        %v4073 = vsel %vm1225, %v4064, -inf
        %4074 = vmax.xlane.f32.xlu0 %v4073
        %v4075 = vpop.xlane.xlu0 %4074
        %v4076 = vsub.f32 %v4054, %v4069
        %v4077 = vsub.f32 %v4059, %v4072
        %v4078 = vsub.f32 %v4064, %v4075
        %v4079 = vmul.f32 %v4076, 1.442695
        %v4080 = vpow.pop %v4079
        %v4081 = vmul.f32 %v4077, 1.442695
        %v4082 = vpow.pop %v4081
        %v4083 = vmul.f32 %v4078, 1.442695
        %v4084 = vpow.pop %v4083
        %v4085 = vsel %vm1225, %v4080, 0.0
        %4086 = vadd.xlane.f32.xlu0 %v4085
        %v4087 = vpop.xlane.xlu0 %4086
        %v4088 = vsel %vm1225, %v4082, 0.0
        %4089 = vadd.xlane.f32.xlu0 %v4088
        %v4090 = vpop.xlane.xlu0 %4089
        %v4091 = vsel %vm1225, %v4084, 0.0
        %4092 = vadd.xlane.f32.xlu0 %v4091
        %v4093 = vpop.xlane.xlu0 %4092
        %v4094 = vrcp.pop %v4087
        %v4095 = vmul.f32 %v4080, %v4094
        %v4096 = vrcp.pop %v4090
        %v4097 = vmul.f32 %v4082, %v4096
        %v4098 = vrcp.pop %v4093
        %v4099 = vmul.f32 %v4084, %v4098
        %4100 = vrot.lane.b32.xlu0 %v2967, 40
        %v4101 = vpop.permute.xlu0 %4100
        %4102 = vrot.lane.b32.xlu0 %v2972, 40
        %v4103 = vpop.permute.xlu0 %4102
        %4104 = vrot.lane.b32.xlu0 %v2977, 40
        %v4105 = vpop.permute.xlu0 %4104
        %v4110 = vsel %vm1225, %v4095, 0
        %v4113 = vsel %vm1225, %v4097, 0
        %v4116 = vsel %vm1225, %v4099, 0
        %4118 = vmatprep.subr.mxu0 0.0
        %4119 = vmatpush1.msra.mxu0 %v4101
        %4120 = vmatprep.subr.mxu0 0.0
        %4121 = vmatpush1.msra.mxu0 %v4103
        %4122 = vmatprep.subr.mxu0 0.0
        %4123 = vmatpush1.msra.mxu0 %v4105
        %4124 = vmatprep.subr.mxu0 0.0
        %4125 = vmatpush1.msra.mxu0 0.0
        %4126 = vmatprep.subr.mxu0 0.0
        %4127 = vmatpush1.msra.mxu0 0.0
        %4128 = vmatprep.subr.mxu0 0.0
        %4129 = vmatpush1.msra.mxu0 0.0
        %4130 = vmatprep.subr.mxu0 0.0
        %4131 = vmatpush1.msra.mxu0 0.0
        %4132 = vmatprep.subr.mxu0 0.0
        %4133 = vmatpush1.msra.mxu0 0.0
        %4134 = vmatprep.subr.mxu0 0.0
        %4135 = vmatpush1.msra.mxu0 0.0
        %4136 = vmatprep.subr.mxu0 0.0
        %4137 = vmatpush1.msra.mxu0 0.0
        %4138 = vmatprep.subr.mxu0 0.0
        %4139 = vmatpush1.msra.mxu0 0.0
        %4140 = vmatprep.subr.mxu0 0.0
        %4141 = vmatpush1.msra.mxu0 0.0
        %4142 = vmatprep.subr.mxu0 0.0
        %4143 = vmatpush1.msra.mxu0 0.0
        %4144 = vmatprep.subr.mxu0 0.0
        %4145 = vmatpush1.msra.mxu0 0.0
        %4146 = vmatprep.subr.mxu0 0.0
        %4147 = vmatpush1.msra.mxu0 0.0
        %4148 = vmatprep.subr.mxu0 0.0
        %4149 = vmatpush1.msra.mxu0 0.0
        %4150 = vmatprep.subr.mxu0 0.0
        %4151 = vmatpush1.msra.mxu0 0.0
        %4152 = vmatprep.subr.mxu0 0.0
        %4153 = vmatpush1.msra.mxu0 0.0
        %4154 = vmatprep.subr.mxu0 0.0
        %4155 = vmatpush1.msra.mxu0 0.0
        %4156 = vmatprep.subr.mxu0 0.0
        %4157 = vmatpush1.msra.mxu0 0.0
        %4158 = vmatprep.subr.mxu0 0.0
        %4159 = vmatpush1.msra.mxu0 0.0
        %4160 = vmatprep.subr.mxu0 0.0
        %4161 = vmatpush1.msra.mxu0 0.0
        %4162 = vmatprep.subr.mxu0 0.0
        %4163 = vmatpush1.msra.mxu0 0.0
        %4164 = vmatprep.subr.mxu0 0.0
        %4165 = vmatpush1.msra.mxu0 0.0
        %4166 = vmatprep.subr.mxu0 0.0
        %4167 = vmatpush1.msra.mxu0 0.0
        %4168 = vmatprep.subr.mxu0 0.0
        %4169 = vmatpush1.msra.mxu0 0.0
        %4170 = vmatprep.subr.mxu0 0.0
        %4171 = vmatpush1.msra.mxu0 0.0
        %4172 = vmatprep.subr.mxu0 0.0
        %4173 = vmatpush1.msra.mxu0 0.0
        %4174 = vmatprep.subr.mxu0 0.0
        %4175 = vmatpush1.msra.mxu0 0.0
        %4176 = vmatprep.subr.mxu0 0.0
        %4177 = vmatpush1.msra.mxu0 0.0
        %4178 = vmatprep.subr.mxu0 0.0
        %4179 = vmatpush1.msra.mxu0 0.0
        %4180 = vmatprep.subr.mxu0 0.0
        %4181 = vmatpush1.msra.mxu0 0.0
        %4182 = vmatprep.mubr.f32.mxu0 0.0
        %4183 = vmatmul.mubr.f32.gmra.mrb[0].mxu0 %v4110
        %v4184 = vpop.f32.mrb[0].mxu0
        %v4185 = vadd.f32 0.0, %v4184
        %v4186 = vpop.f32.mrb[0].mxu0
        %4187 = vmatprep.mubr.f32.mxu0 0.0
        %4188 = vmatmul.mubr.f32.gmra.mrb[0].mxu0 %v4113
        %v4189 = vpop.f32.mrb[0].mxu0
        %v4190 = vadd.f32 0.0, %v4189
        %v4191 = vpop.f32.mrb[0].mxu0
        %4192 = vmatprep.mubr.f32.mxu0 0.0
        %4193 = vmatmul.mubr.f32.gmra.mrb[0].mxu0 %v4116
        %v4194 = vpop.f32.mrb[0].mxu0
        %v4195 = vadd.f32 0.0, %v4194
        %v4196 = vpop.f32.mrb[0].mxu0
        %4197 = vdwg.mxu0
        %v4199 = vsel %vm1129, %v4185, 0
        %v4202 = vsel %vm1129, %v4190, 0
        %v4205 = vsel %vm1129, %v4195, 0
        %4207 = vmatprep.subr.mxu0 0.0
        %4208 = vmatpush1.msra.mxu0 %v2984
        %4209 = vmatprep.subr.mxu0 0.0
        %4210 = vmatpush1.msra.mxu0 0.0
        %4211 = vmatprep.subr.mxu0 0.0
        %4212 = vmatpush1.msra.mxu0 0.0
        %4213 = vmatprep.subr.mxu0 0.0
        %4214 = vmatpush1.msra.mxu0 0.0
        %4215 = vmatprep.subr.mxu0 0.0
        %4216 = vmatpush1.msra.mxu0 0.0
        %4217 = vmatprep.subr.mxu0 0.0
        %4218 = vmatpush1.msra.mxu0 0.0
        %4219 = vmatprep.subr.mxu0 0.0
        %4220 = vmatpush1.msra.mxu0 0.0
        %4221 = vmatprep.subr.mxu0 0.0
        %4222 = vmatpush1.msra.mxu0 0.0
        %4223 = vmatprep.subr.mxu0 0.0
        %4224 = vmatpush1.msra.mxu0 0.0
        %4225 = vmatprep.subr.mxu0 0.0
        %4226 = vmatpush1.msra.mxu0 0.0
        %4227 = vmatprep.subr.mxu0 0.0
        %4228 = vmatpush1.msra.mxu0 0.0
        %4229 = vmatprep.subr.mxu0 0.0
        %4230 = vmatpush1.msra.mxu0 0.0
        %4231 = vmatprep.subr.mxu0 0.0
        %4232 = vmatpush1.msra.mxu0 0.0
        %4233 = vmatprep.subr.mxu0 0.0
        %4234 = vmatpush1.msra.mxu0 0.0
        %4235 = vmatprep.subr.mxu0 0.0
        %4236 = vmatpush1.msra.mxu0 0.0
        %4237 = vmatprep.subr.mxu0 0.0
        %4238 = vmatpush1.msra.mxu0 0.0
        %4239 = vmatprep.subr.mxu0 0.0
        %4240 = vmatpush1.msra.mxu0 0.0
        %4241 = vmatprep.subr.mxu0 0.0
        %4242 = vmatpush1.msra.mxu0 0.0
        %4243 = vmatprep.subr.mxu0 0.0
        %4244 = vmatpush1.msra.mxu0 0.0
        %4245 = vmatprep.subr.mxu0 0.0
        %4246 = vmatpush1.msra.mxu0 0.0
        %4247 = vmatprep.subr.mxu0 0.0
        %4248 = vmatpush1.msra.mxu0 0.0
        %4249 = vmatprep.subr.mxu0 0.0
        %4250 = vmatpush1.msra.mxu0 0.0
        %4251 = vmatprep.subr.mxu0 0.0
        %4252 = vmatpush1.msra.mxu0 0.0
        %4253 = vmatprep.subr.mxu0 0.0
        %4254 = vmatpush1.msra.mxu0 0.0
        %4255 = vmatprep.subr.mxu0 0.0
        %4256 = vmatpush1.msra.mxu0 0.0
        %4257 = vmatprep.subr.mxu0 0.0
        %4258 = vmatpush1.msra.mxu0 0.0
        %4259 = vmatprep.subr.mxu0 0.0
        %4260 = vmatpush1.msra.mxu0 0.0
        %4261 = vmatprep.subr.mxu0 0.0
        %4262 = vmatpush1.msra.mxu0 0.0
        %4263 = vmatprep.subr.mxu0 0.0
        %4264 = vmatpush1.msra.mxu0 0.0
        %4265 = vmatprep.subr.mxu0 0.0
        %4266 = vmatpush1.msra.mxu0 0.0
        %4267 = vmatprep.subr.mxu0 0.0
        %4268 = vmatpush1.msra.mxu0 0.0
        %4269 = vmatprep.subr.mxu0 0.0
        %4270 = vmatpush1.msra.mxu0 0.0
        %4271 = vmatprep.mubr.f32.mxu0 0.0
        %4272 = vmatmul.mubr.f32.gmra.mrb[0].mxu0 %v4199
        %v4273 = vpop.f32.mrb[0].mxu0
        %v4274 = vadd.f32 0.0, %v4273
        %v4275 = vpop.f32.mrb[0].mxu0
        %4276 = vmatprep.mubr.f32.mxu0 0.0
        %4277 = vmatmul.mubr.f32.gmra.mrb[0].mxu0 %v4202
        %v4278 = vpop.f32.mrb[0].mxu0
        %v4279 = vadd.f32 0.0, %v4278
        %v4280 = vpop.f32.mrb[0].mxu0
        %4281 = vmatprep.mubr.f32.mxu0 0.0
        %4282 = vmatmul.mubr.f32.gmra.mrb[0].mxu0 %v4205
        %v4283 = vpop.f32.mrb[0].mxu0
        %v4284 = vadd.f32 0.0, %v4283
        %v4285 = vpop.f32.mrb[0].mxu0
        %4286 = vdwg.mxu0
        %v4287 = vadd.f32 %v3960, %v4274
        %v4288 = vadd.f32 %v3961, %v4279
        %v4289 = vadd.f32 %v3962, %v4284
        %4293 = vrot.lane.b32.xlu0 %v4287, 32
        %v4294 = vpop.permute.xlu0 %4293
        %4295 = vrot.lane.b32.xlu0 %v4288, 32
        %v4296 = vpop.permute.xlu0 %4295
        %4297 = vrot.lane.b32.xlu0 %v4289, 32
        %v4298 = vpop.permute.xlu0 %4297
        %v4302 = vadd.f32 %v2780, %v4294
        %v4303 = vadd.f32 %v2781, %v4296
        %v4304 = vadd.f32 %v2782, %v4298
        %s4305 = scalar_lea.vmem %s12, 1
        %v4306 = vld [vmem:[%s4305] sm:$0x1]
        %v4308 = vlaneseq
        %v4309 = vshrl.u32 %v4308, 7
        %v4310 = vsub.s32 0, %v4309
        %v4311 = vrot.slane %v4306, %v4310
        %4312 = vrot.lane.b32.xlu0 %v4311, 32
        %v4313 = vpop.permute.xlu0 %4312
        %v4315 = vadd.f32 %v4302, %v4313
        %v4316 = vadd.f32 %v4303, %v4313
        %v4317 = vadd.f32 %v4304, %v4313
        %s4318 = scalar_lea.vmem %s13, 1
        %v4319 = vld [vmem:[%s4318] sm:$0x1]
        %s4320 = scalar_lea.vmem %s14, 1
        %v4321 = vld [vmem:[%s4320] sm:$0x1]
        %4325 = vrot.lane.b32.xlu0 %v4315, 96
        %v4326 = vpop.permute.xlu0 %4325
        %4327 = vrot.lane.b32.xlu0 %v4316, 96
        %v4328 = vpop.permute.xlu0 %4327
        %4329 = vrot.lane.b32.xlu0 %v4317, 96
        %v4330 = vpop.permute.xlu0 %4329
        %v4334 = vsel %vm815, %v4326, 0.0
        %4335 = vadd.xlane.f32.xlu0 %v4334
        %v4336 = vpop.xlane.xlu0 %4335
        %v4337 = vsel %vm815, %v4328, 0.0
        %4338 = vadd.xlane.f32.xlu0 %v4337
        %v4339 = vpop.xlane.xlu0 %4338
        %v4340 = vsel %vm815, %v4330, 0.0
        %4341 = vadd.xlane.f32.xlu0 %v4340
        %v4342 = vpop.xlane.xlu0 %4341
        %v4343 = vmul.f32 %v4336, %v819
        %v4344 = vmul.f32 %v4339, %v819
        %v4345 = vmul.f32 %v4342, %v819
        %v4346 = vsub.f32 %v4315, %v4343
        %v4347 = vsub.f32 %v4316, %v4344
        %v4348 = vsub.f32 %v4317, %v4345
        %v4349 = vmul.f32 %v4346, %v4346
        %v4350 = vmul.f32 %v4347, %v4347
        %v4351 = vmul.f32 %v4348, %v4348
        %4355 = vrot.lane.b32.xlu0 %v4349, 96
        %v4356 = vpop.permute.xlu0 %4355
        %4357 = vrot.lane.b32.xlu0 %v4350, 96
        %v4358 = vpop.permute.xlu0 %4357
        %4359 = vrot.lane.b32.xlu0 %v4351, 96
        %v4360 = vpop.permute.xlu0 %4359
        %v4364 = vsel %vm815, %v4356, 0.0
        %4365 = vadd.xlane.f32.xlu0 %v4364
        %v4366 = vpop.xlane.xlu0 %4365
        %v4367 = vsel %vm815, %v4358, 0.0
        %4368 = vadd.xlane.f32.xlu0 %v4367
        %v4369 = vpop.xlane.xlu0 %4368
        %v4370 = vsel %vm815, %v4360, 0.0
        %4371 = vadd.xlane.f32.xlu0 %v4370
        %v4372 = vpop.xlane.xlu0 %4371
        %v4373 = vmul.f32 %v4366, %v819
        %v4374 = vmul.f32 %v4369, %v819
        %v4375 = vmul.f32 %v4372, %v819
        %v4376 = vadd.f32 %v4373, 1e-05
        %v4377 = vadd.f32 %v4374, 1e-05
        %v4378 = vadd.f32 %v4375, 1e-05
        %v4379 = vrsqrt.pop %v4376
        %v4380 = vrsqrt.pop %v4377
        %v4381 = vrsqrt.pop %v4378
        %v4382 = vmul.f32 %v4346, %v4379
        %v4383 = vmul.f32 %v4347, %v4380
        %v4384 = vmul.f32 %v4348, %v4381
        %v4386 = vlaneseq
        %v4387 = vshrl.u32 %v4386, 7
        %v4388 = vsub.s32 0, %v4387
        %v4389 = vrot.slane %v4319, %v4388
        %4390 = vrot.lane.b32.xlu0 %v4389, 32
        %v4391 = vpop.permute.xlu0 %4390
        %v4393 = vmul.f32 %v4382, %v4391
        %v4394 = vmul.f32 %v4383, %v4391
        %v4395 = vmul.f32 %v4384, %v4391
        %v4397 = vlaneseq
        %v4398 = vshrl.u32 %v4397, 7
        %v4399 = vsub.s32 0, %v4398
        %v4400 = vrot.slane %v4321, %v4399
        %4401 = vrot.lane.b32.xlu0 %v4400, 32
        %v4402 = vpop.permute.xlu0 %4401
        %v4404 = vadd.f32 %v4393, %v4402
        %v4405 = vadd.f32 %v4394, %v4402
        %v4406 = vadd.f32 %v4395, %v4402
        %s4407 = scalar_lea.vmem %s15, 32
        %v4408 = vld [vmem:[%s4407] sm:$0xff]
        %v4409 = vld [vmem:[%s4407 + $0x8] sm:$0xff]
        %v4410 = vld [vmem:[%s4407 + $0x10] sm:$0xff]
        %v4411 = vld [vmem:[%s4407 + $0x18] sm:$0xff]
        %s4412 = scalar_lea.vmem %s16, 1
        %v4413 = vld [vmem:[%s4412] sm:$0x1]
        %v4415 = vlaneseq
        %v4416 = vshrl.u32 %v4415, 7
        %v4417 = vsub.s32 0, %v4416
        %v4418 = vrot.slane %v4413, %v4417
        %4423 = vrot.lane.b32.xlu0 %v4404, 96
        %v4424 = vpop.permute.xlu0 %4423
        %4425 = vrot.lane.b32.xlu0 %v4405, 96
        %v4426 = vpop.permute.xlu0 %4425
        %4427 = vrot.lane.b32.xlu0 %v4406, 96
        %v4428 = vpop.permute.xlu0 %4427
        %v4429 = vsel %vm815, %v4424, 0
        %v4431 = vsel %vm815, %v4426, 0
        %v4433 = vsel %vm815, %v4428, 0
        %4435 = vmatprep.subr.mxu0 0.0
        %4436 = vmatpush1.msra.mxu0 %v4408
        %4437 = vmatprep.subr.mxu0 0.0
        %4438 = vmatpush1.msra.mxu0 %v4409
        %4439 = vmatprep.subr.mxu0 0.0
        %4440 = vmatpush1.msra.mxu0 %v4410
        %4441 = vmatprep.subr.mxu0 0.0
        %4442 = vmatpush1.msra.mxu0 %v4411
        %4443 = vmatprep.subr.mxu0 0.0
        %4444 = vmatpush1.msra.mxu0 0.0
        %4445 = vmatprep.subr.mxu0 0.0
        %4446 = vmatpush1.msra.mxu0 0.0
        %4447 = vmatprep.subr.mxu0 0.0
        %4448 = vmatpush1.msra.mxu0 0.0
        %4449 = vmatprep.subr.mxu0 0.0
        %4450 = vmatpush1.msra.mxu0 0.0
        %4451 = vmatprep.subr.mxu0 0.0
        %4452 = vmatpush1.msra.mxu0 0.0
        %4453 = vmatprep.subr.mxu0 0.0
        %4454 = vmatpush1.msra.mxu0 0.0
        %4455 = vmatprep.subr.mxu0 0.0
        %4456 = vmatpush1.msra.mxu0 0.0
        %4457 = vmatprep.subr.mxu0 0.0
        %4458 = vmatpush1.msra.mxu0 0.0
        %4459 = vmatprep.subr.mxu0 0.0
        %4460 = vmatpush1.msra.mxu0 0.0
        %4461 = vmatprep.subr.mxu0 0.0
        %4462 = vmatpush1.msra.mxu0 0.0
        %4463 = vmatprep.subr.mxu0 0.0
        %4464 = vmatpush1.msra.mxu0 0.0
        %4465 = vmatprep.subr.mxu0 0.0
        %4466 = vmatpush1.msra.mxu0 0.0
        %4467 = vmatprep.subr.mxu0 0.0
        %4468 = vmatpush1.msra.mxu0 0.0
        %4469 = vmatprep.subr.mxu0 0.0
        %4470 = vmatpush1.msra.mxu0 0.0
        %4471 = vmatprep.subr.mxu0 0.0
        %4472 = vmatpush1.msra.mxu0 0.0
        %4473 = vmatprep.subr.mxu0 0.0
        %4474 = vmatpush1.msra.mxu0 0.0
        %4475 = vmatprep.subr.mxu0 0.0
        %4476 = vmatpush1.msra.mxu0 0.0
        %4477 = vmatprep.subr.mxu0 0.0
        %4478 = vmatpush1.msra.mxu0 0.0
        %4479 = vmatprep.subr.mxu0 0.0
        %4480 = vmatpush1.msra.mxu0 0.0
        %4481 = vmatprep.subr.mxu0 0.0
        %4482 = vmatpush1.msra.mxu0 0.0
        %4483 = vmatprep.subr.mxu0 0.0
        %4484 = vmatpush1.msra.mxu0 0.0
        %4485 = vmatprep.subr.mxu0 0.0
        %4486 = vmatpush1.msra.mxu0 0.0
        %4487 = vmatprep.subr.mxu0 0.0
        %4488 = vmatpush1.msra.mxu0 0.0
        %4489 = vmatprep.subr.mxu0 0.0
        %4490 = vmatpush1.msra.mxu0 0.0
        %4491 = vmatprep.subr.mxu0 0.0
        %4492 = vmatpush1.msra.mxu0 0.0
        %4493 = vmatprep.subr.mxu0 0.0
        %4494 = vmatpush1.msra.mxu0 0.0
        %4495 = vmatprep.subr.mxu0 0.0
        %4496 = vmatpush1.msra.mxu0 0.0
        %4497 = vmatprep.subr.mxu0 0.0
        %4498 = vmatpush1.msra.mxu0 0.0
        %4499 = vmatprep.mubr.f32.mxu0 0.0
        %4500 = vmatmul.mubr.f32.gmra.mrb[0].mxu0 %v4429
        %v4501 = vpop.f32.mrb[0].mxu0
        %v4502 = vadd.f32 %v4418, %v4501
        %v4503 = vpop.f32.mrb[0].mxu0
        %4504 = vmatprep.mubr.f32.mxu0 0.0
        %4505 = vmatmul.mubr.f32.gmra.mrb[0].mxu0 %v4431
        %v4506 = vpop.f32.mrb[0].mxu0
        %v4507 = vadd.f32 %v4418, %v4506
        %v4508 = vpop.f32.mrb[0].mxu0
        %4509 = vmatprep.mubr.f32.mxu0 0.0
        %4510 = vmatmul.mubr.f32.gmra.mrb[0].mxu0 %v4433
        %v4511 = vpop.f32.mrb[0].mxu0
        %v4512 = vadd.f32 %v4418, %v4511
        %v4513 = vpop.f32.mrb[0].mxu0
        %4514 = vdwg.mxu0
        %v4515 = vmul.f32 %v4502, 0.5
        %v4516 = vmul.f32 %v4507, 0.5
        %v4517 = vmul.f32 %v4512, 0.5
        %v4518 = vmul.f32 %v4502, %v2647
        %v4519 = vmul.f32 %v4507, %v2647
        %v4520 = vmul.f32 %v4512, %v2647
        %v4521 = verf.f32.pop %v4518
        %v4522 = verf.f32.pop %v4519
        %v4523 = verf.f32.pop %v4520
        %v4524 = vadd.f32 %v4521, 1.0
        %v4525 = vadd.f32 %v4522, 1.0
        %v4526 = vadd.f32 %v4523, 1.0
        %v4527 = vmul.f32 %v4515, %v4524
        %v4528 = vmul.f32 %v4516, %v4525
        %v4529 = vmul.f32 %v4517, %v4526
        %s4530 = scalar_lea.vmem %s17, 128
        %v4531 = vld [vmem:[%s4530] sm:$0xff]
        %v4532 = vld [vmem:[%s4530 + $0x8] sm:$0xff]
        %v4533 = vld [vmem:[%s4530 + $0x10] sm:$0xff]
        %v4534 = vld [vmem:[%s4530 + $0x18] sm:$0xff]
        %v4535 = vld [vmem:[%s4530 + $0x20] sm:$0xff]
        %v4536 = vld [vmem:[%s4530 + $0x28] sm:$0xff]
        %v4537 = vld [vmem:[%s4530 + $0x30] sm:$0xff]
        %v4538 = vld [vmem:[%s4530 + $0x38] sm:$0xff]
        %v4539 = vld [vmem:[%s4530 + $0x40] sm:$0xff]
        %v4540 = vld [vmem:[%s4530 + $0x48] sm:$0xff]
        %v4541 = vld [vmem:[%s4530 + $0x50] sm:$0xff]
        %v4542 = vld [vmem:[%s4530 + $0x58] sm:$0xff]
        %v4543 = vld [vmem:[%s4530 + $0x60] sm:$0xff]
        %v4544 = vld [vmem:[%s4530 + $0x68] sm:$0xff]
        %v4545 = vld [vmem:[%s4530 + $0x70] sm:$0xff]
        %v4546 = vld [vmem:[%s4530 + $0x78] sm:$0xff]
        %4547 = vmatprep.subr.mxu0 0.0
        %4548 = vmatpush1.msra.mxu0 %v4531
        %4549 = vmatprep.subr.mxu0 0.0
        %4550 = vmatpush1.msra.mxu0 %v4532
        %4551 = vmatprep.subr.mxu0 0.0
        %4552 = vmatpush1.msra.mxu0 %v4533
        %4553 = vmatprep.subr.mxu0 0.0
        %4554 = vmatpush1.msra.mxu0 %v4534
        %4555 = vmatprep.subr.mxu0 0.0
        %4556 = vmatpush1.msra.mxu0 %v4535
        %4557 = vmatprep.subr.mxu0 0.0
        %4558 = vmatpush1.msra.mxu0 %v4536
        %4559 = vmatprep.subr.mxu0 0.0
        %4560 = vmatpush1.msra.mxu0 %v4537
        %4561 = vmatprep.subr.mxu0 0.0
        %4562 = vmatpush1.msra.mxu0 %v4538
        %4563 = vmatprep.subr.mxu0 0.0
        %4564 = vmatpush1.msra.mxu0 %v4539
        %4565 = vmatprep.subr.mxu0 0.0
        %4566 = vmatpush1.msra.mxu0 %v4540
        %4567 = vmatprep.subr.mxu0 0.0
        %4568 = vmatpush1.msra.mxu0 %v4541
        %4569 = vmatprep.subr.mxu0 0.0
        %4570 = vmatpush1.msra.mxu0 %v4542
        %4571 = vmatprep.subr.mxu0 0.0
        %4572 = vmatpush1.msra.mxu0 %v4543
        %4573 = vmatprep.subr.mxu0 0.0
        %4574 = vmatpush1.msra.mxu0 %v4544
        %4575 = vmatprep.subr.mxu0 0.0
        %4576 = vmatpush1.msra.mxu0 %v4545
        %4577 = vmatprep.subr.mxu0 0.0
        %4578 = vmatpush1.msra.mxu0 %v4546
        %4579 = vmatprep.subr.mxu0 0.0
        %4580 = vmatpush1.msra.mxu0 0.0
        %4581 = vmatprep.subr.mxu0 0.0
        %4582 = vmatpush1.msra.mxu0 0.0
        %4583 = vmatprep.subr.mxu0 0.0
        %4584 = vmatpush1.msra.mxu0 0.0
        %4585 = vmatprep.subr.mxu0 0.0
        %4586 = vmatpush1.msra.mxu0 0.0
        %4587 = vmatprep.subr.mxu0 0.0
        %4588 = vmatpush1.msra.mxu0 0.0
        %4589 = vmatprep.subr.mxu0 0.0
        %4590 = vmatpush1.msra.mxu0 0.0
        %4591 = vmatprep.subr.mxu0 0.0
        %4592 = vmatpush1.msra.mxu0 0.0
        %4593 = vmatprep.subr.mxu0 0.0
        %4594 = vmatpush1.msra.mxu0 0.0
        %4595 = vmatprep.subr.mxu0 0.0
        %4596 = vmatpush1.msra.mxu0 0.0
        %4597 = vmatprep.subr.mxu0 0.0
        %4598 = vmatpush1.msra.mxu0 0.0
        %4599 = vmatprep.subr.mxu0 0.0
        %4600 = vmatpush1.msra.mxu0 0.0
        %4601 = vmatprep.subr.mxu0 0.0
        %4602 = vmatpush1.msra.mxu0 0.0
        %4603 = vmatprep.subr.mxu0 0.0
        %4604 = vmatpush1.msra.mxu0 0.0
        %4605 = vmatprep.subr.mxu0 0.0
        %4606 = vmatpush1.msra.mxu0 0.0
        %4607 = vmatprep.subr.mxu0 0.0
        %4608 = vmatpush1.msra.mxu0 0.0
        %4609 = vmatprep.subr.mxu0 0.0
        %4610 = vmatpush1.msra.mxu0 0.0
        %4611 = vmatprep.mubr.f32.mxu0 0.0
        %4612 = vmatmul.mubr.f32.gmra.mrb[0].mxu0 %v4527
        %v4613 = vpop.f32.mrb[0].mxu0
        %v4614 = vpop.f32.mrb[0].mxu0
        %4615 = vmatprep.mubr.f32.mxu0 0.0
        %4616 = vmatmul.mubr.f32.gmra.mrb[0].mxu0 %v4528
        %v4617 = vpop.f32.mrb[0].mxu0
        %v4618 = vadd.f32 0.0, %v4617
        %v4619 = vpop.f32.mrb[0].mxu0
        %4620 = vmatprep.mubr.f32.mxu0 0.0
        %4621 = vmatmul.mubr.f32.gmra.mrb[0].mxu0 %v4529
        %v4622 = vpop.f32.mrb[0].mxu0
        %v4623 = vpop.f32.mrb[0].mxu0
        %4624 = vdwg.mxu0
        %4626 = vrot.lane.b32.xlu0 %v4618, 32
        %v4627 = vpop.permute.xlu0 %4626
        %v4629 = vadd.f32 %v4316, %v4627
        %s4630 = scalar_lea.vmem %s18, 1
        %v4631 = vld [vmem:[%s4630] sm:$0x1]
        %v4633 = vlaneseq
        %v4634 = vshrl.u32 %v4633, 7
        %v4635 = vsub.s32 0, %v4634
        %v4636 = vrot.slane %v4631, %v4635
        %4637 = vrot.lane.b32.xlu0 %v4636, 32
        %v4638 = vpop.permute.xlu0 %4637
        %v4640 = vadd.f32 %v4629, %v4638
        %v4641 = vld [vmem:[%s19] sm:$0x1]
        %v4642 = vld [vmem:[%s20] sm:$0x1]
        %4644 = vrot.lane.b32.xlu0 %v4640, 96
        %v4645 = vpop.permute.xlu0 %4644
        %v4647 = vsel %vm815, %v4645, 0.0
        %4648 = vadd.xlane.f32.xlu0 %v4647
        %v4649 = vpop.xlane.xlu0 %4648
        %v4650 = vmul.f32 %v4649, %v819
        %v4651 = vsub.f32 %v4640, %v4650
        %v4652 = vmul.f32 %v4651, %v4651
        %4654 = vrot.lane.b32.xlu0 %v4652, 96
        %v4655 = vpop.permute.xlu0 %4654
        %v4657 = vsel %vm815, %v4655, 0.0
        %4658 = vadd.xlane.f32.xlu0 %v4657
        %v4659 = vpop.xlane.xlu0 %4658
        %v4660 = vmul.f32 %v4659, %v819
        %v4661 = vadd.f32 %v4660, 1e-05
        %v4662 = vrsqrt.pop %v4661
        %v4663 = vmul.f32 %v4651, %v4662
        %v4665 = vlaneseq
        %v4666 = vshrl.u32 %v4665, 7
        %v4667 = vsub.s32 0, %v4666
        %v4668 = vrot.slane %v4641, %v4667
        %4669 = vrot.lane.b32.xlu0 %v4668, 32
        %v4670 = vpop.permute.xlu0 %4669
        %v4672 = vmul.f32 %v4663, %v4670
        %v4674 = vlaneseq
        %v4675 = vshrl.u32 %v4674, 7
        %v4676 = vsub.s32 0, %v4675
        %v4677 = vrot.slane %v4642, %v4676
        %4678 = vrot.lane.b32.xlu0 %v4677, 32
        %v4679 = vpop.permute.xlu0 %4678
        %v4681 = vadd.f32 %v4672, %v4679
        %v4682 = vld [vmem:[%s21] sm:$0xff]
        %v4683 = vld [vmem:[%s21 + $0x8] sm:$0xff]
        %v4684 = vld [vmem:[%s21 + $0x10] sm:$0xff]
        %v4685 = vld [vmem:[%s21 + $0x18] sm:$0xff]
        %v4686 = vld [vmem:[%s22] sm:$0x1]
        %v4688 = vlaneseq
        %v4689 = vshrl.u32 %v4688, 7
        %v4690 = vsub.s32 0, %v4689
        %v4691 = vrot.slane %v4686, %v4690
        %4694 = vrot.lane.b32.xlu0 %v4681, 96
        %v4695 = vpop.permute.xlu0 %4694
        %v4696 = vsel %vm815, %v4695, 0
        %4698 = vmatprep.subr.mxu0 0.0
        %4699 = vmatpush1.msra.mxu0 %v4682
        %4700 = vmatprep.subr.mxu0 0.0
        %4701 = vmatpush1.msra.mxu0 %v4683
        %4702 = vmatprep.subr.mxu0 0.0
        %4703 = vmatpush1.msra.mxu0 %v4684
        %4704 = vmatprep.subr.mxu0 0.0
        %4705 = vmatpush1.msra.mxu0 %v4685
        %4706 = vmatprep.subr.mxu0 0.0
        %4707 = vmatpush1.msra.mxu0 0.0
        %4708 = vmatprep.subr.mxu0 0.0
        %4709 = vmatpush1.msra.mxu0 0.0
        %4710 = vmatprep.subr.mxu0 0.0
        %4711 = vmatpush1.msra.mxu0 0.0
        %4712 = vmatprep.subr.mxu0 0.0
        %4713 = vmatpush1.msra.mxu0 0.0
        %4714 = vmatprep.subr.mxu0 0.0
        %4715 = vmatpush1.msra.mxu0 0.0
        %4716 = vmatprep.subr.mxu0 0.0
        %4717 = vmatpush1.msra.mxu0 0.0
        %4718 = vmatprep.subr.mxu0 0.0
        %4719 = vmatpush1.msra.mxu0 0.0
        %4720 = vmatprep.subr.mxu0 0.0
        %4721 = vmatpush1.msra.mxu0 0.0
        %4722 = vmatprep.subr.mxu0 0.0
        %4723 = vmatpush1.msra.mxu0 0.0
        %4724 = vmatprep.subr.mxu0 0.0
        %4725 = vmatpush1.msra.mxu0 0.0
        %4726 = vmatprep.subr.mxu0 0.0
        %4727 = vmatpush1.msra.mxu0 0.0
        %4728 = vmatprep.subr.mxu0 0.0
        %4729 = vmatpush1.msra.mxu0 0.0
        %4730 = vmatprep.subr.mxu0 0.0
        %4731 = vmatpush1.msra.mxu0 0.0
        %4732 = vmatprep.subr.mxu0 0.0
        %4733 = vmatpush1.msra.mxu0 0.0
        %4734 = vmatprep.subr.mxu0 0.0
        %4735 = vmatpush1.msra.mxu0 0.0
        %4736 = vmatprep.subr.mxu0 0.0
        %4737 = vmatpush1.msra.mxu0 0.0
        %4738 = vmatprep.subr.mxu0 0.0
        %4739 = vmatpush1.msra.mxu0 0.0
        %4740 = vmatprep.subr.mxu0 0.0
        %4741 = vmatpush1.msra.mxu0 0.0
        %4742 = vmatprep.subr.mxu0 0.0
        %4743 = vmatpush1.msra.mxu0 0.0
        %4744 = vmatprep.subr.mxu0 0.0
        %4745 = vmatpush1.msra.mxu0 0.0
        %4746 = vmatprep.subr.mxu0 0.0
        %4747 = vmatpush1.msra.mxu0 0.0
        %4748 = vmatprep.subr.mxu0 0.0
        %4749 = vmatpush1.msra.mxu0 0.0
        %4750 = vmatprep.subr.mxu0 0.0
        %4751 = vmatpush1.msra.mxu0 0.0
        %4752 = vmatprep.subr.mxu0 0.0
        %4753 = vmatpush1.msra.mxu0 0.0
        %4754 = vmatprep.subr.mxu0 0.0
        %4755 = vmatpush1.msra.mxu0 0.0
        %4756 = vmatprep.subr.mxu0 0.0
        %4757 = vmatpush1.msra.mxu0 0.0
        %4758 = vmatprep.subr.mxu0 0.0
        %4759 = vmatpush1.msra.mxu0 0.0
        %4760 = vmatprep.subr.mxu0 0.0
        %4761 = vmatpush1.msra.mxu0 0.0
        %4762 = vmatprep.mubr.f32.mxu0 0.0
        %4763 = vmatmul.mubr.f32.gmra.mrb[0].mxu0 %v4696
        %v4764 = vpop.f32.mrb[0].mxu0
        %v4765 = vadd.f32 %v4691, %v4764
        %v4766 = vpop.f32.mrb[0].mxu0
        %4767 = vdwg.mxu0
        %v4768 = vtanh.pop %v4765
        %4769 = vst [vmem:[%s714] sm:$0xff] %v4768
        %s4770 = sand.u32 %s538, 1
        %s4771 = scalar_lea.sflag [#allocation3], %s4770
        %s4772 = sand.u32 %s538, 1
        %s4773 = smul.addr %s4772, 8
        %s4774 = scalar_lea.vmem [#allocation2], %s4773
        // Predicated region
        $region113: #{tpu_custom_call.1} parent=111 // pred_check
          %p4775 = pneg %p548
        $region114: #{tpu_custom_call.1} parent=111 // pred_check_branch
          %4777 = sbr.rel (%p4775) target = $region116
        $region115: #{tpu_custom_call.1} parent=111 // pred_region
          %s4779 = ssub.s32 128, 128
          %4780 = vsyncadd %s4771, %s4779
          %s4781 = smul.addr %s37, 128
          %s4782 = scalar_lea.hbm %s23, %s4781
          %s4784 = sshll.u32 %s4774, 4
          %s4785 = int_to_ptr.vmem [resolvable:$true] %s4784
          %4787 = dma.vmem_to_hbm [thread:$0]  %s4785, 128, %s4782, %s4771
        $region116: #{tpu_custom_call.1} parent=111 // pred_fallthru
          _
      $region112: #{tpu_custom_call.1} parent=5 // pred_fallthru
        _
      %p4788 = scmp.le.s32.totalorder 2, %s32
      // Predicated region
      $region117: #{tpu_custom_call.1} parent=5 // pred_check
        %p4789 = pneg %p4788
      $region118: #{tpu_custom_call.1} parent=5 // pred_check_branch
        %4791 = sbr.rel (%p4789) target = $region120
      $region119: #{tpu_custom_call.1} parent=5 // pred_region
        %s4792 = ssub.s32 %s32, 2
        // Predicated region
        $region121: #{tpu_custom_call.1} parent=119 // pred_check
          %p4793 = pneg %p554
        $region122: #{tpu_custom_call.1} parent=119 // pred_check_branch
          %4795 = sbr.rel (%p4793) target = $region124
        $region123: #{tpu_custom_call.1} parent=119 // pred_region
          %s4796 = sand.u32 %s539, 1
          %s4797 = scalar_lea.sflag [#allocation3], %s4796
          %s4798 = sand.u32 %s539, 1
          %s4799 = smul.addr %s4798, 8
          %s4800 = scalar_lea.vmem [#allocation2], %s4799
          %4801 = dma.done %s4797, 128
        $region124: #{tpu_custom_call.1} parent=119 // pred_fallthru
          _
      $region120: #{tpu_custom_call.1} parent=5 // pred_fallthru
        _
    $region6: #{tpu_custom_call.1} parent=1 // loop_footer
      %s36 = sadd.s32 1, %s32
    $region7: #{tpu_custom_call.1} parent=1 // loop_footer_branch
      %31 = sbr.rel target = $region3
    $region8: #{tpu_custom_call.1} parent=1 // loop_exit
      _
    %4802 = vsyncpa [#allocation3], 1
    %s4803 = scalar_lea.sflag [#allocation3], 1
    %4804 = vsyncpa %s4803, 1

</llo_original>
